<compile_context>
chip_gen: v5e
topology: v5e:2x2
jax: 0.10.0
libtpu: 0.0.40
codegen_flags: <defaults>
</compile_context>

<pallas_src>
import jax
import jax.numpy as jnp
from jax.experimental import pallas as pl
from jax.experimental.pallas import tpu as pltpu

BN_EPS = 1e-5


def _conv_stats_kernel(patches_ref, w1t_ref, conv_ref, sum_ref, sumsq_ref):
    """Pass 1: 5x5x5 conv (MXU matmul over im2col columns) + BN stat accumulation.

    patches_ref: (Kp, tile_m)   bf16  -- im2col features x voxels (M on lanes)
    w1t_ref:     (Cout, Kp)     bf16  -- flattened conv weight (constant block)
    conv_ref:    (Cout, tile_m) f32   -- conv output tile (written every grid step)
    sum_ref, sumsq_ref: (Cout, 1) f32 -- per-channel accumulators, VMEM-resident
    """
    c = jnp.dot(w1t_ref[...], patches_ref[...],
                preferred_element_type=jnp.float32)            # (Cout, tile_m)
    conv_ref[...] = c

    @pl.when(pl.program_id(0) == 0)
    def _():
        sum_ref[...] = jnp.zeros_like(sum_ref)
        sumsq_ref[...] = jnp.zeros_like(sumsq_ref)

    sum_ref[...] += jnp.sum(c, axis=1, keepdims=True)
    sumsq_ref[...] += jnp.sum(c * c, axis=1, keepdims=True)


def _bn_residual_prelu_kernel(conv_ref, xrep_ref, params_ref, out_ref):
    """Pass 2: out = PReLU(conv*scale + shift + x_rep), all per-channel params."""
    scale = params_ref[:, 0:1]     # (Cout, 1), broadcast along lanes
    shift = params_ref[:, 1:2]
    alpha = params_ref[:, 2:3]
    y = conv_ref[...] * scale + shift + xrep_ref[...]
    out_ref[...] = jnp.where(y > 0.0, y, alpha * y)


def _pick_tile(m, max_tile=2048):
    """Largest multiple of 128 that divides m and is <= max_tile (else full m)."""
    cand = (min(max_tile, m) // 128) * 128
    while cand >= 128:
        if m % cand == 0:
            return cand
        cand -= 128
    return m


@jax.jit
def input_transition_forward(x, w_conv5, gamma, beta, prelu_alpha):
    """x: (N, Cin, D, H, W) f32 -> (N, Cout, D, H, W) f32 (training-mode BN)."""
    N, Cin, D, H, W = x.shape
    Cout = w_conv5.shape[0]
    K, pad = 5, 2
    reps = Cout // Cin
    M = N * D * H * W
    Kfeat = Cin * K ** 3
    Kp = ((Kfeat + 127) // 128) * 128           # pad contraction dim to 128-multiple

    # --- im2col (plain-JAX glue), built directly in the transposed (Kfeat, M) layout
    # --- so the kernels' lane axis is the large voxel axis M. ------------------------
    xp = jnp.pad(x, ((0, 0), (0, 0), (pad, pad), (pad, pad), (pad, pad)))
    cols = []
    for kd in range(K):
        for kh in range(K):
            for kw in range(K):
                cols.append(xp[:, :, kd:kd + D, kh:kh + H, kw:kw + W])
    patches = jnp.stack(cols, axis=2)                        # (N, Cin, 125, D, H, W)
    patches = patches.transpose(1, 2, 0, 3, 4, 5).reshape(Kfeat, M)
    patches = jnp.pad(patches, ((0, Kp - Kfeat), (0, 0))).astype(jnp.bfloat16)

    w1t = w_conv5.reshape(Cout, Kfeat)                       # (cin, kd, kh, kw) order
    w1t = jnp.pad(w1t, ((0, 0), (0, Kp - Kfeat))).astype(jnp.bfloat16)

    tile_m = _pick_tile(M)
    n_tiles = M // tile_m

    # --- pass 1: conv + per-channel sum / sum-of-squares over all voxels -------------
    conv_t, csum, csumsq = pl.pallas_call(
        _conv_stats_kernel,
        out_shape=(
            jax.ShapeDtypeStruct((Cout, M), jnp.float32),
            jax.ShapeDtypeStruct((Cout, 1), jnp.float32),
            jax.ShapeDtypeStruct((Cout, 1), jnp.float32),
        ),
        grid=(n_tiles,),
        in_specs=[
            pl.BlockSpec((Kp, tile_m), lambda i: (0, i)),
            pl.BlockSpec((Cout, Kp), lambda i: (0, 0)),
        ],
        out_specs=(
            pl.BlockSpec((Cout, tile_m), lambda i: (0, i)),
            pl.BlockSpec((Cout, 1), lambda i: (0, 0)),
            pl.BlockSpec((Cout, 1), lambda i: (0, 0)),
        ),
        compiler_params=pltpu.CompilerParams(
            dimension_semantics=("arbitrary",)),   # stats accumulators are resident
    )(patches, w1t)

    # --- BN finalize (tiny per-channel math, plain JAX) -------------------------------
    mean = csum[:, 0] / M
    var = jnp.maximum(csumsq[:, 0] / M - mean * mean, 0.0)   # biased (training) variance
    inv_std = jax.lax.rsqrt(var + BN_EPS)
    scale = gamma * inv_std
    shift = beta - mean * scale
    params = jnp.stack([scale, shift, prelu_alpha], axis=1).astype(jnp.float32)  # (Cout,3)

    # residual: x repeated along channels to Cout, transposed to (Cout, M)
    x_rep_t = jnp.tile(x, (1, reps, 1, 1, 1)).transpose(1, 0, 2, 3, 4).reshape(Cout, M)

    # --- pass 2: BN apply + residual add + per-channel PReLU --------------------------
    out_t = pl.pallas_call(
        _bn_residual_prelu_kernel,
        out_shape=jax.ShapeDtypeStruct((Cout, M), jnp.float32),
        grid=(n_tiles,),
        in_specs=[
            pl.BlockSpec((Cout, tile_m), lambda i: (0, i)),
            pl.BlockSpec((Cout, tile_m), lambda i: (0, i)),
            pl.BlockSpec((Cout, 3), lambda i: (0, 0)),
        ],
        out_specs=pl.BlockSpec((Cout, tile_m), lambda i: (0, i)),
        compiler_params=pltpu.CompilerParams(
            dimension_semantics=("parallel",)),    # independent tiles -> megacore on v7x
    )(conv_t, x_rep_t, params)

    # back to NCDHW
    return out_t.reshape(Cout, N, D, H, W).transpose(1, 0, 2, 3, 4)


def _reference(x, w_conv5, gamma, beta, prelu_alpha):
    """Pure-JAX f32 reference matching the PyTorch module (training-mode BN)."""
    conv = jax.lax.conv_general_dilated(
        x, w_conv5, (1, 1, 1), [(2, 2), (2, 2), (2, 2)],
        dimension_numbers=("NCDHW", "OIDHW", "NCDHW"))
    mean = conv.mean(axis=(0, 2, 3, 4), keepdims=True)
    var = ((conv - mean) ** 2).mean(axis=(0, 2, 3, 4), keepdims=True)
    y = (conv - mean) / jnp.sqrt(var + BN_EPS) * gamma.reshape(1, -1, 1, 1, 1) \
        + beta.reshape(1, -1, 1, 1, 1)
    reps = w_conv5.shape[0] // x.shape[1]
    y = y + jnp.tile(x, (1, reps, 1, 1, 1))
    a = prelu_alpha.reshape(1, -1, 1, 1, 1)
    return jnp.where(y > 0, y, a * y)


if __name__ == "__main__":
    # small shapes consistent with a 3D VNet input transition
    N, Cin, Cout, D, H, W = 2, 2, 16, 16, 16, 16   # M = 8192 -> 4 grid tiles of 2048

    key = jax.random.PRNGKey(0)
    k_x, k_w5, k_g, k_b, k_a = jax.random.split(key, 5)

    x = jax.random.normal(k_x, (N, Cin, D, H, W), dtype=jnp.float32)
    w_conv5 = 0.1 * jax.random.normal(k_w5, (Cout, Cin, 5, 5, 5), dtype=jnp.float32)
    gamma = 1.0 + 0.1 * jax.random.normal(k_g, (Cout,), dtype=jnp.float32)
    beta = 0.1 * jax.random.normal(k_b, (Cout,), dtype=jnp.float32)
    prelu_alpha = 0.25 + 0.05 * jax.random.normal(k_a, (Cout,), dtype=jnp.float32)

    out = input_transition_forward(x, w_conv5, gamma, beta, prelu_alpha)
    out = jax.block_until_ready(out)

    ref = _reference(x, w_conv5, gamma, beta, prelu_alpha)
    assert out.shape == (N, Cout, D, H, W), out.shape
    # bf16 patches/weights feeding the MXU vs. a pure-f32 reference -> relaxed tolerance.
    max_err = float(jnp.max(jnp.abs(out - ref)))
    assert jnp.allclose(out, ref, atol=2e-2, rtol=2e-2), max_err

    print("KERNEL_OK")
</pallas_src>

<mosaic_0001>
module attributes {stable_mosaic.version = 11 : i64} {
  func.func @_conv_stats_kernel(%arg0: i32, %arg1: memref<256x2048xbf16, #tpu.memory_space<vmem>>, %arg2: memref<16x256xbf16, #tpu.memory_space<vmem>>, %arg3: memref<16x2048xf32, #tpu.memory_space<vmem>>, %arg4: memref<16x1xf32, #tpu.memory_space<vmem>>, %arg5: memref<16x1xf32, #tpu.memory_space<vmem>>) attributes {dimension_semantics = [#tpu.dimension_semantics<arbitrary>], iteration_bounds = array<i64: 4>, scalar_prefetch = 0 : i64, scratch_operands = 0 : i64, tpu.core_type = #tpu.core_type<tc>, window_params = [{transform_indices = @transform_0, window_bounds = array<i64: 256, 2048>}, {pipeline_mode = #tpu.pipeline_mode<synchronous>, transform_indices = @transform_1, window_bounds = array<i64: 16, 256>}, {transform_indices = @transform_2, window_bounds = array<i64: 16, 2048>}, {pipeline_mode = #tpu.pipeline_mode<synchronous>, transform_indices = @transform_3, window_bounds = array<i64: 16, 1>}, {pipeline_mode = #tpu.pipeline_mode<synchronous>, transform_indices = @transform_4, window_bounds = array<i64: 16, 1>}]} {
    %c0 = arith.constant 0 : index
    %c0_0 = arith.constant 0 : index
    %0 = vector.load %arg2[%c0, %c0_0] : memref<16x256xbf16, #tpu.memory_space<vmem>>, vector<16x256xbf16>
    %c0_1 = arith.constant 0 : index
    %c0_2 = arith.constant 0 : index
    %1 = vector.load %arg1[%c0_1, %c0_2] : memref<256x2048xbf16, #tpu.memory_space<vmem>>, vector<256x2048xbf16>
    %cst = arith.constant dense<0.000000e+00> : vector<16x2048xf32>
    %2 = tpu.matmul %0, %1, %cst {dimension_numbers = #tpu.dot_dimension_numbers<[1], [0], [0], [1], [0, 0, 1, 1], [], []>} : vector<16x256xbf16>, vector<256x2048xbf16>, vector<16x2048xf32> -> vector<16x2048xf32>
    %c0_3 = arith.constant 0 : index
    %c0_4 = arith.constant 0 : index
    %3 = vector.load %arg3[%c0_3, %c0_4] : memref<16x2048xf32, #tpu.memory_space<vmem>>, vector<16x2048xf32>
    tpu.vector_store %arg3[%c0_3, %c0_4], %2 {strides = array<i32>} : memref<16x2048xf32, #tpu.memory_space<vmem>>, vector<16x2048xf32>,
    %c0_i32 = arith.constant 0 : i32
    %4 = arith.cmpi eq, %arg0, %c0_i32 : i32
    %5 = arith.extui %4 : i1 to i32
    %c0_i32_5 = arith.constant 0 : i32
    %6 = arith.cmpi ne, %5, %c0_i32_5 : i32
    scf.if %6 {
      %cst_16 = arith.constant 0.000000e+00 : f32
      %18 = vector.broadcast %cst_16 : f32 to vector<16x1xf32>
      %c0_17 = arith.constant 0 : index
      %c0_18 = arith.constant 0 : index
      %19 = vector.load %arg4[%c0_17, %c0_18] : memref<16x1xf32, #tpu.memory_space<vmem>>, vector<16x1xf32>
      tpu.vector_store %arg4[%c0_17, %c0_18], %18 {strides = array<i32>} : memref<16x1xf32, #tpu.memory_space<vmem>>, vector<16x1xf32>,
      %cst_19 = arith.constant 0.000000e+00 : f32
      %20 = vector.broadcast %cst_19 : f32 to vector<16x1xf32>
      %c0_20 = arith.constant 0 : index
      %c0_21 = arith.constant 0 : index
      %21 = vector.load %arg5[%c0_20, %c0_21] : memref<16x1xf32, #tpu.memory_space<vmem>>, vector<16x1xf32>
      tpu.vector_store %arg5[%c0_20, %c0_21], %20 {strides = array<i32>} : memref<16x1xf32, #tpu.memory_space<vmem>>, vector<16x1xf32>,
    } else {
    }
    %c0_6 = arith.constant 0 : index
    %c0_7 = arith.constant 0 : index
    %7 = vector.load %arg4[%c0_6, %c0_7] : memref<16x1xf32, #tpu.memory_space<vmem>>, vector<16x1xf32>
    %cst_8 = arith.constant dense<0.000000e+00> : vector<16xf32>
    %8 = vector.multi_reduction <add>, %2, %cst_8 [1] : vector<16x2048xf32> to vector<16xf32>
    %9 = vector.shape_cast %8 : vector<16xf32> to vector<16x1xf32>
    %10 = arith.addf %7, %9 : vector<16x1xf32>
    %c0_9 = arith.constant 0 : index
    %c0_10 = arith.constant 0 : index
    %11 = vector.load %arg4[%c0_9, %c0_10] : memref<16x1xf32, #tpu.memory_space<vmem>>, vector<16x1xf32>
    tpu.vector_store %arg4[%c0_9, %c0_10], %10 {strides = array<i32>} : memref<16x1xf32, #tpu.memory_space<vmem>>, vector<16x1xf32>,
    %c0_11 = arith.constant 0 : index
    %c0_12 = arith.constant 0 : index
    %12 = vector.load %arg5[%c0_11, %c0_12] : memref<16x1xf32, #tpu.memory_space<vmem>>, vector<16x1xf32>
    %13 = arith.mulf %2, %2 : vector<16x2048xf32>
    %cst_13 = arith.constant dense<0.000000e+00> : vector<16xf32>
    %14 = vector.multi_reduction <add>, %13, %cst_13 [1] : vector<16x2048xf32> to vector<16xf32>
    %15 = vector.shape_cast %14 : vector<16xf32> to vector<16x1xf32>
    %16 = arith.addf %12, %15 : vector<16x1xf32>
    %c0_14 = arith.constant 0 : index
    %c0_15 = arith.constant 0 : index
    %17 = vector.load %arg5[%c0_14, %c0_15] : memref<16x1xf32, #tpu.memory_space<vmem>>, vector<16x1xf32>
    tpu.vector_store %arg5[%c0_14, %c0_15], %16 {strides = array<i32>} : memref<16x1xf32, #tpu.memory_space<vmem>>, vector<16x1xf32>,
    return
  }
  func.func @transform_0(%arg0: i32) -> (i32, i32) {
    %c0_i32 = arith.constant 0 : i32
    %c0_i32_0 = arith.constant 0 : i32
    return %c0_i32, %arg0 : i32, i32
  }
  func.func @transform_1(%arg0: i32) -> (i32, i32) {
    %c0_i32 = arith.constant 0 : i32
    %c0_i32_0 = arith.constant 0 : i32
    %c0_i32_1 = arith.constant 0 : i32
    return %c0_i32, %c0_i32_0 : i32, i32
  }
  func.func @transform_2(%arg0: i32) -> (i32, i32) {
    %c0_i32 = arith.constant 0 : i32
    %c0_i32_0 = arith.constant 0 : i32
    return %c0_i32, %arg0 : i32, i32
  }
  func.func @transform_3(%arg0: i32) -> (i32, i32) {
    %c0_i32 = arith.constant 0 : i32
    %c0_i32_0 = arith.constant 0 : i32
    %c0_i32_1 = arith.constant 0 : i32
    return %c0_i32, %c0_i32_0 : i32, i32
  }
  func.func @transform_4(%arg0: i32) -> (i32, i32) {
    %c0_i32 = arith.constant 0 : i32
    %c0_i32_0 = arith.constant 0 : i32
    %c0_i32_1 = arith.constant 0 : i32
    return %c0_i32, %c0_i32_0 : i32, i32
  }
}

module attributes {stable_mosaic.version = 11 : i64} {
  func.func @_bn_residual_prelu_kernel(%arg0: i32, %arg1: memref<16x2048xf32, #tpu.memory_space<vmem>>, %arg2: memref<16x2048xf32, #tpu.memory_space<vmem>>, %arg3: memref<16x3xf32, #tpu.memory_space<vmem>>, %arg4: memref<16x2048xf32, #tpu.memory_space<vmem>>) attributes {dimension_semantics = [#tpu.dimension_semantics<parallel>], iteration_bounds = array<i64: 4>, scalar_prefetch = 0 : i64, scratch_operands = 0 : i64, tpu.core_type = #tpu.core_type<tc>, window_params = [{transform_indices = @transform_0, window_bounds = array<i64: 16, 2048>}, {transform_indices = @transform_1, window_bounds = array<i64: 16, 2048>}, {pipeline_mode = #tpu.pipeline_mode<synchronous>, transform_indices = @transform_2, window_bounds = array<i64: 16, 3>}, {transform_indices = @transform_3, window_bounds = array<i64: 16, 2048>}]} {
    %c0 = arith.constant 0 : index
    %c0_0 = arith.constant 0 : index
    %0 = vector.load %arg3[%c0, %c0_0] : memref<16x3xf32, #tpu.memory_space<vmem>>, vector<16x1xf32>
    %c0_1 = arith.constant 0 : index
    %c1 = arith.constant 1 : index
    %1 = vector.load %arg3[%c0_1, %c1] : memref<16x3xf32, #tpu.memory_space<vmem>>, vector<16x1xf32>
    %c0_2 = arith.constant 0 : index
    %c2 = arith.constant 2 : index
    %2 = vector.load %arg3[%c0_2, %c2] : memref<16x3xf32, #tpu.memory_space<vmem>>, vector<16x1xf32>
    %c0_3 = arith.constant 0 : index
    %c0_4 = arith.constant 0 : index
    %3 = vector.load %arg1[%c0_3, %c0_4] : memref<16x2048xf32, #tpu.memory_space<vmem>>, vector<16x2048xf32>
    %4 = vector.broadcast %0 : vector<16x1xf32> to vector<16x2048xf32>
    %5 = arith.mulf %3, %4 : vector<16x2048xf32>
    %6 = vector.broadcast %1 : vector<16x1xf32> to vector<16x2048xf32>
    %7 = arith.addf %5, %6 : vector<16x2048xf32>
    %c0_5 = arith.constant 0 : index
    %c0_6 = arith.constant 0 : index
    %8 = vector.load %arg2[%c0_5, %c0_6] : memref<16x2048xf32, #tpu.memory_space<vmem>>, vector<16x2048xf32>
    %9 = arith.addf %7, %8 : vector<16x2048xf32>
    %cst = arith.constant 0.000000e+00 : f32
    %10 = vector.broadcast %cst : f32 to vector<16x2048xf32>
    %11 = arith.cmpf ogt, %9, %10 : vector<16x2048xf32>
    %12 = vector.broadcast %2 : vector<16x1xf32> to vector<16x2048xf32>
    %13 = arith.mulf %12, %9 : vector<16x2048xf32>
    %14 = arith.select %11, %9, %13 : vector<16x2048xi1>, vector<16x2048xf32>
    %c0_7 = arith.constant 0 : index
    %c0_8 = arith.constant 0 : index
    %15 = vector.load %arg4[%c0_7, %c0_8] : memref<16x2048xf32, #tpu.memory_space<vmem>>, vector<16x2048xf32>
    tpu.vector_store %arg4[%c0_7, %c0_8], %14 {strides = array<i32>} : memref<16x2048xf32, #tpu.memory_space<vmem>>, vector<16x2048xf32>,
    return
  }
  func.func @transform_0(%arg0: i32) -> (i32, i32) {
    %c0_i32 = arith.constant 0 : i32
    %c0_i32_0 = arith.constant 0 : i32
    return %c0_i32, %arg0 : i32, i32
  }
  func.func @transform_1(%arg0: i32) -> (i32, i32) {
    %c0_i32 = arith.constant 0 : i32
    %c0_i32_0 = arith.constant 0 : i32
    return %c0_i32, %arg0 : i32, i32
  }
  func.func @transform_2(%arg0: i32) -> (i32, i32) {
    %c0_i32 = arith.constant 0 : i32
    %c0_i32_0 = arith.constant 0 : i32
    %c0_i32_1 = arith.constant 0 : i32
    return %c0_i32, %c0_i32_0 : i32, i32
  }
  func.func @transform_3(%arg0: i32) -> (i32, i32) {
    %c0_i32 = arith.constant 0 : i32
    %c0_i32_0 = arith.constant 0 : i32
    return %c0_i32, %arg0 : i32, i32
  }
}

</mosaic_0001>

<llo_original>
// kernel: input_transition_forward.3
$region0: #{input_transition_forward.3}
  #allocation0 [shape = 'u32[]', space=smem, size = 0x4, offset = 0x4, fixed_abs, tag = 'smem constant byte address 0x4 - core index']
  #allocation1 [shape = 'u32[72,128]{1,0:T(1,128)}', space=vmem, size = 0x9000, scoped, tag = 'internal scratch']
  %s0 = inlined_call_operand.vmem [shape: f32[16,8192], index: 0, kind: input, shape index: {}]
  %s1 = inlined_call_operand.vmem [shape: f32[16,8192], index: 1, kind: input, shape index: {}]
  %s2 = inlined_call_operand.vmem [shape: f32[16,3], index: 2, kind: input, shape index: {}]
  %s3 = inlined_call_operand.vmem [shape: f32[16,8192], index: 3, kind: output, shape index: {}]
  %s4 = sld [smem:[#allocation0]]
  $region110: #{input_transition_forward.3} parent=0
    _
  %s6 = ssub.s32 1, %s4
  %s7 = scalar_select 0, %s6, %s4
  $region1: #{input_transition_forward.3} parent=0
    #allocation2 [shape = 'u8[262144]{0}', space=vmem, size = 0x40000, scoped, tag = 'input window, operand 0']
    #allocation3 [shape = 'u8[262144]{0}', space=vmem, size = 0x40000, scoped, tag = 'input window, operand 1']
    #allocation4 [shape = 'u8[262144]{0}', space=vmem, size = 0x40000, scoped, tag = 'output window, operand 0']
    loop: start=0, step=1, limit=6
    $region2: #{input_transition_forward.3} parent=1 // loop_pre_header
      _
    $region3: #{input_transition_forward.3} parent=1 // loop_header
      %s9 = sphi 0, %s13
      %p10 = scmp.ge.s32.totalorder %s9, 6
      %s19 = sphi 0, %s21
      %s22 = sphi 0, %s19
      %s23 = sphi 0, %s22
      %s39 = sphi 0, %s23
      %s45 = sphi 0, %s47
      %s48 = sphi 0, %s45
      %s49 = sphi 0, %s48
      %s65 = sphi 0, %s49
      %s69 = sphi 0, %s69
      %s71 = sphi 0, %s69
      %s72 = sphi 0, %s71
      %s86 = sphi 0, %s72
      %s92 = sphi 0, %s94
      %s95 = sphi 0, %s92
      %s96 = sphi 0, %s95
      %s112 = sphi 0, %s96
    $region4: #{input_transition_forward.3} parent=1 // loop_header_branch
      %12 = sbr.rel (%p10) target = $region8
    $region5: #{input_transition_forward.3} parent=1 // loop_body
      %s14 = ssub.s32 %s9, 1
      %s15 = ssub.s32 %s9, 2
      %s16 = sadd.s32 %s9, 1
      %s17 = ssub.s32 %s9, %s16
      %p18 = scmp.eq.s32.totalorder %s17, 0
      %s20 = sadd.s32 %s19, 1
      %s21 = scalar_select %p18, %s19, %s20
      %p24 = pneg %p18
      %p25 = scmp.eq.s32.totalorder %s9, 3
      %p26 = por %p24, %p25
      %p27 = scmp.ne.s32.totalorder %s19, %s22
      %p28 = scmp.eq.s32.totalorder %s9, 0
      %p29 = por %p27, %p28
      %p30 = scmp.ne.s32.totalorder %s19, %s22
      %p31 = scmp.eq.s32.totalorder %s14, 3
      %p32 = por %p30, %p31
      %p33 = scmp.ne.s32.totalorder %s22, %s23
      %p34 = scmp.eq.s32.totalorder %s14, 0
      %p35 = por %p33, %p34
      %p36 = scmp.ne.s32.totalorder %s22, %s23
      %p37 = scmp.eq.s32.totalorder %s15, 3
      %p38 = por %p36, %p37
      %p40 = scmp.ne.s32.totalorder %s23, %s39
      %p41 = scmp.eq.s32.totalorder %s15, 0
      %p42 = por %p40, %p41
      %s43 = ssub.s32 %s9, %s16
      %p44 = scmp.eq.s32.totalorder %s43, 0
      %s46 = sadd.s32 %s45, 1
      %s47 = scalar_select %p44, %s45, %s46
      %p50 = pneg %p44
      %p51 = scmp.eq.s32.totalorder %s9, 3
      %p52 = por %p50, %p51
      %p53 = scmp.ne.s32.totalorder %s45, %s48
      %p54 = scmp.eq.s32.totalorder %s9, 0
      %p55 = por %p53, %p54
      %p56 = scmp.ne.s32.totalorder %s45, %s48
      %p57 = scmp.eq.s32.totalorder %s14, 3
      %p58 = por %p56, %p57
      %p59 = scmp.ne.s32.totalorder %s48, %s49
      %p60 = scmp.eq.s32.totalorder %s14, 0
      %p61 = por %p59, %p60
      %p62 = scmp.ne.s32.totalorder %s48, %s49
      %p63 = scmp.eq.s32.totalorder %s15, 3
      %p64 = por %p62, %p63
      %p66 = scmp.ne.s32.totalorder %s49, %s65
      %p67 = scmp.eq.s32.totalorder %s15, 0
      %p68 = por %p66, %p67
      %s70 = sadd.s32 %s69, 1
      %p73 = scmp.eq.s32.totalorder %s9, 3
      %p74 = scmp.ne.s32.totalorder %s69, %s71
      %p75 = scmp.eq.s32.totalorder %s9, 0
      %p76 = por %p74, %p75
      %p77 = scmp.ne.s32.totalorder %s69, %s71
      %p78 = scmp.eq.s32.totalorder %s14, 3
      %p79 = por %p77, %p78
      %p80 = scmp.ne.s32.totalorder %s71, %s72
      %p81 = scmp.eq.s32.totalorder %s14, 0
      %p82 = por %p80, %p81
      %p83 = scmp.ne.s32.totalorder %s71, %s72
      %p84 = scmp.eq.s32.totalorder %s15, 3
      %p85 = por %p83, %p84
      %p87 = scmp.ne.s32.totalorder %s72, %s86
      %p88 = scmp.eq.s32.totalorder %s15, 0
      %p89 = por %p87, %p88
      %s90 = ssub.s32 %s9, %s16
      %p91 = scmp.eq.s32.totalorder %s90, 0
      %s93 = sadd.s32 %s92, 1
      %s94 = scalar_select %p91, %s92, %s93
      %p97 = pneg %p91
      %p98 = scmp.eq.s32.totalorder %s9, 3
      %p99 = por %p97, %p98
      %p100 = scmp.ne.s32.totalorder %s92, %s95
      %p101 = scmp.eq.s32.totalorder %s9, 0
      %p102 = por %p100, %p101
      %p103 = scmp.ne.s32.totalorder %s92, %s95
      %p104 = scmp.eq.s32.totalorder %s14, 3
      %p105 = por %p103, %p104
      %p106 = scmp.ne.s32.totalorder %s95, %s96
      %p107 = scmp.eq.s32.totalorder %s14, 0
      %p108 = por %p106, %p107
      %p109 = scmp.ne.s32.totalorder %s95, %s96
      %p110 = scmp.eq.s32.totalorder %s15, 3
      %p111 = por %p109, %p110
      %p113 = scmp.ne.s32.totalorder %s96, %s112
      %p114 = scmp.eq.s32.totalorder %s15, 0
      %p115 = por %p113, %p114
      %p116 = scmp.le.s32.totalorder 1, %s9
      %p117 = scmp.lt.s32.totalorder %s9, 5
      %p118 = pnand %p116, %p117
      %p119 = pneg %p118
      // Predicated region
      $region9: #{input_transition_forward.3} parent=5 // pred_check
        _
      $region10: #{input_transition_forward.3} parent=5 // pred_check_branch
        %121 = sbr.rel (%p118) target = $region12
      $region11: #{input_transition_forward.3} parent=5 // pred_region
        %s122 = ssub.s32 %s9, 1
        // Predicated region
        $region13: #{input_transition_forward.3} parent=11 // pred_check
          %p123 = pneg %p82
        $region14: #{input_transition_forward.3} parent=11 // pred_check_branch
          %125 = sbr.rel (%p123) target = $region16
        $region15: #{input_transition_forward.3} parent=11 // pred_region
          _
        $region16: #{input_transition_forward.3} parent=11 // pred_fallthru
          _
      $region12: #{input_transition_forward.3} parent=5 // pred_fallthru
        _
      %p126 = scmp.lt.s32.totalorder %s9, 4
      // Predicated region
      $region17: #{input_transition_forward.3} parent=5 // pred_check
        %p127 = pneg %p126
      $region18: #{input_transition_forward.3} parent=5 // pred_check_branch
        %129 = sbr.rel (%p127) target = $region20
      $region19: #{input_transition_forward.3} parent=5 // pred_region
        // Predicated region
        $region21: #{input_transition_forward.3} parent=19 // pred_check
          %p130 = pneg %p29
        $region22: #{input_transition_forward.3} parent=19 // pred_check_branch
          %132 = sbr.rel (%p130) target = $region24
        $region23: #{input_transition_forward.3} parent=19 // pred_region
          %s133 = sand.u32 %s19, 1
          %s134 = sand.u32 %s19, 1
          %s135 = smul.addr %s134, 256
          %s136 = scalar_lea.vmem [#allocation2], %s135
          %s137 = smul.u32 16, %s9
          %s138 = smul.addr %s137, 8
          %s139 = scalar_lea.vmem %s0, %s138
          // Predicated region
          $region25: #{input_transition_forward.3} parent=23 // pred_check
            _
          $region26: #{input_transition_forward.3} parent=23 // pred_check_branch
            %141 = sbr.rel (0) target = $region28
          $region27: #{input_transition_forward.3} parent=23 // pred_region
            // Predicated region
            $region29: #{input_transition_forward.3} parent=27 // pred_check
              _
            $region30: #{input_transition_forward.3} parent=27 // pred_check_branch
              %143 = sbr.rel (0) target = $region32
            $region31: #{input_transition_forward.3} parent=27 // pred_region
              loop: start=0, step=1, limit=1
              $region33: #{input_transition_forward.3} parent=31 // loop_pre_header
                _
              $region34: #{input_transition_forward.3} parent=31 // loop_header
                %s145 = sphi 0, %s149
                %p146 = scmp.ge.s32.totalorder %s145, 1
                %s150 = sphi %s139, %s139
                %s151 = sphi %s136, %s136
              $region35: #{input_transition_forward.3} parent=31 // loop_header_branch
                %148 = sbr.rel (%p146) target = $region39
              $region36: #{input_transition_forward.3} parent=31 // loop_body
                %v152 = vld [vmem:[%s150] sm:$0xff]
                %153 = vst [vmem:[%s151] sm:$0xff] %v152
                %v154 = vld [vmem:[%s150 + $0x8] sm:$0xff]
                %155 = vst [vmem:[%s151 + $0x8] sm:$0xff] %v154
                %v156 = vld [vmem:[%s150 + $0x10] sm:$0xff]
                %157 = vst [vmem:[%s151 + $0x10] sm:$0xff] %v156
                %v158 = vld [vmem:[%s150 + $0x18] sm:$0xff]
                %159 = vst [vmem:[%s151 + $0x18] sm:$0xff] %v158
                %v160 = vld [vmem:[%s150 + $0x20] sm:$0xff]
                %161 = vst [vmem:[%s151 + $0x20] sm:$0xff] %v160
                %v162 = vld [vmem:[%s150 + $0x28] sm:$0xff]
                %163 = vst [vmem:[%s151 + $0x28] sm:$0xff] %v162
                %v164 = vld [vmem:[%s150 + $0x30] sm:$0xff]
                %165 = vst [vmem:[%s151 + $0x30] sm:$0xff] %v164
                %v166 = vld [vmem:[%s150 + $0x38] sm:$0xff]
                %167 = vst [vmem:[%s151 + $0x38] sm:$0xff] %v166
                %v168 = vld [vmem:[%s150 + $0x40] sm:$0xff]
                %169 = vst [vmem:[%s151 + $0x40] sm:$0xff] %v168
                %v170 = vld [vmem:[%s150 + $0x48] sm:$0xff]
                %171 = vst [vmem:[%s151 + $0x48] sm:$0xff] %v170
                %v172 = vld [vmem:[%s150 + $0x50] sm:$0xff]
                %173 = vst [vmem:[%s151 + $0x50] sm:$0xff] %v172
                %v174 = vld [vmem:[%s150 + $0x58] sm:$0xff]
                %175 = vst [vmem:[%s151 + $0x58] sm:$0xff] %v174
                %v176 = vld [vmem:[%s150 + $0x60] sm:$0xff]
                %177 = vst [vmem:[%s151 + $0x60] sm:$0xff] %v176
                %v178 = vld [vmem:[%s150 + $0x68] sm:$0xff]
                %179 = vst [vmem:[%s151 + $0x68] sm:$0xff] %v178
                %v180 = vld [vmem:[%s150 + $0x70] sm:$0xff]
                %181 = vst [vmem:[%s151 + $0x70] sm:$0xff] %v180
                %v182 = vld [vmem:[%s150 + $0x78] sm:$0xff]
                %183 = vst [vmem:[%s151 + $0x78] sm:$0xff] %v182
                %v184 = vld [vmem:[%s150 + $0x200] sm:$0xff]
                %185 = vst [vmem:[%s151 + $0x80] sm:$0xff] %v184
                %v186 = vld [vmem:[%s150 + $0x208] sm:$0xff]
                %187 = vst [vmem:[%s151 + $0x88] sm:$0xff] %v186
                %v188 = vld [vmem:[%s150 + $0x210] sm:$0xff]
                %189 = vst [vmem:[%s151 + $0x90] sm:$0xff] %v188
                %v190 = vld [vmem:[%s150 + $0x218] sm:$0xff]
                %191 = vst [vmem:[%s151 + $0x98] sm:$0xff] %v190
                %v192 = vld [vmem:[%s150 + $0x220] sm:$0xff]
                %193 = vst [vmem:[%s151 + $0xa0] sm:$0xff] %v192
                %v194 = vld [vmem:[%s150 + $0x228] sm:$0xff]
                %195 = vst [vmem:[%s151 + $0xa8] sm:$0xff] %v194
                %v196 = vld [vmem:[%s150 + $0x230] sm:$0xff]
                %197 = vst [vmem:[%s151 + $0xb0] sm:$0xff] %v196
                %v198 = vld [vmem:[%s150 + $0x238] sm:$0xff]
                %199 = vst [vmem:[%s151 + $0xb8] sm:$0xff] %v198
                %v200 = vld [vmem:[%s150 + $0x240] sm:$0xff]
                %201 = vst [vmem:[%s151 + $0xc0] sm:$0xff] %v200
                %v202 = vld [vmem:[%s150 + $0x248] sm:$0xff]
                %203 = vst [vmem:[%s151 + $0xc8] sm:$0xff] %v202
                %v204 = vld [vmem:[%s150 + $0x250] sm:$0xff]
                %205 = vst [vmem:[%s151 + $0xd0] sm:$0xff] %v204
                %v206 = vld [vmem:[%s150 + $0x258] sm:$0xff]
                %207 = vst [vmem:[%s151 + $0xd8] sm:$0xff] %v206
                %v208 = vld [vmem:[%s150 + $0x260] sm:$0xff]
                %209 = vst [vmem:[%s151 + $0xe0] sm:$0xff] %v208
                %v210 = vld [vmem:[%s150 + $0x268] sm:$0xff]
                %211 = vst [vmem:[%s151 + $0xe8] sm:$0xff] %v210
                %v212 = vld [vmem:[%s150 + $0x270] sm:$0xff]
                %213 = vst [vmem:[%s151 + $0xf0] sm:$0xff] %v212
                %v214 = vld [vmem:[%s150 + $0x278] sm:$0xff]
                %215 = vst [vmem:[%s151 + $0xf8] sm:$0xff] %v214
              $region37: #{input_transition_forward.3} parent=31 // loop_footer
                %s149 = sadd.s32 1, %s145
              $region38: #{input_transition_forward.3} parent=31 // loop_footer_branch
                %144 = sbr.rel target = $region34
              $region39: #{input_transition_forward.3} parent=31 // loop_exit
                _
            $region32: #{input_transition_forward.3} parent=27 // pred_fallthru
              _
            // Predicated region
            $region40: #{input_transition_forward.3} parent=27 // pred_check
              _
            $region41: #{input_transition_forward.3} parent=27 // pred_check_branch
              %217 = sbr.rel target = $region43
            $region42: #{input_transition_forward.3} parent=27 // pred_region
              _
            $region43: #{input_transition_forward.3} parent=27 // pred_fallthru
              _
          $region28: #{input_transition_forward.3} parent=23 // pred_fallthru
            _
          %218 = vnop
        $region24: #{input_transition_forward.3} parent=19 // pred_fallthru
          _
        // Predicated region
        $region44: #{input_transition_forward.3} parent=19 // pred_check
          %p219 = pneg %p55
        $region45: #{input_transition_forward.3} parent=19 // pred_check_branch
          %221 = sbr.rel (%p219) target = $region47
        $region46: #{input_transition_forward.3} parent=19 // pred_region
          %s222 = sand.u32 %s45, 1
          %s223 = sand.u32 %s45, 1
          %s224 = smul.addr %s223, 256
          %s225 = scalar_lea.vmem [#allocation3], %s224
          %s226 = smul.u32 16, %s9
          %s227 = smul.addr %s226, 8
          %s228 = scalar_lea.vmem %s1, %s227
          // Predicated region
          $region48: #{input_transition_forward.3} parent=46 // pred_check
            _
          $region49: #{input_transition_forward.3} parent=46 // pred_check_branch
            %230 = sbr.rel (0) target = $region51
          $region50: #{input_transition_forward.3} parent=46 // pred_region
            // Predicated region
            $region52: #{input_transition_forward.3} parent=50 // pred_check
              _
            $region53: #{input_transition_forward.3} parent=50 // pred_check_branch
              %232 = sbr.rel (0) target = $region55
            $region54: #{input_transition_forward.3} parent=50 // pred_region
              loop: start=0, step=1, limit=1
              $region56: #{input_transition_forward.3} parent=54 // loop_pre_header
                _
              $region57: #{input_transition_forward.3} parent=54 // loop_header
                %s234 = sphi 0, %s238
                %p235 = scmp.ge.s32.totalorder %s234, 1
                %s239 = sphi %s228, %s228
                %s240 = sphi %s225, %s225
              $region58: #{input_transition_forward.3} parent=54 // loop_header_branch
                %237 = sbr.rel (%p235) target = $region62
              $region59: #{input_transition_forward.3} parent=54 // loop_body
                %v241 = vld [vmem:[%s239] sm:$0xff]
                %242 = vst [vmem:[%s240] sm:$0xff] %v241
                %v243 = vld [vmem:[%s239 + $0x8] sm:$0xff]
                %244 = vst [vmem:[%s240 + $0x8] sm:$0xff] %v243
                %v245 = vld [vmem:[%s239 + $0x10] sm:$0xff]
                %246 = vst [vmem:[%s240 + $0x10] sm:$0xff] %v245
                %v247 = vld [vmem:[%s239 + $0x18] sm:$0xff]
                %248 = vst [vmem:[%s240 + $0x18] sm:$0xff] %v247
                %v249 = vld [vmem:[%s239 + $0x20] sm:$0xff]
                %250 = vst [vmem:[%s240 + $0x20] sm:$0xff] %v249
                %v251 = vld [vmem:[%s239 + $0x28] sm:$0xff]
                %252 = vst [vmem:[%s240 + $0x28] sm:$0xff] %v251
                %v253 = vld [vmem:[%s239 + $0x30] sm:$0xff]
                %254 = vst [vmem:[%s240 + $0x30] sm:$0xff] %v253
                %v255 = vld [vmem:[%s239 + $0x38] sm:$0xff]
                %256 = vst [vmem:[%s240 + $0x38] sm:$0xff] %v255
                %v257 = vld [vmem:[%s239 + $0x40] sm:$0xff]
                %258 = vst [vmem:[%s240 + $0x40] sm:$0xff] %v257
                %v259 = vld [vmem:[%s239 + $0x48] sm:$0xff]
                %260 = vst [vmem:[%s240 + $0x48] sm:$0xff] %v259
                %v261 = vld [vmem:[%s239 + $0x50] sm:$0xff]
                %262 = vst [vmem:[%s240 + $0x50] sm:$0xff] %v261
                %v263 = vld [vmem:[%s239 + $0x58] sm:$0xff]
                %264 = vst [vmem:[%s240 + $0x58] sm:$0xff] %v263
                %v265 = vld [vmem:[%s239 + $0x60] sm:$0xff]
                %266 = vst [vmem:[%s240 + $0x60] sm:$0xff] %v265
                %v267 = vld [vmem:[%s239 + $0x68] sm:$0xff]
                %268 = vst [vmem:[%s240 + $0x68] sm:$0xff] %v267
                %v269 = vld [vmem:[%s239 + $0x70] sm:$0xff]
                %270 = vst [vmem:[%s240 + $0x70] sm:$0xff] %v269
                %v271 = vld [vmem:[%s239 + $0x78] sm:$0xff]
                %272 = vst [vmem:[%s240 + $0x78] sm:$0xff] %v271
                %v273 = vld [vmem:[%s239 + $0x200] sm:$0xff]
                %274 = vst [vmem:[%s240 + $0x80] sm:$0xff] %v273
                %v275 = vld [vmem:[%s239 + $0x208] sm:$0xff]
                %276 = vst [vmem:[%s240 + $0x88] sm:$0xff] %v275
                %v277 = vld [vmem:[%s239 + $0x210] sm:$0xff]
                %278 = vst [vmem:[%s240 + $0x90] sm:$0xff] %v277
                %v279 = vld [vmem:[%s239 + $0x218] sm:$0xff]
                %280 = vst [vmem:[%s240 + $0x98] sm:$0xff] %v279
                %v281 = vld [vmem:[%s239 + $0x220] sm:$0xff]
                %282 = vst [vmem:[%s240 + $0xa0] sm:$0xff] %v281
                %v283 = vld [vmem:[%s239 + $0x228] sm:$0xff]
                %284 = vst [vmem:[%s240 + $0xa8] sm:$0xff] %v283
                %v285 = vld [vmem:[%s239 + $0x230] sm:$0xff]
                %286 = vst [vmem:[%s240 + $0xb0] sm:$0xff] %v285
                %v287 = vld [vmem:[%s239 + $0x238] sm:$0xff]
                %288 = vst [vmem:[%s240 + $0xb8] sm:$0xff] %v287
                %v289 = vld [vmem:[%s239 + $0x240] sm:$0xff]
                %290 = vst [vmem:[%s240 + $0xc0] sm:$0xff] %v289
                %v291 = vld [vmem:[%s239 + $0x248] sm:$0xff]
                %292 = vst [vmem:[%s240 + $0xc8] sm:$0xff] %v291
                %v293 = vld [vmem:[%s239 + $0x250] sm:$0xff]
                %294 = vst [vmem:[%s240 + $0xd0] sm:$0xff] %v293
                %v295 = vld [vmem:[%s239 + $0x258] sm:$0xff]
                %296 = vst [vmem:[%s240 + $0xd8] sm:$0xff] %v295
                %v297 = vld [vmem:[%s239 + $0x260] sm:$0xff]
                %298 = vst [vmem:[%s240 + $0xe0] sm:$0xff] %v297
                %v299 = vld [vmem:[%s239 + $0x268] sm:$0xff]
                %300 = vst [vmem:[%s240 + $0xe8] sm:$0xff] %v299
                %v301 = vld [vmem:[%s239 + $0x270] sm:$0xff]
                %302 = vst [vmem:[%s240 + $0xf0] sm:$0xff] %v301
                %v303 = vld [vmem:[%s239 + $0x278] sm:$0xff]
                %304 = vst [vmem:[%s240 + $0xf8] sm:$0xff] %v303
              $region60: #{input_transition_forward.3} parent=54 // loop_footer
                %s238 = sadd.s32 1, %s234
              $region61: #{input_transition_forward.3} parent=54 // loop_footer_branch
                %233 = sbr.rel target = $region57
              $region62: #{input_transition_forward.3} parent=54 // loop_exit
                _
            $region55: #{input_transition_forward.3} parent=50 // pred_fallthru
              _
            // Predicated region
            $region63: #{input_transition_forward.3} parent=50 // pred_check
              _
            $region64: #{input_transition_forward.3} parent=50 // pred_check_branch
              %306 = sbr.rel target = $region66
            $region65: #{input_transition_forward.3} parent=50 // pred_region
              _
            $region66: #{input_transition_forward.3} parent=50 // pred_fallthru
              _
          $region51: #{input_transition_forward.3} parent=46 // pred_fallthru
            _
          %307 = vnop
        $region47: #{input_transition_forward.3} parent=19 // pred_fallthru
          _
      $region20: #{input_transition_forward.3} parent=5 // pred_fallthru
        _
      %p308 = scmp.le.s32.totalorder 1, %s9
      %p309 = scmp.lt.s32.totalorder %s9, 5
      %p310 = pnand %p308, %p309
      %p311 = pneg %p310
      // Predicated region
      $region67: #{input_transition_forward.3} parent=5 // pred_check
        _
      $region68: #{input_transition_forward.3} parent=5 // pred_check_branch
        %313 = sbr.rel (%p310) target = $region70
      $region69: #{input_transition_forward.3} parent=5 // pred_region
        %s314 = ssub.s32 %s9, 1
        %s315 = sand.u32 %s22, 1
        %s316 = sand.u32 %s22, 1
        %s317 = smul.addr %s316, 256
        %s318 = scalar_lea.vmem [#allocation2], %s317
        // Predicated region
        $region71: #{input_transition_forward.3} parent=69 // pred_check
          %p319 = pneg %p35
        $region72: #{input_transition_forward.3} parent=69 // pred_check_branch
          %321 = sbr.rel (%p319) target = $region74
        $region73: #{input_transition_forward.3} parent=69 // pred_region
          _
        $region74: #{input_transition_forward.3} parent=69 // pred_fallthru
          _
        %s322 = sand.u32 %s48, 1
        %s323 = sand.u32 %s48, 1
        %s324 = smul.addr %s323, 256
        %s325 = scalar_lea.vmem [#allocation3], %s324
        // Predicated region
        $region75: #{input_transition_forward.3} parent=69 // pred_check
          %p326 = pneg %p61
        $region76: #{input_transition_forward.3} parent=69 // pred_check_branch
          %328 = sbr.rel (%p326) target = $region78
        $region77: #{input_transition_forward.3} parent=69 // pred_region
          _
        $region78: #{input_transition_forward.3} parent=69 // pred_fallthru
          _
        %s329 = sand.u32 %s22, 1
        %s330 = sand.u32 %s22, 1
        %s331 = smul.addr %s330, 256
        %s332 = scalar_lea.vmem [#allocation2], %s331
        %p333 = pneg %p35
        %p334 = pneg %p32
        %s335 = sand.u32 %s48, 1
        %s336 = sand.u32 %s48, 1
        %s337 = smul.addr %s336, 256
        %s338 = scalar_lea.vmem [#allocation3], %s337
        %p339 = pneg %p61
        %p340 = pneg %p58
        %p341 = pneg %p82
        %p342 = pneg %p79
        %p343 = pneg %p108
        %p344 = pneg %p105
        %s345 = sand.u32 %s95, 1
        %s346 = sand.u32 %s95, 1
        %s347 = smul.addr %s346, 256
        %s348 = scalar_lea.vmem [#allocation4], %s347
        %s349 = smul.u32 16, %s14
        %s350 = smul.u32 16, %s14
        %s351 = smul.u32 16, %s14
        %v352 = vld [vmem:[%s2] sm:$0xff]
        %v353 = vld [vmem:[%s2 + $0x8] sm:$0xff]
        %v354 = vld [vmem:[%s318] sm:$0xff]
        %v355 = vld [vmem:[%s318 + $0x8] sm:$0xff]
        %v356 = vld [vmem:[%s318 + $0x10] sm:$0xff]
        %v357 = vld [vmem:[%s318 + $0x18] sm:$0xff]
        %v358 = vld [vmem:[%s318 + $0x20] sm:$0xff]
        %v359 = vld [vmem:[%s318 + $0x28] sm:$0xff]
        %v360 = vld [vmem:[%s318 + $0x30] sm:$0xff]
        %v361 = vld [vmem:[%s318 + $0x38] sm:$0xff]
        %v362 = vld [vmem:[%s318 + $0x40] sm:$0xff]
        %v363 = vld [vmem:[%s318 + $0x48] sm:$0xff]
        %v364 = vld [vmem:[%s318 + $0x50] sm:$0xff]
        %v365 = vld [vmem:[%s318 + $0x58] sm:$0xff]
        %v366 = vld [vmem:[%s318 + $0x60] sm:$0xff]
        %v367 = vld [vmem:[%s318 + $0x68] sm:$0xff]
        %v368 = vld [vmem:[%s318 + $0x70] sm:$0xff]
        %v369 = vld [vmem:[%s318 + $0x78] sm:$0xff]
        %v370 = vld [vmem:[%s318 + $0x80] sm:$0xff]
        %v371 = vld [vmem:[%s318 + $0x88] sm:$0xff]
        %v372 = vld [vmem:[%s318 + $0x90] sm:$0xff]
        %v373 = vld [vmem:[%s318 + $0x98] sm:$0xff]
        %v374 = vld [vmem:[%s318 + $0xa0] sm:$0xff]
        %v375 = vld [vmem:[%s318 + $0xa8] sm:$0xff]
        %v376 = vld [vmem:[%s318 + $0xb0] sm:$0xff]
        %v377 = vld [vmem:[%s318 + $0xb8] sm:$0xff]
        %v378 = vld [vmem:[%s318 + $0xc0] sm:$0xff]
        %v379 = vld [vmem:[%s318 + $0xc8] sm:$0xff]
        %v380 = vld [vmem:[%s318 + $0xd0] sm:$0xff]
        %v381 = vld [vmem:[%s318 + $0xd8] sm:$0xff]
        %v382 = vld [vmem:[%s318 + $0xe0] sm:$0xff]
        %v383 = vld [vmem:[%s318 + $0xe8] sm:$0xff]
        %v384 = vld [vmem:[%s318 + $0xf0] sm:$0xff]
        %v385 = vld [vmem:[%s318 + $0xf8] sm:$0xff]
        %387 = vset.pattern.permute.xlu0 0
        %388 = vperm.xlu0 %387, %v352
        %v389 = vpop.permute.xlu0 %388
        %392 = vset.pattern.permute.xlu0 0
        %393 = vperm.xlu0 %392, %v353
        %v394 = vpop.permute.xlu0 %393
        %v396 = vmul.f32 %v354, %v389
        %v397 = vmul.f32 %v355, %v389
        %v398 = vmul.f32 %v356, %v389
        %v399 = vmul.f32 %v357, %v389
        %v400 = vmul.f32 %v358, %v389
        %v401 = vmul.f32 %v359, %v389
        %v402 = vmul.f32 %v360, %v389
        %v403 = vmul.f32 %v361, %v389
        %v404 = vmul.f32 %v362, %v389
        %v405 = vmul.f32 %v363, %v389
        %v406 = vmul.f32 %v364, %v389
        %v407 = vmul.f32 %v365, %v389
        %v408 = vmul.f32 %v366, %v389
        %v409 = vmul.f32 %v367, %v389
        %v410 = vmul.f32 %v368, %v389
        %v411 = vmul.f32 %v369, %v389
        %v412 = vmul.f32 %v370, %v394
        %v413 = vmul.f32 %v371, %v394
        %v414 = vmul.f32 %v372, %v394
        %v415 = vmul.f32 %v373, %v394
        %v416 = vmul.f32 %v374, %v394
        %v417 = vmul.f32 %v375, %v394
        %v418 = vmul.f32 %v376, %v394
        %v419 = vmul.f32 %v377, %v394
        %v420 = vmul.f32 %v378, %v394
        %v421 = vmul.f32 %v379, %v394
        %v422 = vmul.f32 %v380, %v394
        %v423 = vmul.f32 %v381, %v394
        %v424 = vmul.f32 %v382, %v394
        %v425 = vmul.f32 %v383, %v394
        %v426 = vmul.f32 %v384, %v394
        %v427 = vmul.f32 %v385, %v394
        %428 = vset.pattern.permute.xlu0 1
        %429 = vperm.xlu0 %428, %v352
        %v430 = vpop.permute.xlu0 %429
        %432 = vset.pattern.permute.xlu0 1
        %433 = vperm.xlu0 %432, %v353
        %v434 = vpop.permute.xlu0 %433
        %v436 = vadd.f32 %v396, %v430
        %v437 = vadd.f32 %v397, %v430
        %v438 = vadd.f32 %v398, %v430
        %v439 = vadd.f32 %v399, %v430
        %v440 = vadd.f32 %v400, %v430
        %v441 = vadd.f32 %v401, %v430
        %v442 = vadd.f32 %v402, %v430
        %v443 = vadd.f32 %v403, %v430
        %v444 = vadd.f32 %v404, %v430
        %v445 = vadd.f32 %v405, %v430
        %v446 = vadd.f32 %v406, %v430
        %v447 = vadd.f32 %v407, %v430
        %v448 = vadd.f32 %v408, %v430
        %v449 = vadd.f32 %v409, %v430
        %v450 = vadd.f32 %v410, %v430
        %v451 = vadd.f32 %v411, %v430
        %v452 = vadd.f32 %v412, %v434
        %v453 = vadd.f32 %v413, %v434
        %v454 = vadd.f32 %v414, %v434
        %v455 = vadd.f32 %v415, %v434
        %v456 = vadd.f32 %v416, %v434
        %v457 = vadd.f32 %v417, %v434
        %v458 = vadd.f32 %v418, %v434
        %v459 = vadd.f32 %v419, %v434
        %v460 = vadd.f32 %v420, %v434
        %v461 = vadd.f32 %v421, %v434
        %v462 = vadd.f32 %v422, %v434
        %v463 = vadd.f32 %v423, %v434
        %v464 = vadd.f32 %v424, %v434
        %v465 = vadd.f32 %v425, %v434
        %v466 = vadd.f32 %v426, %v434
        %v467 = vadd.f32 %v427, %v434
        %v468 = vld [vmem:[%s325] sm:$0xff]
        %v469 = vld [vmem:[%s325 + $0x8] sm:$0xff]
        %v470 = vld [vmem:[%s325 + $0x10] sm:$0xff]
        %v471 = vld [vmem:[%s325 + $0x18] sm:$0xff]
        %v472 = vld [vmem:[%s325 + $0x20] sm:$0xff]
        %v473 = vld [vmem:[%s325 + $0x28] sm:$0xff]
        %v474 = vld [vmem:[%s325 + $0x30] sm:$0xff]
        %v475 = vld [vmem:[%s325 + $0x38] sm:$0xff]
        %v476 = vld [vmem:[%s325 + $0x40] sm:$0xff]
        %v477 = vld [vmem:[%s325 + $0x48] sm:$0xff]
        %v478 = vld [vmem:[%s325 + $0x50] sm:$0xff]
        %v479 = vld [vmem:[%s325 + $0x58] sm:$0xff]
        %v480 = vld [vmem:[%s325 + $0x60] sm:$0xff]
        %v481 = vld [vmem:[%s325 + $0x68] sm:$0xff]
        %v482 = vld [vmem:[%s325 + $0x70] sm:$0xff]
        %v483 = vld [vmem:[%s325 + $0x78] sm:$0xff]
        %v484 = vld [vmem:[%s325 + $0x80] sm:$0xff]
        %v485 = vld [vmem:[%s325 + $0x88] sm:$0xff]
        %v486 = vld [vmem:[%s325 + $0x90] sm:$0xff]
        %v487 = vld [vmem:[%s325 + $0x98] sm:$0xff]
        %v488 = vld [vmem:[%s325 + $0xa0] sm:$0xff]
        %v489 = vld [vmem:[%s325 + $0xa8] sm:$0xff]
        %v490 = vld [vmem:[%s325 + $0xb0] sm:$0xff]
        %v491 = vld [vmem:[%s325 + $0xb8] sm:$0xff]
        %v492 = vld [vmem:[%s325 + $0xc0] sm:$0xff]
        %v493 = vld [vmem:[%s325 + $0xc8] sm:$0xff]
        %v494 = vld [vmem:[%s325 + $0xd0] sm:$0xff]
        %v495 = vld [vmem:[%s325 + $0xd8] sm:$0xff]
        %v496 = vld [vmem:[%s325 + $0xe0] sm:$0xff]
        %v497 = vld [vmem:[%s325 + $0xe8] sm:$0xff]
        %v498 = vld [vmem:[%s325 + $0xf0] sm:$0xff]
        %v499 = vld [vmem:[%s325 + $0xf8] sm:$0xff]
        %v500 = vadd.f32 %v436, %v468
        %v501 = vadd.f32 %v437, %v469
        %v502 = vadd.f32 %v438, %v470
        %v503 = vadd.f32 %v439, %v471
        %v504 = vadd.f32 %v440, %v472
        %v505 = vadd.f32 %v441, %v473
        %v506 = vadd.f32 %v442, %v474
        %v507 = vadd.f32 %v443, %v475
        %v508 = vadd.f32 %v444, %v476
        %v509 = vadd.f32 %v445, %v477
        %v510 = vadd.f32 %v446, %v478
        %v511 = vadd.f32 %v447, %v479
        %v512 = vadd.f32 %v448, %v480
        %v513 = vadd.f32 %v449, %v481
        %v514 = vadd.f32 %v450, %v482
        %v515 = vadd.f32 %v451, %v483
        %v516 = vadd.f32 %v452, %v484
        %v517 = vadd.f32 %v453, %v485
        %v518 = vadd.f32 %v454, %v486
        %v519 = vadd.f32 %v455, %v487
        %v520 = vadd.f32 %v456, %v488
        %v521 = vadd.f32 %v457, %v489
        %v522 = vadd.f32 %v458, %v490
        %v523 = vadd.f32 %v459, %v491
        %v524 = vadd.f32 %v460, %v492
        %v525 = vadd.f32 %v461, %v493
        %v526 = vadd.f32 %v462, %v494
        %v527 = vadd.f32 %v463, %v495
        %v528 = vadd.f32 %v464, %v496
        %v529 = vadd.f32 %v465, %v497
        %v530 = vadd.f32 %v466, %v498
        %v531 = vadd.f32 %v467, %v499
        %vm532 = vcmp.gt.f32.partialorder %v500, 0.0
        %vm533 = vcmp.gt.f32.partialorder %v501, 0.0
        %vm534 = vcmp.gt.f32.partialorder %v502, 0.0
        %vm535 = vcmp.gt.f32.partialorder %v503, 0.0
        %vm536 = vcmp.gt.f32.partialorder %v504, 0.0
        %vm537 = vcmp.gt.f32.partialorder %v505, 0.0
        %vm538 = vcmp.gt.f32.partialorder %v506, 0.0
        %vm539 = vcmp.gt.f32.partialorder %v507, 0.0
        %vm540 = vcmp.gt.f32.partialorder %v508, 0.0
        %vm541 = vcmp.gt.f32.partialorder %v509, 0.0
        %vm542 = vcmp.gt.f32.partialorder %v510, 0.0
        %vm543 = vcmp.gt.f32.partialorder %v511, 0.0
        %vm544 = vcmp.gt.f32.partialorder %v512, 0.0
        %vm545 = vcmp.gt.f32.partialorder %v513, 0.0
        %vm546 = vcmp.gt.f32.partialorder %v514, 0.0
        %vm547 = vcmp.gt.f32.partialorder %v515, 0.0
        %vm548 = vcmp.gt.f32.partialorder %v516, 0.0
        %vm549 = vcmp.gt.f32.partialorder %v517, 0.0
        %vm550 = vcmp.gt.f32.partialorder %v518, 0.0
        %vm551 = vcmp.gt.f32.partialorder %v519, 0.0
        %vm552 = vcmp.gt.f32.partialorder %v520, 0.0
        %vm553 = vcmp.gt.f32.partialorder %v521, 0.0
        %vm554 = vcmp.gt.f32.partialorder %v522, 0.0
        %vm555 = vcmp.gt.f32.partialorder %v523, 0.0
        %vm556 = vcmp.gt.f32.partialorder %v524, 0.0
        %vm557 = vcmp.gt.f32.partialorder %v525, 0.0
        %vm558 = vcmp.gt.f32.partialorder %v526, 0.0
        %vm559 = vcmp.gt.f32.partialorder %v527, 0.0
        %vm560 = vcmp.gt.f32.partialorder %v528, 0.0
        %vm561 = vcmp.gt.f32.partialorder %v529, 0.0
        %vm562 = vcmp.gt.f32.partialorder %v530, 0.0
        %vm563 = vcmp.gt.f32.partialorder %v531, 0.0
        %564 = vset.pattern.permute.xlu0 2
        %565 = vperm.xlu0 %564, %v352
        %v566 = vpop.permute.xlu0 %565
        %568 = vset.pattern.permute.xlu0 2
        %569 = vperm.xlu0 %568, %v353
        %v570 = vpop.permute.xlu0 %569
        %v572 = vmul.f32 %v566, %v500
        %v573 = vmul.f32 %v566, %v501
        %v574 = vmul.f32 %v566, %v502
        %v575 = vmul.f32 %v566, %v503
        %v576 = vmul.f32 %v566, %v504
        %v577 = vmul.f32 %v566, %v505
        %v578 = vmul.f32 %v566, %v506
        %v579 = vmul.f32 %v566, %v507
        %v580 = vmul.f32 %v566, %v508
        %v581 = vmul.f32 %v566, %v509
        %v582 = vmul.f32 %v566, %v510
        %v583 = vmul.f32 %v566, %v511
        %v584 = vmul.f32 %v566, %v512
        %v585 = vmul.f32 %v566, %v513
        %v586 = vmul.f32 %v566, %v514
        %v587 = vmul.f32 %v566, %v515
        %v588 = vmul.f32 %v570, %v516
        %v589 = vmul.f32 %v570, %v517
        %v590 = vmul.f32 %v570, %v518
        %v591 = vmul.f32 %v570, %v519
        %v592 = vmul.f32 %v570, %v520
        %v593 = vmul.f32 %v570, %v521
        %v594 = vmul.f32 %v570, %v522
        %v595 = vmul.f32 %v570, %v523
        %v596 = vmul.f32 %v570, %v524
        %v597 = vmul.f32 %v570, %v525
        %v598 = vmul.f32 %v570, %v526
        %v599 = vmul.f32 %v570, %v527
        %v600 = vmul.f32 %v570, %v528
        %v601 = vmul.f32 %v570, %v529
        %v602 = vmul.f32 %v570, %v530
        %v603 = vmul.f32 %v570, %v531
        %v604 = vsel %vm532, %v500, %v572
        %v605 = vsel %vm533, %v501, %v573
        %v606 = vsel %vm534, %v502, %v574
        %v607 = vsel %vm535, %v503, %v575
        %v608 = vsel %vm536, %v504, %v576
        %v609 = vsel %vm537, %v505, %v577
        %v610 = vsel %vm538, %v506, %v578
        %v611 = vsel %vm539, %v507, %v579
        %v612 = vsel %vm540, %v508, %v580
        %v613 = vsel %vm541, %v509, %v581
        %v614 = vsel %vm542, %v510, %v582
        %v615 = vsel %vm543, %v511, %v583
        %v616 = vsel %vm544, %v512, %v584
        %v617 = vsel %vm545, %v513, %v585
        %v618 = vsel %vm546, %v514, %v586
        %v619 = vsel %vm547, %v515, %v587
        %v620 = vsel %vm548, %v516, %v588
        %v621 = vsel %vm549, %v517, %v589
        %v622 = vsel %vm550, %v518, %v590
        %v623 = vsel %vm551, %v519, %v591
        %v624 = vsel %vm552, %v520, %v592
        %v625 = vsel %vm553, %v521, %v593
        %v626 = vsel %vm554, %v522, %v594
        %v627 = vsel %vm555, %v523, %v595
        %v628 = vsel %vm556, %v524, %v596
        %v629 = vsel %vm557, %v525, %v597
        %v630 = vsel %vm558, %v526, %v598
        %v631 = vsel %vm559, %v527, %v599
        %v632 = vsel %vm560, %v528, %v600
        %v633 = vsel %vm561, %v529, %v601
        %v634 = vsel %vm562, %v530, %v602
        %v635 = vsel %vm563, %v531, %v603
        %636 = vst [vmem:[%s348] sm:$0xff] %v604
        %637 = vst [vmem:[%s348 + $0x8] sm:$0xff] %v605
        %638 = vst [vmem:[%s348 + $0x10] sm:$0xff] %v606
        %639 = vst [vmem:[%s348 + $0x18] sm:$0xff] %v607
        %640 = vst [vmem:[%s348 + $0x20] sm:$0xff] %v608
        %641 = vst [vmem:[%s348 + $0x28] sm:$0xff] %v609
        %642 = vst [vmem:[%s348 + $0x30] sm:$0xff] %v610
        %643 = vst [vmem:[%s348 + $0x38] sm:$0xff] %v611
        %644 = vst [vmem:[%s348 + $0x40] sm:$0xff] %v612
        %645 = vst [vmem:[%s348 + $0x48] sm:$0xff] %v613
        %646 = vst [vmem:[%s348 + $0x50] sm:$0xff] %v614
        %647 = vst [vmem:[%s348 + $0x58] sm:$0xff] %v615
        %648 = vst [vmem:[%s348 + $0x60] sm:$0xff] %v616
        %649 = vst [vmem:[%s348 + $0x68] sm:$0xff] %v617
        %650 = vst [vmem:[%s348 + $0x70] sm:$0xff] %v618
        %651 = vst [vmem:[%s348 + $0x78] sm:$0xff] %v619
        %652 = vst [vmem:[%s348 + $0x80] sm:$0xff] %v620
        %653 = vst [vmem:[%s348 + $0x88] sm:$0xff] %v621
        %654 = vst [vmem:[%s348 + $0x90] sm:$0xff] %v622
        %655 = vst [vmem:[%s348 + $0x98] sm:$0xff] %v623
        %656 = vst [vmem:[%s348 + $0xa0] sm:$0xff] %v624
        %657 = vst [vmem:[%s348 + $0xa8] sm:$0xff] %v625
        %658 = vst [vmem:[%s348 + $0xb0] sm:$0xff] %v626
        %659 = vst [vmem:[%s348 + $0xb8] sm:$0xff] %v627
        %660 = vst [vmem:[%s348 + $0xc0] sm:$0xff] %v628
        %661 = vst [vmem:[%s348 + $0xc8] sm:$0xff] %v629
        %662 = vst [vmem:[%s348 + $0xd0] sm:$0xff] %v630
        %663 = vst [vmem:[%s348 + $0xd8] sm:$0xff] %v631
        %664 = vst [vmem:[%s348 + $0xe0] sm:$0xff] %v632
        %665 = vst [vmem:[%s348 + $0xe8] sm:$0xff] %v633
        %666 = vst [vmem:[%s348 + $0xf0] sm:$0xff] %v634
        %667 = vst [vmem:[%s348 + $0xf8] sm:$0xff] %v635
        %s668 = sand.u32 %s95, 1
        %s669 = sand.u32 %s95, 1
        %s670 = smul.addr %s669, 256
        %s671 = scalar_lea.vmem [#allocation4], %s670
        // Predicated region
        $region79: #{input_transition_forward.3} parent=69 // pred_check
          %p672 = pneg %p105
        $region80: #{input_transition_forward.3} parent=69 // pred_check_branch
          %674 = sbr.rel (%p672) target = $region82
        $region81: #{input_transition_forward.3} parent=69 // pred_region
          %s675 = smul.u32 16, %s14
          %s676 = smul.addr %s675, 8
          %s677 = scalar_lea.vmem %s3, %s676
          // Predicated region
          $region83: #{input_transition_forward.3} parent=81 // pred_check
            _
          $region84: #{input_transition_forward.3} parent=81 // pred_check_branch
            %679 = sbr.rel (0) target = $region86
          $region85: #{input_transition_forward.3} parent=81 // pred_region
            // Predicated region
            $region87: #{input_transition_forward.3} parent=85 // pred_check
              _
            $region88: #{input_transition_forward.3} parent=85 // pred_check_branch
              %681 = sbr.rel (0) target = $region90
            $region89: #{input_transition_forward.3} parent=85 // pred_region
              loop: start=0, step=1, limit=1
              $region91: #{input_transition_forward.3} parent=89 // loop_pre_header
                _
              $region92: #{input_transition_forward.3} parent=89 // loop_header
                %s683 = sphi 0, %s687
                %p684 = scmp.ge.s32.totalorder %s683, 1
                %s688 = sphi %s671, %s671
                %s689 = sphi %s677, %s677
              $region93: #{input_transition_forward.3} parent=89 // loop_header_branch
                %686 = sbr.rel (%p684) target = $region97
              $region94: #{input_transition_forward.3} parent=89 // loop_body
                %v690 = vld [vmem:[%s688] sm:$0xff]
                %691 = vst [vmem:[%s689] sm:$0xff] %v690
                %v692 = vld [vmem:[%s688 + $0x8] sm:$0xff]
                %693 = vst [vmem:[%s689 + $0x8] sm:$0xff] %v692
                %v694 = vld [vmem:[%s688 + $0x10] sm:$0xff]
                %695 = vst [vmem:[%s689 + $0x10] sm:$0xff] %v694
                %v696 = vld [vmem:[%s688 + $0x18] sm:$0xff]
                %697 = vst [vmem:[%s689 + $0x18] sm:$0xff] %v696
                %v698 = vld [vmem:[%s688 + $0x20] sm:$0xff]
                %699 = vst [vmem:[%s689 + $0x20] sm:$0xff] %v698
                %v700 = vld [vmem:[%s688 + $0x28] sm:$0xff]
                %701 = vst [vmem:[%s689 + $0x28] sm:$0xff] %v700
                %v702 = vld [vmem:[%s688 + $0x30] sm:$0xff]
                %703 = vst [vmem:[%s689 + $0x30] sm:$0xff] %v702
                %v704 = vld [vmem:[%s688 + $0x38] sm:$0xff]
                %705 = vst [vmem:[%s689 + $0x38] sm:$0xff] %v704
                %v706 = vld [vmem:[%s688 + $0x40] sm:$0xff]
                %707 = vst [vmem:[%s689 + $0x40] sm:$0xff] %v706
                %v708 = vld [vmem:[%s688 + $0x48] sm:$0xff]
                %709 = vst [vmem:[%s689 + $0x48] sm:$0xff] %v708
                %v710 = vld [vmem:[%s688 + $0x50] sm:$0xff]
                %711 = vst [vmem:[%s689 + $0x50] sm:$0xff] %v710
                %v712 = vld [vmem:[%s688 + $0x58] sm:$0xff]
                %713 = vst [vmem:[%s689 + $0x58] sm:$0xff] %v712
                %v714 = vld [vmem:[%s688 + $0x60] sm:$0xff]
                %715 = vst [vmem:[%s689 + $0x60] sm:$0xff] %v714
                %v716 = vld [vmem:[%s688 + $0x68] sm:$0xff]
                %717 = vst [vmem:[%s689 + $0x68] sm:$0xff] %v716
                %v718 = vld [vmem:[%s688 + $0x70] sm:$0xff]
                %719 = vst [vmem:[%s689 + $0x70] sm:$0xff] %v718
                %v720 = vld [vmem:[%s688 + $0x78] sm:$0xff]
                %721 = vst [vmem:[%s689 + $0x78] sm:$0xff] %v720
                %v722 = vld [vmem:[%s688 + $0x80] sm:$0xff]
                %723 = vst [vmem:[%s689 + $0x200] sm:$0xff] %v722
                %v724 = vld [vmem:[%s688 + $0x88] sm:$0xff]
                %725 = vst [vmem:[%s689 + $0x208] sm:$0xff] %v724
                %v726 = vld [vmem:[%s688 + $0x90] sm:$0xff]
                %727 = vst [vmem:[%s689 + $0x210] sm:$0xff] %v726
                %v728 = vld [vmem:[%s688 + $0x98] sm:$0xff]
                %729 = vst [vmem:[%s689 + $0x218] sm:$0xff] %v728
                %v730 = vld [vmem:[%s688 + $0xa0] sm:$0xff]
                %731 = vst [vmem:[%s689 + $0x220] sm:$0xff] %v730
                %v732 = vld [vmem:[%s688 + $0xa8] sm:$0xff]
                %733 = vst [vmem:[%s689 + $0x228] sm:$0xff] %v732
                %v734 = vld [vmem:[%s688 + $0xb0] sm:$0xff]
                %735 = vst [vmem:[%s689 + $0x230] sm:$0xff] %v734
                %v736 = vld [vmem:[%s688 + $0xb8] sm:$0xff]
                %737 = vst [vmem:[%s689 + $0x238] sm:$0xff] %v736
                %v738 = vld [vmem:[%s688 + $0xc0] sm:$0xff]
                %739 = vst [vmem:[%s689 + $0x240] sm:$0xff] %v738
                %v740 = vld [vmem:[%s688 + $0xc8] sm:$0xff]
                %741 = vst [vmem:[%s689 + $0x248] sm:$0xff] %v740
                %v742 = vld [vmem:[%s688 + $0xd0] sm:$0xff]
                %743 = vst [vmem:[%s689 + $0x250] sm:$0xff] %v742
                %v744 = vld [vmem:[%s688 + $0xd8] sm:$0xff]
                %745 = vst [vmem:[%s689 + $0x258] sm:$0xff] %v744
                %v746 = vld [vmem:[%s688 + $0xe0] sm:$0xff]
                %747 = vst [vmem:[%s689 + $0x260] sm:$0xff] %v746
                %v748 = vld [vmem:[%s688 + $0xe8] sm:$0xff]
                %749 = vst [vmem:[%s689 + $0x268] sm:$0xff] %v748
                %v750 = vld [vmem:[%s688 + $0xf0] sm:$0xff]
                %751 = vst [vmem:[%s689 + $0x270] sm:$0xff] %v750
                %v752 = vld [vmem:[%s688 + $0xf8] sm:$0xff]
                %753 = vst [vmem:[%s689 + $0x278] sm:$0xff] %v752
              $region95: #{input_transition_forward.3} parent=89 // loop_footer
                %s687 = sadd.s32 1, %s683
              $region96: #{input_transition_forward.3} parent=89 // loop_footer_branch
                %682 = sbr.rel target = $region92
              $region97: #{input_transition_forward.3} parent=89 // loop_exit
                _
            $region90: #{input_transition_forward.3} parent=85 // pred_fallthru
              _
            // Predicated region
            $region98: #{input_transition_forward.3} parent=85 // pred_check
              _
            $region99: #{input_transition_forward.3} parent=85 // pred_check_branch
              %755 = sbr.rel target = $region101
            $region100: #{input_transition_forward.3} parent=85 // pred_region
              _
            $region101: #{input_transition_forward.3} parent=85 // pred_fallthru
              _
          $region86: #{input_transition_forward.3} parent=81 // pred_fallthru
            _
          %756 = vnop
        $region82: #{input_transition_forward.3} parent=69 // pred_fallthru
          _
      $region70: #{input_transition_forward.3} parent=5 // pred_fallthru
        _
      %p757 = scmp.le.s32.totalorder 2, %s9
      // Predicated region
      $region102: #{input_transition_forward.3} parent=5 // pred_check
        %p758 = pneg %p757
      $region103: #{input_transition_forward.3} parent=5 // pred_check_branch
        %760 = sbr.rel (%p758) target = $region105
      $region104: #{input_transition_forward.3} parent=5 // pred_region
        %s761 = ssub.s32 %s9, 2
        // Predicated region
        $region106: #{input_transition_forward.3} parent=104 // pred_check
          %p762 = pneg %p111
        $region107: #{input_transition_forward.3} parent=104 // pred_check_branch
          %764 = sbr.rel (%p762) target = $region109
        $region108: #{input_transition_forward.3} parent=104 // pred_region
          %s765 = sand.u32 %s96, 1
          %s766 = sand.u32 %s96, 1
          %s767 = smul.addr %s766, 256
          %s768 = scalar_lea.vmem [#allocation4], %s767
        $region109: #{input_transition_forward.3} parent=104 // pred_fallthru
          _
      $region105: #{input_transition_forward.3} parent=5 // pred_fallthru
        _
    $region6: #{input_transition_forward.3} parent=1 // loop_footer
      %s13 = sadd.s32 1, %s9
    $region7: #{input_transition_forward.3} parent=1 // loop_footer_branch
      %8 = sbr.rel target = $region3
    $region8: #{input_transition_forward.3} parent=1 // loop_exit
      _

// kernel: input_transition_forward.2
$region0: #{input_transition_forward.2}
  #allocation0 [shape = 'u32[]', space=smem, size = 0x4, offset = 0x4, fixed_abs, tag = 'smem constant byte address 0x4 - core index']
  #allocation1 [shape = 'u32[72,128]{1,0:T(1,128)}', space=vmem, size = 0x9000, scoped, tag = 'internal scratch']
  %s0 = inlined_call_operand.vmem [shape: bf16[256,8192], index: 0, kind: input, shape index: {}]
  %s1 = inlined_call_operand.vmem [shape: bf16[16,256], index: 1, kind: input, shape index: {}]
  %s2 = inlined_call_operand.vmem [shape: f32[16,8192], index: 2, kind: output, shape index: {0}]
  %s3 = inlined_call_operand.vmem [shape: f32[16,1], index: 3, kind: output, shape index: {1}]
  %s4 = inlined_call_operand.vmem [shape: f32[16,1], index: 4, kind: output, shape index: {2}]
  %5 = xla_tuple %s2, %s3, %s4
  %s6 = sld [smem:[#allocation0]]
  $region103: #{input_transition_forward.2} parent=0
    _
  %s8 = ssub.s32 1, %s6
  %s9 = scalar_select 0, %s8, %s6
  $region1: #{input_transition_forward.2} parent=0
    #allocation2 [shape = 'u8[2097152]{0}', space=vmem, size = 0x200000, scoped, tag = 'input window, operand 0']
    #allocation3 [shape = 'u8[262144]{0}', space=vmem, size = 0x40000, scoped, tag = 'output window, operand 0']
    loop: start=0, step=1, limit=6
    $region2: #{input_transition_forward.2} parent=1 // loop_pre_header
      _
    $region3: #{input_transition_forward.2} parent=1 // loop_header
      %s11 = sphi 0, %s15
      %p12 = scmp.ge.s32.totalorder %s11, 6
      %s21 = sphi 0, %s23
      %s24 = sphi 0, %s21
      %s25 = sphi 0, %s24
      %s41 = sphi 0, %s25
      %s45 = sphi 0, %s45
      %s47 = sphi 0, %s45
      %s48 = sphi 0, %s47
      %s62 = sphi 0, %s48
      %s68 = sphi 0, %s70
      %s71 = sphi 0, %s68
      %s72 = sphi 0, %s71
      %s88 = sphi 0, %s72
      %s92 = sphi 0, %s92
      %s94 = sphi 0, %s92
      %s95 = sphi 0, %s94
      %s109 = sphi 0, %s95
      %s113 = sphi 0, %s113
      %s115 = sphi 0, %s113
      %s116 = sphi 0, %s115
      %s130 = sphi 0, %s116
    $region4: #{input_transition_forward.2} parent=1 // loop_header_branch
      %14 = sbr.rel (%p12) target = $region8
    $region5: #{input_transition_forward.2} parent=1 // loop_body
      %s16 = ssub.s32 %s11, 1
      %s17 = ssub.s32 %s11, 2
      %s18 = sadd.s32 %s11, 1
      %s19 = ssub.s32 %s11, %s18
      %p20 = scmp.eq.s32.totalorder %s19, 0
      %s22 = sadd.s32 %s21, 1
      %s23 = scalar_select %p20, %s21, %s22
      %p26 = pneg %p20
      %p27 = scmp.eq.s32.totalorder %s11, 3
      %p28 = por %p26, %p27
      %p29 = scmp.ne.s32.totalorder %s21, %s24
      %p30 = scmp.eq.s32.totalorder %s11, 0
      %p31 = por %p29, %p30
      %p32 = scmp.ne.s32.totalorder %s21, %s24
      %p33 = scmp.eq.s32.totalorder %s16, 3
      %p34 = por %p32, %p33
      %p35 = scmp.ne.s32.totalorder %s24, %s25
      %p36 = scmp.eq.s32.totalorder %s16, 0
      %p37 = por %p35, %p36
      %p38 = scmp.ne.s32.totalorder %s24, %s25
      %p39 = scmp.eq.s32.totalorder %s17, 3
      %p40 = por %p38, %p39
      %p42 = scmp.ne.s32.totalorder %s25, %s41
      %p43 = scmp.eq.s32.totalorder %s17, 0
      %p44 = por %p42, %p43
      %s46 = sadd.s32 %s45, 1
      %p49 = scmp.eq.s32.totalorder %s11, 3
      %p50 = scmp.ne.s32.totalorder %s45, %s47
      %p51 = scmp.eq.s32.totalorder %s11, 0
      %p52 = por %p50, %p51
      %p53 = scmp.ne.s32.totalorder %s45, %s47
      %p54 = scmp.eq.s32.totalorder %s16, 3
      %p55 = por %p53, %p54
      %p56 = scmp.ne.s32.totalorder %s47, %s48
      %p57 = scmp.eq.s32.totalorder %s16, 0
      %p58 = por %p56, %p57
      %p59 = scmp.ne.s32.totalorder %s47, %s48
      %p60 = scmp.eq.s32.totalorder %s17, 3
      %p61 = por %p59, %p60
      %p63 = scmp.ne.s32.totalorder %s48, %s62
      %p64 = scmp.eq.s32.totalorder %s17, 0
      %p65 = por %p63, %p64
      %s66 = ssub.s32 %s11, %s18
      %p67 = scmp.eq.s32.totalorder %s66, 0
      %s69 = sadd.s32 %s68, 1
      %s70 = scalar_select %p67, %s68, %s69
      %p73 = pneg %p67
      %p74 = scmp.eq.s32.totalorder %s11, 3
      %p75 = por %p73, %p74
      %p76 = scmp.ne.s32.totalorder %s68, %s71
      %p77 = scmp.eq.s32.totalorder %s11, 0
      %p78 = por %p76, %p77
      %p79 = scmp.ne.s32.totalorder %s68, %s71
      %p80 = scmp.eq.s32.totalorder %s16, 3
      %p81 = por %p79, %p80
      %p82 = scmp.ne.s32.totalorder %s71, %s72
      %p83 = scmp.eq.s32.totalorder %s16, 0
      %p84 = por %p82, %p83
      %p85 = scmp.ne.s32.totalorder %s71, %s72
      %p86 = scmp.eq.s32.totalorder %s17, 3
      %p87 = por %p85, %p86
      %p89 = scmp.ne.s32.totalorder %s72, %s88
      %p90 = scmp.eq.s32.totalorder %s17, 0
      %p91 = por %p89, %p90
      %s93 = sadd.s32 %s92, 1
      %p96 = scmp.eq.s32.totalorder %s11, 3
      %p97 = scmp.ne.s32.totalorder %s92, %s94
      %p98 = scmp.eq.s32.totalorder %s11, 0
      %p99 = por %p97, %p98
      %p100 = scmp.ne.s32.totalorder %s92, %s94
      %p101 = scmp.eq.s32.totalorder %s16, 3
      %p102 = por %p100, %p101
      %p103 = scmp.ne.s32.totalorder %s94, %s95
      %p104 = scmp.eq.s32.totalorder %s16, 0
      %p105 = por %p103, %p104
      %p106 = scmp.ne.s32.totalorder %s94, %s95
      %p107 = scmp.eq.s32.totalorder %s17, 3
      %p108 = por %p106, %p107
      %p110 = scmp.ne.s32.totalorder %s95, %s109
      %p111 = scmp.eq.s32.totalorder %s17, 0
      %p112 = por %p110, %p111
      %s114 = sadd.s32 %s113, 1
      %p117 = scmp.eq.s32.totalorder %s11, 3
      %p118 = scmp.ne.s32.totalorder %s113, %s115
      %p119 = scmp.eq.s32.totalorder %s11, 0
      %p120 = por %p118, %p119
      %p121 = scmp.ne.s32.totalorder %s113, %s115
      %p122 = scmp.eq.s32.totalorder %s16, 3
      %p123 = por %p121, %p122
      %p124 = scmp.ne.s32.totalorder %s115, %s116
      %p125 = scmp.eq.s32.totalorder %s16, 0
      %p126 = por %p124, %p125
      %p127 = scmp.ne.s32.totalorder %s115, %s116
      %p128 = scmp.eq.s32.totalorder %s17, 3
      %p129 = por %p127, %p128
      %p131 = scmp.ne.s32.totalorder %s116, %s130
      %p132 = scmp.eq.s32.totalorder %s17, 0
      %p133 = por %p131, %p132
      %p134 = scmp.le.s32.totalorder 1, %s11
      %p135 = scmp.lt.s32.totalorder %s11, 5
      %p136 = pnand %p134, %p135
      %p137 = pneg %p136
      // Predicated region
      $region9: #{input_transition_forward.2} parent=5 // pred_check
        _
      $region10: #{input_transition_forward.2} parent=5 // pred_check_branch
        %139 = sbr.rel (%p136) target = $region12
      $region11: #{input_transition_forward.2} parent=5 // pred_region
        %s140 = ssub.s32 %s11, 1
        // Predicated region
        $region13: #{input_transition_forward.2} parent=11 // pred_check
          %p141 = pneg %p58
        $region14: #{input_transition_forward.2} parent=11 // pred_check_branch
          %143 = sbr.rel (%p141) target = $region16
        $region15: #{input_transition_forward.2} parent=11 // pred_region
          _
        $region16: #{input_transition_forward.2} parent=11 // pred_fallthru
          _
      $region12: #{input_transition_forward.2} parent=5 // pred_fallthru
        _
      %p144 = scmp.lt.s32.totalorder %s11, 4
      // Predicated region
      $region17: #{input_transition_forward.2} parent=5 // pred_check
        %p145 = pneg %p144
      $region18: #{input_transition_forward.2} parent=5 // pred_check_branch
        %147 = sbr.rel (%p145) target = $region20
      $region19: #{input_transition_forward.2} parent=5 // pred_region
        // Predicated region
        $region21: #{input_transition_forward.2} parent=19 // pred_check
          %p148 = pneg %p31
        $region22: #{input_transition_forward.2} parent=19 // pred_check_branch
          %150 = sbr.rel (%p148) target = $region24
        $region23: #{input_transition_forward.2} parent=19 // pred_region
          %s151 = sand.u32 %s21, 1
          %s152 = sand.u32 %s21, 1
          %s153 = smul.addr %s152, 2048
          %s154 = scalar_lea.vmem [#allocation2], %s153
          %s155 = smul.u32 16, %s11
          %s156 = smul.addr %s155, 4
          %s157 = scalar_lea.vmem %s0, %s156
          // Predicated region
          $region25: #{input_transition_forward.2} parent=23 // pred_check
            _
          $region26: #{input_transition_forward.2} parent=23 // pred_check_branch
            %159 = sbr.rel (0) target = $region28
          $region27: #{input_transition_forward.2} parent=23 // pred_region
            // Predicated region
            $region29: #{input_transition_forward.2} parent=27 // pred_check
              _
            $region30: #{input_transition_forward.2} parent=27 // pred_check_branch
              %161 = sbr.rel (0) target = $region32
            $region31: #{input_transition_forward.2} parent=27 // pred_region
              loop: start=0, step=1, limit=1
              $region33: #{input_transition_forward.2} parent=31 // loop_pre_header
                _
              $region34: #{input_transition_forward.2} parent=31 // loop_header
                %s163 = sphi 0, %s167
                %p164 = scmp.ge.s32.totalorder %s163, 1
                %s168 = sphi %s157, %s157
                %s169 = sphi %s154, %s154
              $region35: #{input_transition_forward.2} parent=31 // loop_header_branch
                %166 = sbr.rel (%p164) target = $region39
              $region36: #{input_transition_forward.2} parent=31 // loop_body
                %v170 = vld [vmem:[%s168] sm:$0xff]
                %171 = vst [vmem:[%s169] sm:$0xff] %v170
                %v172 = vld [vmem:[%s168 + $0x8] sm:$0xff]
                %173 = vst [vmem:[%s169 + $0x8] sm:$0xff] %v172
                %v174 = vld [vmem:[%s168 + $0x10] sm:$0xff]
                %175 = vst [vmem:[%s169 + $0x10] sm:$0xff] %v174
                %v176 = vld [vmem:[%s168 + $0x18] sm:$0xff]
                %177 = vst [vmem:[%s169 + $0x18] sm:$0xff] %v176
                %v178 = vld [vmem:[%s168 + $0x20] sm:$0xff]
                %179 = vst [vmem:[%s169 + $0x20] sm:$0xff] %v178
                %v180 = vld [vmem:[%s168 + $0x28] sm:$0xff]
                %181 = vst [vmem:[%s169 + $0x28] sm:$0xff] %v180
                %v182 = vld [vmem:[%s168 + $0x30] sm:$0xff]
                %183 = vst [vmem:[%s169 + $0x30] sm:$0xff] %v182
                %v184 = vld [vmem:[%s168 + $0x38] sm:$0xff]
                %185 = vst [vmem:[%s169 + $0x38] sm:$0xff] %v184
                %v186 = vld [vmem:[%s168 + $0x100] sm:$0xff]
                %187 = vst [vmem:[%s169 + $0x40] sm:$0xff] %v186
                %v188 = vld [vmem:[%s168 + $0x108] sm:$0xff]
                %189 = vst [vmem:[%s169 + $0x48] sm:$0xff] %v188
                %v190 = vld [vmem:[%s168 + $0x110] sm:$0xff]
                %191 = vst [vmem:[%s169 + $0x50] sm:$0xff] %v190
                %v192 = vld [vmem:[%s168 + $0x118] sm:$0xff]
                %193 = vst [vmem:[%s169 + $0x58] sm:$0xff] %v192
                %v194 = vld [vmem:[%s168 + $0x120] sm:$0xff]
                %195 = vst [vmem:[%s169 + $0x60] sm:$0xff] %v194
                %v196 = vld [vmem:[%s168 + $0x128] sm:$0xff]
                %197 = vst [vmem:[%s169 + $0x68] sm:$0xff] %v196
                %v198 = vld [vmem:[%s168 + $0x130] sm:$0xff]
                %199 = vst [vmem:[%s169 + $0x70] sm:$0xff] %v198
                %v200 = vld [vmem:[%s168 + $0x138] sm:$0xff]
                %201 = vst [vmem:[%s169 + $0x78] sm:$0xff] %v200
                %v202 = vld [vmem:[%s168 + $0x200] sm:$0xff]
                %203 = vst [vmem:[%s169 + $0x80] sm:$0xff] %v202
                %v204 = vld [vmem:[%s168 + $0x208] sm:$0xff]
                %205 = vst [vmem:[%s169 + $0x88] sm:$0xff] %v204
                %v206 = vld [vmem:[%s168 + $0x210] sm:$0xff]
                %207 = vst [vmem:[%s169 + $0x90] sm:$0xff] %v206
                %v208 = vld [vmem:[%s168 + $0x218] sm:$0xff]
                %209 = vst [vmem:[%s169 + $0x98] sm:$0xff] %v208
                %v210 = vld [vmem:[%s168 + $0x220] sm:$0xff]
                %211 = vst [vmem:[%s169 + $0xa0] sm:$0xff] %v210
                %v212 = vld [vmem:[%s168 + $0x228] sm:$0xff]
                %213 = vst [vmem:[%s169 + $0xa8] sm:$0xff] %v212
                %v214 = vld [vmem:[%s168 + $0x230] sm:$0xff]
                %215 = vst [vmem:[%s169 + $0xb0] sm:$0xff] %v214
                %v216 = vld [vmem:[%s168 + $0x238] sm:$0xff]
                %217 = vst [vmem:[%s169 + $0xb8] sm:$0xff] %v216
                %v218 = vld [vmem:[%s168 + $0x300] sm:$0xff]
                %219 = vst [vmem:[%s169 + $0xc0] sm:$0xff] %v218
                %v220 = vld [vmem:[%s168 + $0x308] sm:$0xff]
                %221 = vst [vmem:[%s169 + $0xc8] sm:$0xff] %v220
                %v222 = vld [vmem:[%s168 + $0x310] sm:$0xff]
                %223 = vst [vmem:[%s169 + $0xd0] sm:$0xff] %v222
                %v224 = vld [vmem:[%s168 + $0x318] sm:$0xff]
                %225 = vst [vmem:[%s169 + $0xd8] sm:$0xff] %v224
                %v226 = vld [vmem:[%s168 + $0x320] sm:$0xff]
                %227 = vst [vmem:[%s169 + $0xe0] sm:$0xff] %v226
                %v228 = vld [vmem:[%s168 + $0x328] sm:$0xff]
                %229 = vst [vmem:[%s169 + $0xe8] sm:$0xff] %v228
                %v230 = vld [vmem:[%s168 + $0x330] sm:$0xff]
                %231 = vst [vmem:[%s169 + $0xf0] sm:$0xff] %v230
                %v232 = vld [vmem:[%s168 + $0x338] sm:$0xff]
                %233 = vst [vmem:[%s169 + $0xf8] sm:$0xff] %v232
                %v234 = vld [vmem:[%s168 + $0x400] sm:$0xff]
                %235 = vst [vmem:[%s169 + $0x100] sm:$0xff] %v234
                %v236 = vld [vmem:[%s168 + $0x408] sm:$0xff]
                %237 = vst [vmem:[%s169 + $0x108] sm:$0xff] %v236
                %v238 = vld [vmem:[%s168 + $0x410] sm:$0xff]
                %239 = vst [vmem:[%s169 + $0x110] sm:$0xff] %v238
                %v240 = vld [vmem:[%s168 + $0x418] sm:$0xff]
                %241 = vst [vmem:[%s169 + $0x118] sm:$0xff] %v240
                %v242 = vld [vmem:[%s168 + $0x420] sm:$0xff]
                %243 = vst [vmem:[%s169 + $0x120] sm:$0xff] %v242
                %v244 = vld [vmem:[%s168 + $0x428] sm:$0xff]
                %245 = vst [vmem:[%s169 + $0x128] sm:$0xff] %v244
                %v246 = vld [vmem:[%s168 + $0x430] sm:$0xff]
                %247 = vst [vmem:[%s169 + $0x130] sm:$0xff] %v246
                %v248 = vld [vmem:[%s168 + $0x438] sm:$0xff]
                %249 = vst [vmem:[%s169 + $0x138] sm:$0xff] %v248
                %v250 = vld [vmem:[%s168 + $0x500] sm:$0xff]
                %251 = vst [vmem:[%s169 + $0x140] sm:$0xff] %v250
                %v252 = vld [vmem:[%s168 + $0x508] sm:$0xff]
                %253 = vst [vmem:[%s169 + $0x148] sm:$0xff] %v252
                %v254 = vld [vmem:[%s168 + $0x510] sm:$0xff]
                %255 = vst [vmem:[%s169 + $0x150] sm:$0xff] %v254
                %v256 = vld [vmem:[%s168 + $0x518] sm:$0xff]
                %257 = vst [vmem:[%s169 + $0x158] sm:$0xff] %v256
                %v258 = vld [vmem:[%s168 + $0x520] sm:$0xff]
                %259 = vst [vmem:[%s169 + $0x160] sm:$0xff] %v258
                %v260 = vld [vmem:[%s168 + $0x528] sm:$0xff]
                %261 = vst [vmem:[%s169 + $0x168] sm:$0xff] %v260
                %v262 = vld [vmem:[%s168 + $0x530] sm:$0xff]
                %263 = vst [vmem:[%s169 + $0x170] sm:$0xff] %v262
                %v264 = vld [vmem:[%s168 + $0x538] sm:$0xff]
                %265 = vst [vmem:[%s169 + $0x178] sm:$0xff] %v264
                %v266 = vld [vmem:[%s168 + $0x600] sm:$0xff]
                %267 = vst [vmem:[%s169 + $0x180] sm:$0xff] %v266
                %v268 = vld [vmem:[%s168 + $0x608] sm:$0xff]
                %269 = vst [vmem:[%s169 + $0x188] sm:$0xff] %v268
                %v270 = vld [vmem:[%s168 + $0x610] sm:$0xff]
                %271 = vst [vmem:[%s169 + $0x190] sm:$0xff] %v270
                %v272 = vld [vmem:[%s168 + $0x618] sm:$0xff]
                %273 = vst [vmem:[%s169 + $0x198] sm:$0xff] %v272
                %v274 = vld [vmem:[%s168 + $0x620] sm:$0xff]
                %275 = vst [vmem:[%s169 + $0x1a0] sm:$0xff] %v274
                %v276 = vld [vmem:[%s168 + $0x628] sm:$0xff]
                %277 = vst [vmem:[%s169 + $0x1a8] sm:$0xff] %v276
                %v278 = vld [vmem:[%s168 + $0x630] sm:$0xff]
                %279 = vst [vmem:[%s169 + $0x1b0] sm:$0xff] %v278
                %v280 = vld [vmem:[%s168 + $0x638] sm:$0xff]
                %281 = vst [vmem:[%s169 + $0x1b8] sm:$0xff] %v280
                %v282 = vld [vmem:[%s168 + $0x700] sm:$0xff]
                %283 = vst [vmem:[%s169 + $0x1c0] sm:$0xff] %v282
                %v284 = vld [vmem:[%s168 + $0x708] sm:$0xff]
                %285 = vst [vmem:[%s169 + $0x1c8] sm:$0xff] %v284
                %v286 = vld [vmem:[%s168 + $0x710] sm:$0xff]
                %287 = vst [vmem:[%s169 + $0x1d0] sm:$0xff] %v286
                %v288 = vld [vmem:[%s168 + $0x718] sm:$0xff]
                %289 = vst [vmem:[%s169 + $0x1d8] sm:$0xff] %v288
                %v290 = vld [vmem:[%s168 + $0x720] sm:$0xff]
                %291 = vst [vmem:[%s169 + $0x1e0] sm:$0xff] %v290
                %v292 = vld [vmem:[%s168 + $0x728] sm:$0xff]
                %293 = vst [vmem:[%s169 + $0x1e8] sm:$0xff] %v292
                %v294 = vld [vmem:[%s168 + $0x730] sm:$0xff]
                %295 = vst [vmem:[%s169 + $0x1f0] sm:$0xff] %v294
                %v296 = vld [vmem:[%s168 + $0x738] sm:$0xff]
                %297 = vst [vmem:[%s169 + $0x1f8] sm:$0xff] %v296
                %v298 = vld [vmem:[%s168 + $0x800] sm:$0xff]
                %299 = vst [vmem:[%s169 + $0x200] sm:$0xff] %v298
                %v300 = vld [vmem:[%s168 + $0x808] sm:$0xff]
                %301 = vst [vmem:[%s169 + $0x208] sm:$0xff] %v300
                %v302 = vld [vmem:[%s168 + $0x810] sm:$0xff]
                %303 = vst [vmem:[%s169 + $0x210] sm:$0xff] %v302
                %v304 = vld [vmem:[%s168 + $0x818] sm:$0xff]
                %305 = vst [vmem:[%s169 + $0x218] sm:$0xff] %v304
                %v306 = vld [vmem:[%s168 + $0x820] sm:$0xff]
                %307 = vst [vmem:[%s169 + $0x220] sm:$0xff] %v306
                %v308 = vld [vmem:[%s168 + $0x828] sm:$0xff]
                %309 = vst [vmem:[%s169 + $0x228] sm:$0xff] %v308
                %v310 = vld [vmem:[%s168 + $0x830] sm:$0xff]
                %311 = vst [vmem:[%s169 + $0x230] sm:$0xff] %v310
                %v312 = vld [vmem:[%s168 + $0x838] sm:$0xff]
                %313 = vst [vmem:[%s169 + $0x238] sm:$0xff] %v312
                %v314 = vld [vmem:[%s168 + $0x900] sm:$0xff]
                %315 = vst [vmem:[%s169 + $0x240] sm:$0xff] %v314
                %v316 = vld [vmem:[%s168 + $0x908] sm:$0xff]
                %317 = vst [vmem:[%s169 + $0x248] sm:$0xff] %v316
                %v318 = vld [vmem:[%s168 + $0x910] sm:$0xff]
                %319 = vst [vmem:[%s169 + $0x250] sm:$0xff] %v318
                %v320 = vld [vmem:[%s168 + $0x918] sm:$0xff]
                %321 = vst [vmem:[%s169 + $0x258] sm:$0xff] %v320
                %v322 = vld [vmem:[%s168 + $0x920] sm:$0xff]
                %323 = vst [vmem:[%s169 + $0x260] sm:$0xff] %v322
                %v324 = vld [vmem:[%s168 + $0x928] sm:$0xff]
                %325 = vst [vmem:[%s169 + $0x268] sm:$0xff] %v324
                %v326 = vld [vmem:[%s168 + $0x930] sm:$0xff]
                %327 = vst [vmem:[%s169 + $0x270] sm:$0xff] %v326
                %v328 = vld [vmem:[%s168 + $0x938] sm:$0xff]
                %329 = vst [vmem:[%s169 + $0x278] sm:$0xff] %v328
                %v330 = vld [vmem:[%s168 + $0xa00] sm:$0xff]
                %331 = vst [vmem:[%s169 + $0x280] sm:$0xff] %v330
                %v332 = vld [vmem:[%s168 + $0xa08] sm:$0xff]
                %333 = vst [vmem:[%s169 + $0x288] sm:$0xff] %v332
                %v334 = vld [vmem:[%s168 + $0xa10] sm:$0xff]
                %335 = vst [vmem:[%s169 + $0x290] sm:$0xff] %v334
                %v336 = vld [vmem:[%s168 + $0xa18] sm:$0xff]
                %337 = vst [vmem:[%s169 + $0x298] sm:$0xff] %v336
                %v338 = vld [vmem:[%s168 + $0xa20] sm:$0xff]
                %339 = vst [vmem:[%s169 + $0x2a0] sm:$0xff] %v338
                %v340 = vld [vmem:[%s168 + $0xa28] sm:$0xff]
                %341 = vst [vmem:[%s169 + $0x2a8] sm:$0xff] %v340
                %v342 = vld [vmem:[%s168 + $0xa30] sm:$0xff]
                %343 = vst [vmem:[%s169 + $0x2b0] sm:$0xff] %v342
                %v344 = vld [vmem:[%s168 + $0xa38] sm:$0xff]
                %345 = vst [vmem:[%s169 + $0x2b8] sm:$0xff] %v344
                %v346 = vld [vmem:[%s168 + $0xb00] sm:$0xff]
                %347 = vst [vmem:[%s169 + $0x2c0] sm:$0xff] %v346
                %v348 = vld [vmem:[%s168 + $0xb08] sm:$0xff]
                %349 = vst [vmem:[%s169 + $0x2c8] sm:$0xff] %v348
                %v350 = vld [vmem:[%s168 + $0xb10] sm:$0xff]
                %351 = vst [vmem:[%s169 + $0x2d0] sm:$0xff] %v350
                %v352 = vld [vmem:[%s168 + $0xb18] sm:$0xff]
                %353 = vst [vmem:[%s169 + $0x2d8] sm:$0xff] %v352
                %v354 = vld [vmem:[%s168 + $0xb20] sm:$0xff]
                %355 = vst [vmem:[%s169 + $0x2e0] sm:$0xff] %v354
                %v356 = vld [vmem:[%s168 + $0xb28] sm:$0xff]
                %357 = vst [vmem:[%s169 + $0x2e8] sm:$0xff] %v356
                %v358 = vld [vmem:[%s168 + $0xb30] sm:$0xff]
                %359 = vst [vmem:[%s169 + $0x2f0] sm:$0xff] %v358
                %v360 = vld [vmem:[%s168 + $0xb38] sm:$0xff]
                %361 = vst [vmem:[%s169 + $0x2f8] sm:$0xff] %v360
                %v362 = vld [vmem:[%s168 + $0xc00] sm:$0xff]
                %363 = vst [vmem:[%s169 + $0x300] sm:$0xff] %v362
                %v364 = vld [vmem:[%s168 + $0xc08] sm:$0xff]
                %365 = vst [vmem:[%s169 + $0x308] sm:$0xff] %v364
                %v366 = vld [vmem:[%s168 + $0xc10] sm:$0xff]
                %367 = vst [vmem:[%s169 + $0x310] sm:$0xff] %v366
                %v368 = vld [vmem:[%s168 + $0xc18] sm:$0xff]
                %369 = vst [vmem:[%s169 + $0x318] sm:$0xff] %v368
                %v370 = vld [vmem:[%s168 + $0xc20] sm:$0xff]
                %371 = vst [vmem:[%s169 + $0x320] sm:$0xff] %v370
                %v372 = vld [vmem:[%s168 + $0xc28] sm:$0xff]
                %373 = vst [vmem:[%s169 + $0x328] sm:$0xff] %v372
                %v374 = vld [vmem:[%s168 + $0xc30] sm:$0xff]
                %375 = vst [vmem:[%s169 + $0x330] sm:$0xff] %v374
                %v376 = vld [vmem:[%s168 + $0xc38] sm:$0xff]
                %377 = vst [vmem:[%s169 + $0x338] sm:$0xff] %v376
                %v378 = vld [vmem:[%s168 + $0xd00] sm:$0xff]
                %379 = vst [vmem:[%s169 + $0x340] sm:$0xff] %v378
                %v380 = vld [vmem:[%s168 + $0xd08] sm:$0xff]
                %381 = vst [vmem:[%s169 + $0x348] sm:$0xff] %v380
                %v382 = vld [vmem:[%s168 + $0xd10] sm:$0xff]
                %383 = vst [vmem:[%s169 + $0x350] sm:$0xff] %v382
                %v384 = vld [vmem:[%s168 + $0xd18] sm:$0xff]
                %385 = vst [vmem:[%s169 + $0x358] sm:$0xff] %v384
                %v386 = vld [vmem:[%s168 + $0xd20] sm:$0xff]
                %387 = vst [vmem:[%s169 + $0x360] sm:$0xff] %v386
                %v388 = vld [vmem:[%s168 + $0xd28] sm:$0xff]
                %389 = vst [vmem:[%s169 + $0x368] sm:$0xff] %v388
                %v390 = vld [vmem:[%s168 + $0xd30] sm:$0xff]
                %391 = vst [vmem:[%s169 + $0x370] sm:$0xff] %v390
                %v392 = vld [vmem:[%s168 + $0xd38] sm:$0xff]
                %393 = vst [vmem:[%s169 + $0x378] sm:$0xff] %v392
                %v394 = vld [vmem:[%s168 + $0xe00] sm:$0xff]
                %395 = vst [vmem:[%s169 + $0x380] sm:$0xff] %v394
                %v396 = vld [vmem:[%s168 + $0xe08] sm:$0xff]
                %397 = vst [vmem:[%s169 + $0x388] sm:$0xff] %v396
                %v398 = vld [vmem:[%s168 + $0xe10] sm:$0xff]
                %399 = vst [vmem:[%s169 + $0x390] sm:$0xff] %v398
                %v400 = vld [vmem:[%s168 + $0xe18] sm:$0xff]
                %401 = vst [vmem:[%s169 + $0x398] sm:$0xff] %v400
                %v402 = vld [vmem:[%s168 + $0xe20] sm:$0xff]
                %403 = vst [vmem:[%s169 + $0x3a0] sm:$0xff] %v402
                %v404 = vld [vmem:[%s168 + $0xe28] sm:$0xff]
                %405 = vst [vmem:[%s169 + $0x3a8] sm:$0xff] %v404
                %v406 = vld [vmem:[%s168 + $0xe30] sm:$0xff]
                %407 = vst [vmem:[%s169 + $0x3b0] sm:$0xff] %v406
                %v408 = vld [vmem:[%s168 + $0xe38] sm:$0xff]
                %409 = vst [vmem:[%s169 + $0x3b8] sm:$0xff] %v408
                %v410 = vld [vmem:[%s168 + $0xf00] sm:$0xff]
                %411 = vst [vmem:[%s169 + $0x3c0] sm:$0xff] %v410
                %v412 = vld [vmem:[%s168 + $0xf08] sm:$0xff]
                %413 = vst [vmem:[%s169 + $0x3c8] sm:$0xff] %v412
                %v414 = vld [vmem:[%s168 + $0xf10] sm:$0xff]
                %415 = vst [vmem:[%s169 + $0x3d0] sm:$0xff] %v414
                %v416 = vld [vmem:[%s168 + $0xf18] sm:$0xff]
                %417 = vst [vmem:[%s169 + $0x3d8] sm:$0xff] %v416
                %v418 = vld [vmem:[%s168 + $0xf20] sm:$0xff]
                %419 = vst [vmem:[%s169 + $0x3e0] sm:$0xff] %v418
                %v420 = vld [vmem:[%s168 + $0xf28] sm:$0xff]
                %421 = vst [vmem:[%s169 + $0x3e8] sm:$0xff] %v420
                %v422 = vld [vmem:[%s168 + $0xf30] sm:$0xff]
                %423 = vst [vmem:[%s169 + $0x3f0] sm:$0xff] %v422
                %v424 = vld [vmem:[%s168 + $0xf38] sm:$0xff]
                %425 = vst [vmem:[%s169 + $0x3f8] sm:$0xff] %v424
                %v426 = vld [vmem:[%s168 + $0x1000] sm:$0xff]
                %427 = vst [vmem:[%s169 + $0x400] sm:$0xff] %v426
                %v428 = vld [vmem:[%s168 + $0x1008] sm:$0xff]
                %429 = vst [vmem:[%s169 + $0x408] sm:$0xff] %v428
                %v430 = vld [vmem:[%s168 + $0x1010] sm:$0xff]
                %431 = vst [vmem:[%s169 + $0x410] sm:$0xff] %v430
                %v432 = vld [vmem:[%s168 + $0x1018] sm:$0xff]
                %433 = vst [vmem:[%s169 + $0x418] sm:$0xff] %v432
                %v434 = vld [vmem:[%s168 + $0x1020] sm:$0xff]
                %435 = vst [vmem:[%s169 + $0x420] sm:$0xff] %v434
                %v436 = vld [vmem:[%s168 + $0x1028] sm:$0xff]
                %437 = vst [vmem:[%s169 + $0x428] sm:$0xff] %v436
                %v438 = vld [vmem:[%s168 + $0x1030] sm:$0xff]
                %439 = vst [vmem:[%s169 + $0x430] sm:$0xff] %v438
                %v440 = vld [vmem:[%s168 + $0x1038] sm:$0xff]
                %441 = vst [vmem:[%s169 + $0x438] sm:$0xff] %v440
                %v442 = vld [vmem:[%s168 + $0x1100] sm:$0xff]
                %443 = vst [vmem:[%s169 + $0x440] sm:$0xff] %v442
                %v444 = vld [vmem:[%s168 + $0x1108] sm:$0xff]
                %445 = vst [vmem:[%s169 + $0x448] sm:$0xff] %v444
                %v446 = vld [vmem:[%s168 + $0x1110] sm:$0xff]
                %447 = vst [vmem:[%s169 + $0x450] sm:$0xff] %v446
                %v448 = vld [vmem:[%s168 + $0x1118] sm:$0xff]
                %449 = vst [vmem:[%s169 + $0x458] sm:$0xff] %v448
                %v450 = vld [vmem:[%s168 + $0x1120] sm:$0xff]
                %451 = vst [vmem:[%s169 + $0x460] sm:$0xff] %v450
                %v452 = vld [vmem:[%s168 + $0x1128] sm:$0xff]
                %453 = vst [vmem:[%s169 + $0x468] sm:$0xff] %v452
                %v454 = vld [vmem:[%s168 + $0x1130] sm:$0xff]
                %455 = vst [vmem:[%s169 + $0x470] sm:$0xff] %v454
                %v456 = vld [vmem:[%s168 + $0x1138] sm:$0xff]
                %457 = vst [vmem:[%s169 + $0x478] sm:$0xff] %v456
                %v458 = vld [vmem:[%s168 + $0x1200] sm:$0xff]
                %459 = vst [vmem:[%s169 + $0x480] sm:$0xff] %v458
                %v460 = vld [vmem:[%s168 + $0x1208] sm:$0xff]
                %461 = vst [vmem:[%s169 + $0x488] sm:$0xff] %v460
                %v462 = vld [vmem:[%s168 + $0x1210] sm:$0xff]
                %463 = vst [vmem:[%s169 + $0x490] sm:$0xff] %v462
                %v464 = vld [vmem:[%s168 + $0x1218] sm:$0xff]
                %465 = vst [vmem:[%s169 + $0x498] sm:$0xff] %v464
                %v466 = vld [vmem:[%s168 + $0x1220] sm:$0xff]
                %467 = vst [vmem:[%s169 + $0x4a0] sm:$0xff] %v466
                %v468 = vld [vmem:[%s168 + $0x1228] sm:$0xff]
                %469 = vst [vmem:[%s169 + $0x4a8] sm:$0xff] %v468
                %v470 = vld [vmem:[%s168 + $0x1230] sm:$0xff]
                %471 = vst [vmem:[%s169 + $0x4b0] sm:$0xff] %v470
                %v472 = vld [vmem:[%s168 + $0x1238] sm:$0xff]
                %473 = vst [vmem:[%s169 + $0x4b8] sm:$0xff] %v472
                %v474 = vld [vmem:[%s168 + $0x1300] sm:$0xff]
                %475 = vst [vmem:[%s169 + $0x4c0] sm:$0xff] %v474
                %v476 = vld [vmem:[%s168 + $0x1308] sm:$0xff]
                %477 = vst [vmem:[%s169 + $0x4c8] sm:$0xff] %v476
                %v478 = vld [vmem:[%s168 + $0x1310] sm:$0xff]
                %479 = vst [vmem:[%s169 + $0x4d0] sm:$0xff] %v478
                %v480 = vld [vmem:[%s168 + $0x1318] sm:$0xff]
                %481 = vst [vmem:[%s169 + $0x4d8] sm:$0xff] %v480
                %v482 = vld [vmem:[%s168 + $0x1320] sm:$0xff]
                %483 = vst [vmem:[%s169 + $0x4e0] sm:$0xff] %v482
                %v484 = vld [vmem:[%s168 + $0x1328] sm:$0xff]
                %485 = vst [vmem:[%s169 + $0x4e8] sm:$0xff] %v484
                %v486 = vld [vmem:[%s168 + $0x1330] sm:$0xff]
                %487 = vst [vmem:[%s169 + $0x4f0] sm:$0xff] %v486
                %v488 = vld [vmem:[%s168 + $0x1338] sm:$0xff]
                %489 = vst [vmem:[%s169 + $0x4f8] sm:$0xff] %v488
                %v490 = vld [vmem:[%s168 + $0x1400] sm:$0xff]
                %491 = vst [vmem:[%s169 + $0x500] sm:$0xff] %v490
                %v492 = vld [vmem:[%s168 + $0x1408] sm:$0xff]
                %493 = vst [vmem:[%s169 + $0x508] sm:$0xff] %v492
                %v494 = vld [vmem:[%s168 + $0x1410] sm:$0xff]
                %495 = vst [vmem:[%s169 + $0x510] sm:$0xff] %v494
                %v496 = vld [vmem:[%s168 + $0x1418] sm:$0xff]
                %497 = vst [vmem:[%s169 + $0x518] sm:$0xff] %v496
                %v498 = vld [vmem:[%s168 + $0x1420] sm:$0xff]
                %499 = vst [vmem:[%s169 + $0x520] sm:$0xff] %v498
                %v500 = vld [vmem:[%s168 + $0x1428] sm:$0xff]
                %501 = vst [vmem:[%s169 + $0x528] sm:$0xff] %v500
                %v502 = vld [vmem:[%s168 + $0x1430] sm:$0xff]
                %503 = vst [vmem:[%s169 + $0x530] sm:$0xff] %v502
                %v504 = vld [vmem:[%s168 + $0x1438] sm:$0xff]
                %505 = vst [vmem:[%s169 + $0x538] sm:$0xff] %v504
                %v506 = vld [vmem:[%s168 + $0x1500] sm:$0xff]
                %507 = vst [vmem:[%s169 + $0x540] sm:$0xff] %v506
                %v508 = vld [vmem:[%s168 + $0x1508] sm:$0xff]
                %509 = vst [vmem:[%s169 + $0x548] sm:$0xff] %v508
                %v510 = vld [vmem:[%s168 + $0x1510] sm:$0xff]
                %511 = vst [vmem:[%s169 + $0x550] sm:$0xff] %v510
                %v512 = vld [vmem:[%s168 + $0x1518] sm:$0xff]
                %513 = vst [vmem:[%s169 + $0x558] sm:$0xff] %v512
                %v514 = vld [vmem:[%s168 + $0x1520] sm:$0xff]
                %515 = vst [vmem:[%s169 + $0x560] sm:$0xff] %v514
                %v516 = vld [vmem:[%s168 + $0x1528] sm:$0xff]
                %517 = vst [vmem:[%s169 + $0x568] sm:$0xff] %v516
                %v518 = vld [vmem:[%s168 + $0x1530] sm:$0xff]
                %519 = vst [vmem:[%s169 + $0x570] sm:$0xff] %v518
                %v520 = vld [vmem:[%s168 + $0x1538] sm:$0xff]
                %521 = vst [vmem:[%s169 + $0x578] sm:$0xff] %v520
                %v522 = vld [vmem:[%s168 + $0x1600] sm:$0xff]
                %523 = vst [vmem:[%s169 + $0x580] sm:$0xff] %v522
                %v524 = vld [vmem:[%s168 + $0x1608] sm:$0xff]
                %525 = vst [vmem:[%s169 + $0x588] sm:$0xff] %v524
                %v526 = vld [vmem:[%s168 + $0x1610] sm:$0xff]
                %527 = vst [vmem:[%s169 + $0x590] sm:$0xff] %v526
                %v528 = vld [vmem:[%s168 + $0x1618] sm:$0xff]
                %529 = vst [vmem:[%s169 + $0x598] sm:$0xff] %v528
                %v530 = vld [vmem:[%s168 + $0x1620] sm:$0xff]
                %531 = vst [vmem:[%s169 + $0x5a0] sm:$0xff] %v530
                %v532 = vld [vmem:[%s168 + $0x1628] sm:$0xff]
                %533 = vst [vmem:[%s169 + $0x5a8] sm:$0xff] %v532
                %v534 = vld [vmem:[%s168 + $0x1630] sm:$0xff]
                %535 = vst [vmem:[%s169 + $0x5b0] sm:$0xff] %v534
                %v536 = vld [vmem:[%s168 + $0x1638] sm:$0xff]
                %537 = vst [vmem:[%s169 + $0x5b8] sm:$0xff] %v536
                %v538 = vld [vmem:[%s168 + $0x1700] sm:$0xff]
                %539 = vst [vmem:[%s169 + $0x5c0] sm:$0xff] %v538
                %v540 = vld [vmem:[%s168 + $0x1708] sm:$0xff]
                %541 = vst [vmem:[%s169 + $0x5c8] sm:$0xff] %v540
                %v542 = vld [vmem:[%s168 + $0x1710] sm:$0xff]
                %543 = vst [vmem:[%s169 + $0x5d0] sm:$0xff] %v542
                %v544 = vld [vmem:[%s168 + $0x1718] sm:$0xff]
                %545 = vst [vmem:[%s169 + $0x5d8] sm:$0xff] %v544
                %v546 = vld [vmem:[%s168 + $0x1720] sm:$0xff]
                %547 = vst [vmem:[%s169 + $0x5e0] sm:$0xff] %v546
                %v548 = vld [vmem:[%s168 + $0x1728] sm:$0xff]
                %549 = vst [vmem:[%s169 + $0x5e8] sm:$0xff] %v548
                %v550 = vld [vmem:[%s168 + $0x1730] sm:$0xff]
                %551 = vst [vmem:[%s169 + $0x5f0] sm:$0xff] %v550
                %v552 = vld [vmem:[%s168 + $0x1738] sm:$0xff]
                %553 = vst [vmem:[%s169 + $0x5f8] sm:$0xff] %v552
                %v554 = vld [vmem:[%s168 + $0x1800] sm:$0xff]
                %555 = vst [vmem:[%s169 + $0x600] sm:$0xff] %v554
                %v556 = vld [vmem:[%s168 + $0x1808] sm:$0xff]
                %557 = vst [vmem:[%s169 + $0x608] sm:$0xff] %v556
                %v558 = vld [vmem:[%s168 + $0x1810] sm:$0xff]
                %559 = vst [vmem:[%s169 + $0x610] sm:$0xff] %v558
                %v560 = vld [vmem:[%s168 + $0x1818] sm:$0xff]
                %561 = vst [vmem:[%s169 + $0x618] sm:$0xff] %v560
                %v562 = vld [vmem:[%s168 + $0x1820] sm:$0xff]
                %563 = vst [vmem:[%s169 + $0x620] sm:$0xff] %v562
                %v564 = vld [vmem:[%s168 + $0x1828] sm:$0xff]
                %565 = vst [vmem:[%s169 + $0x628] sm:$0xff] %v564
                %v566 = vld [vmem:[%s168 + $0x1830] sm:$0xff]
                %567 = vst [vmem:[%s169 + $0x630] sm:$0xff] %v566
                %v568 = vld [vmem:[%s168 + $0x1838] sm:$0xff]
                %569 = vst [vmem:[%s169 + $0x638] sm:$0xff] %v568
                %v570 = vld [vmem:[%s168 + $0x1900] sm:$0xff]
                %571 = vst [vmem:[%s169 + $0x640] sm:$0xff] %v570
                %v572 = vld [vmem:[%s168 + $0x1908] sm:$0xff]
                %573 = vst [vmem:[%s169 + $0x648] sm:$0xff] %v572
                %v574 = vld [vmem:[%s168 + $0x1910] sm:$0xff]
                %575 = vst [vmem:[%s169 + $0x650] sm:$0xff] %v574
                %v576 = vld [vmem:[%s168 + $0x1918] sm:$0xff]
                %577 = vst [vmem:[%s169 + $0x658] sm:$0xff] %v576
                %v578 = vld [vmem:[%s168 + $0x1920] sm:$0xff]
                %579 = vst [vmem:[%s169 + $0x660] sm:$0xff] %v578
                %v580 = vld [vmem:[%s168 + $0x1928] sm:$0xff]
                %581 = vst [vmem:[%s169 + $0x668] sm:$0xff] %v580
                %v582 = vld [vmem:[%s168 + $0x1930] sm:$0xff]
                %583 = vst [vmem:[%s169 + $0x670] sm:$0xff] %v582
                %v584 = vld [vmem:[%s168 + $0x1938] sm:$0xff]
                %585 = vst [vmem:[%s169 + $0x678] sm:$0xff] %v584
                %v586 = vld [vmem:[%s168 + $0x1a00] sm:$0xff]
                %587 = vst [vmem:[%s169 + $0x680] sm:$0xff] %v586
                %v588 = vld [vmem:[%s168 + $0x1a08] sm:$0xff]
                %589 = vst [vmem:[%s169 + $0x688] sm:$0xff] %v588
                %v590 = vld [vmem:[%s168 + $0x1a10] sm:$0xff]
                %591 = vst [vmem:[%s169 + $0x690] sm:$0xff] %v590
                %v592 = vld [vmem:[%s168 + $0x1a18] sm:$0xff]
                %593 = vst [vmem:[%s169 + $0x698] sm:$0xff] %v592
                %v594 = vld [vmem:[%s168 + $0x1a20] sm:$0xff]
                %595 = vst [vmem:[%s169 + $0x6a0] sm:$0xff] %v594
                %v596 = vld [vmem:[%s168 + $0x1a28] sm:$0xff]
                %597 = vst [vmem:[%s169 + $0x6a8] sm:$0xff] %v596
                %v598 = vld [vmem:[%s168 + $0x1a30] sm:$0xff]
                %599 = vst [vmem:[%s169 + $0x6b0] sm:$0xff] %v598
                %v600 = vld [vmem:[%s168 + $0x1a38] sm:$0xff]
                %601 = vst [vmem:[%s169 + $0x6b8] sm:$0xff] %v600
                %v602 = vld [vmem:[%s168 + $0x1b00] sm:$0xff]
                %603 = vst [vmem:[%s169 + $0x6c0] sm:$0xff] %v602
                %v604 = vld [vmem:[%s168 + $0x1b08] sm:$0xff]
                %605 = vst [vmem:[%s169 + $0x6c8] sm:$0xff] %v604
                %v606 = vld [vmem:[%s168 + $0x1b10] sm:$0xff]
                %607 = vst [vmem:[%s169 + $0x6d0] sm:$0xff] %v606
                %v608 = vld [vmem:[%s168 + $0x1b18] sm:$0xff]
                %609 = vst [vmem:[%s169 + $0x6d8] sm:$0xff] %v608
                %v610 = vld [vmem:[%s168 + $0x1b20] sm:$0xff]
                %611 = vst [vmem:[%s169 + $0x6e0] sm:$0xff] %v610
                %v612 = vld [vmem:[%s168 + $0x1b28] sm:$0xff]
                %613 = vst [vmem:[%s169 + $0x6e8] sm:$0xff] %v612
                %v614 = vld [vmem:[%s168 + $0x1b30] sm:$0xff]
                %615 = vst [vmem:[%s169 + $0x6f0] sm:$0xff] %v614
                %v616 = vld [vmem:[%s168 + $0x1b38] sm:$0xff]
                %617 = vst [vmem:[%s169 + $0x6f8] sm:$0xff] %v616
                %v618 = vld [vmem:[%s168 + $0x1c00] sm:$0xff]
                %619 = vst [vmem:[%s169 + $0x700] sm:$0xff] %v618
                %v620 = vld [vmem:[%s168 + $0x1c08] sm:$0xff]
                %621 = vst [vmem:[%s169 + $0x708] sm:$0xff] %v620
                %v622 = vld [vmem:[%s168 + $0x1c10] sm:$0xff]
                %623 = vst [vmem:[%s169 + $0x710] sm:$0xff] %v622
                %v624 = vld [vmem:[%s168 + $0x1c18] sm:$0xff]
                %625 = vst [vmem:[%s169 + $0x718] sm:$0xff] %v624
                %v626 = vld [vmem:[%s168 + $0x1c20] sm:$0xff]
                %627 = vst [vmem:[%s169 + $0x720] sm:$0xff] %v626
                %v628 = vld [vmem:[%s168 + $0x1c28] sm:$0xff]
                %629 = vst [vmem:[%s169 + $0x728] sm:$0xff] %v628
                %v630 = vld [vmem:[%s168 + $0x1c30] sm:$0xff]
                %631 = vst [vmem:[%s169 + $0x730] sm:$0xff] %v630
                %v632 = vld [vmem:[%s168 + $0x1c38] sm:$0xff]
                %633 = vst [vmem:[%s169 + $0x738] sm:$0xff] %v632
                %v634 = vld [vmem:[%s168 + $0x1d00] sm:$0xff]
                %635 = vst [vmem:[%s169 + $0x740] sm:$0xff] %v634
                %v636 = vld [vmem:[%s168 + $0x1d08] sm:$0xff]
                %637 = vst [vmem:[%s169 + $0x748] sm:$0xff] %v636
                %v638 = vld [vmem:[%s168 + $0x1d10] sm:$0xff]
                %639 = vst [vmem:[%s169 + $0x750] sm:$0xff] %v638
                %v640 = vld [vmem:[%s168 + $0x1d18] sm:$0xff]
                %641 = vst [vmem:[%s169 + $0x758] sm:$0xff] %v640
                %v642 = vld [vmem:[%s168 + $0x1d20] sm:$0xff]
                %643 = vst [vmem:[%s169 + $0x760] sm:$0xff] %v642
                %v644 = vld [vmem:[%s168 + $0x1d28] sm:$0xff]
                %645 = vst [vmem:[%s169 + $0x768] sm:$0xff] %v644
                %v646 = vld [vmem:[%s168 + $0x1d30] sm:$0xff]
                %647 = vst [vmem:[%s169 + $0x770] sm:$0xff] %v646
                %v648 = vld [vmem:[%s168 + $0x1d38] sm:$0xff]
                %649 = vst [vmem:[%s169 + $0x778] sm:$0xff] %v648
                %v650 = vld [vmem:[%s168 + $0x1e00] sm:$0xff]
                %651 = vst [vmem:[%s169 + $0x780] sm:$0xff] %v650
                %v652 = vld [vmem:[%s168 + $0x1e08] sm:$0xff]
                %653 = vst [vmem:[%s169 + $0x788] sm:$0xff] %v652
                %v654 = vld [vmem:[%s168 + $0x1e10] sm:$0xff]
                %655 = vst [vmem:[%s169 + $0x790] sm:$0xff] %v654
                %v656 = vld [vmem:[%s168 + $0x1e18] sm:$0xff]
                %657 = vst [vmem:[%s169 + $0x798] sm:$0xff] %v656
                %v658 = vld [vmem:[%s168 + $0x1e20] sm:$0xff]
                %659 = vst [vmem:[%s169 + $0x7a0] sm:$0xff] %v658
                %v660 = vld [vmem:[%s168 + $0x1e28] sm:$0xff]
                %661 = vst [vmem:[%s169 + $0x7a8] sm:$0xff] %v660
                %v662 = vld [vmem:[%s168 + $0x1e30] sm:$0xff]
                %663 = vst [vmem:[%s169 + $0x7b0] sm:$0xff] %v662
                %v664 = vld [vmem:[%s168 + $0x1e38] sm:$0xff]
                %665 = vst [vmem:[%s169 + $0x7b8] sm:$0xff] %v664
                %v666 = vld [vmem:[%s168 + $0x1f00] sm:$0xff]
                %667 = vst [vmem:[%s169 + $0x7c0] sm:$0xff] %v666
                %v668 = vld [vmem:[%s168 + $0x1f08] sm:$0xff]
                %669 = vst [vmem:[%s169 + $0x7c8] sm:$0xff] %v668
                %v670 = vld [vmem:[%s168 + $0x1f10] sm:$0xff]
                %671 = vst [vmem:[%s169 + $0x7d0] sm:$0xff] %v670
                %v672 = vld [vmem:[%s168 + $0x1f18] sm:$0xff]
                %673 = vst [vmem:[%s169 + $0x7d8] sm:$0xff] %v672
                %v674 = vld [vmem:[%s168 + $0x1f20] sm:$0xff]
                %675 = vst [vmem:[%s169 + $0x7e0] sm:$0xff] %v674
                %v676 = vld [vmem:[%s168 + $0x1f28] sm:$0xff]
                %677 = vst [vmem:[%s169 + $0x7e8] sm:$0xff] %v676
                %v678 = vld [vmem:[%s168 + $0x1f30] sm:$0xff]
                %679 = vst [vmem:[%s169 + $0x7f0] sm:$0xff] %v678
                %v680 = vld [vmem:[%s168 + $0x1f38] sm:$0xff]
                %681 = vst [vmem:[%s169 + $0x7f8] sm:$0xff] %v680
              $region37: #{input_transition_forward.2} parent=31 // loop_footer
                %s167 = sadd.s32 1, %s163
              $region38: #{input_transition_forward.2} parent=31 // loop_footer_branch
                %162 = sbr.rel target = $region34
              $region39: #{input_transition_forward.2} parent=31 // loop_exit
                _
            $region32: #{input_transition_forward.2} parent=27 // pred_fallthru
              _
            // Predicated region
            $region40: #{input_transition_forward.2} parent=27 // pred_check
              _
            $region41: #{input_transition_forward.2} parent=27 // pred_check_branch
              %683 = sbr.rel target = $region43
            $region42: #{input_transition_forward.2} parent=27 // pred_region
              _
            $region43: #{input_transition_forward.2} parent=27 // pred_fallthru
              _
          $region28: #{input_transition_forward.2} parent=23 // pred_fallthru
            _
          %684 = vnop
        $region24: #{input_transition_forward.2} parent=19 // pred_fallthru
          _
      $region20: #{input_transition_forward.2} parent=5 // pred_fallthru
        _
      %p685 = scmp.le.s32.totalorder 1, %s11
      %p686 = scmp.lt.s32.totalorder %s11, 5
      %p687 = pnand %p685, %p686
      %p688 = pneg %p687
      // Predicated region
      $region44: #{input_transition_forward.2} parent=5 // pred_check
        _
      $region45: #{input_transition_forward.2} parent=5 // pred_check_branch
        %690 = sbr.rel (%p687) target = $region47
      $region46: #{input_transition_forward.2} parent=5 // pred_region
        %s691 = ssub.s32 %s11, 1
        %s692 = sand.u32 %s24, 1
        %s693 = sand.u32 %s24, 1
        %s694 = smul.addr %s693, 2048
        %s695 = scalar_lea.vmem [#allocation2], %s694
        // Predicated region
        $region48: #{input_transition_forward.2} parent=46 // pred_check
          %p696 = pneg %p37
        $region49: #{input_transition_forward.2} parent=46 // pred_check_branch
          %698 = sbr.rel (%p696) target = $region51
        $region50: #{input_transition_forward.2} parent=46 // pred_region
          _
        $region51: #{input_transition_forward.2} parent=46 // pred_fallthru
          _
        %s699 = sand.u32 %s24, 1
        %s700 = sand.u32 %s24, 1
        %s701 = smul.addr %s700, 2048
        %s702 = scalar_lea.vmem [#allocation2], %s701
        %p703 = pneg %p37
        %p704 = pneg %p34
        %p705 = pneg %p58
        %p706 = pneg %p55
        %p707 = pneg %p84
        %p708 = pneg %p81
        %s709 = sand.u32 %s71, 1
        %s710 = sand.u32 %s71, 1
        %s711 = smul.addr %s710, 256
        %s712 = scalar_lea.vmem [#allocation3], %s711
        %p713 = pneg %p105
        %p714 = pneg %p102
        %p715 = pneg %p126
        %p716 = pneg %p123
        %s717 = smul.u32 16, %s16
        %s718 = smul.u32 16, %s16
        %v719 = vld [vmem:[%s1] sm:$0xff]
        %v720 = vld [vmem:[%s1 + $0x8] sm:$0xff]
        %v721 = vld [vmem:[%s695] sm:$0xff]
        %v722 = vld [vmem:[%s695 + $0x8] sm:$0xff]
        %v723 = vld [vmem:[%s695 + $0x10] sm:$0xff]
        %v724 = vld [vmem:[%s695 + $0x18] sm:$0xff]
        %v725 = vld [vmem:[%s695 + $0x20] sm:$0xff]
        %v726 = vld [vmem:[%s695 + $0x28] sm:$0xff]
        %v727 = vld [vmem:[%s695 + $0x30] sm:$0xff]
        %v728 = vld [vmem:[%s695 + $0x38] sm:$0xff]
        %v729 = vld [vmem:[%s695 + $0x40] sm:$0xff]
        %v730 = vld [vmem:[%s695 + $0x48] sm:$0xff]
        %v731 = vld [vmem:[%s695 + $0x50] sm:$0xff]
        %v732 = vld [vmem:[%s695 + $0x58] sm:$0xff]
        %v733 = vld [vmem:[%s695 + $0x60] sm:$0xff]
        %v734 = vld [vmem:[%s695 + $0x68] sm:$0xff]
        %v735 = vld [vmem:[%s695 + $0x70] sm:$0xff]
        %v736 = vld [vmem:[%s695 + $0x78] sm:$0xff]
        %v737 = vld [vmem:[%s695 + $0x80] sm:$0xff]
        %v738 = vld [vmem:[%s695 + $0x88] sm:$0xff]
        %v739 = vld [vmem:[%s695 + $0x90] sm:$0xff]
        %v740 = vld [vmem:[%s695 + $0x98] sm:$0xff]
        %v741 = vld [vmem:[%s695 + $0xa0] sm:$0xff]
        %v742 = vld [vmem:[%s695 + $0xa8] sm:$0xff]
        %v743 = vld [vmem:[%s695 + $0xb0] sm:$0xff]
        %v744 = vld [vmem:[%s695 + $0xb8] sm:$0xff]
        %v745 = vld [vmem:[%s695 + $0xc0] sm:$0xff]
        %v746 = vld [vmem:[%s695 + $0xc8] sm:$0xff]
        %v747 = vld [vmem:[%s695 + $0xd0] sm:$0xff]
        %v748 = vld [vmem:[%s695 + $0xd8] sm:$0xff]
        %v749 = vld [vmem:[%s695 + $0xe0] sm:$0xff]
        %v750 = vld [vmem:[%s695 + $0xe8] sm:$0xff]
        %v751 = vld [vmem:[%s695 + $0xf0] sm:$0xff]
        %v752 = vld [vmem:[%s695 + $0xf8] sm:$0xff]
        %v753 = vld [vmem:[%s695 + $0x100] sm:$0xff]
        %v754 = vld [vmem:[%s695 + $0x108] sm:$0xff]
        %v755 = vld [vmem:[%s695 + $0x110] sm:$0xff]
        %v756 = vld [vmem:[%s695 + $0x118] sm:$0xff]
        %v757 = vld [vmem:[%s695 + $0x120] sm:$0xff]
        %v758 = vld [vmem:[%s695 + $0x128] sm:$0xff]
        %v759 = vld [vmem:[%s695 + $0x130] sm:$0xff]
        %v760 = vld [vmem:[%s695 + $0x138] sm:$0xff]
        %v761 = vld [vmem:[%s695 + $0x140] sm:$0xff]
        %v762 = vld [vmem:[%s695 + $0x148] sm:$0xff]
        %v763 = vld [vmem:[%s695 + $0x150] sm:$0xff]
        %v764 = vld [vmem:[%s695 + $0x158] sm:$0xff]
        %v765 = vld [vmem:[%s695 + $0x160] sm:$0xff]
        %v766 = vld [vmem:[%s695 + $0x168] sm:$0xff]
        %v767 = vld [vmem:[%s695 + $0x170] sm:$0xff]
        %v768 = vld [vmem:[%s695 + $0x178] sm:$0xff]
        %v769 = vld [vmem:[%s695 + $0x180] sm:$0xff]
        %v770 = vld [vmem:[%s695 + $0x188] sm:$0xff]
        %v771 = vld [vmem:[%s695 + $0x190] sm:$0xff]
        %v772 = vld [vmem:[%s695 + $0x198] sm:$0xff]
        %v773 = vld [vmem:[%s695 + $0x1a0] sm:$0xff]
        %v774 = vld [vmem:[%s695 + $0x1a8] sm:$0xff]
        %v775 = vld [vmem:[%s695 + $0x1b0] sm:$0xff]
        %v776 = vld [vmem:[%s695 + $0x1b8] sm:$0xff]
        %v777 = vld [vmem:[%s695 + $0x1c0] sm:$0xff]
        %v778 = vld [vmem:[%s695 + $0x1c8] sm:$0xff]
        %v779 = vld [vmem:[%s695 + $0x1d0] sm:$0xff]
        %v780 = vld [vmem:[%s695 + $0x1d8] sm:$0xff]
        %v781 = vld [vmem:[%s695 + $0x1e0] sm:$0xff]
        %v782 = vld [vmem:[%s695 + $0x1e8] sm:$0xff]
        %v783 = vld [vmem:[%s695 + $0x1f0] sm:$0xff]
        %v784 = vld [vmem:[%s695 + $0x1f8] sm:$0xff]
        %v785 = vld [vmem:[%s695 + $0x200] sm:$0xff]
        %v786 = vld [vmem:[%s695 + $0x208] sm:$0xff]
        %v787 = vld [vmem:[%s695 + $0x210] sm:$0xff]
        %v788 = vld [vmem:[%s695 + $0x218] sm:$0xff]
        %v789 = vld [vmem:[%s695 + $0x220] sm:$0xff]
        %v790 = vld [vmem:[%s695 + $0x228] sm:$0xff]
        %v791 = vld [vmem:[%s695 + $0x230] sm:$0xff]
        %v792 = vld [vmem:[%s695 + $0x238] sm:$0xff]
        %v793 = vld [vmem:[%s695 + $0x240] sm:$0xff]
        %v794 = vld [vmem:[%s695 + $0x248] sm:$0xff]
        %v795 = vld [vmem:[%s695 + $0x250] sm:$0xff]
        %v796 = vld [vmem:[%s695 + $0x258] sm:$0xff]
        %v797 = vld [vmem:[%s695 + $0x260] sm:$0xff]
        %v798 = vld [vmem:[%s695 + $0x268] sm:$0xff]
        %v799 = vld [vmem:[%s695 + $0x270] sm:$0xff]
        %v800 = vld [vmem:[%s695 + $0x278] sm:$0xff]
        %v801 = vld [vmem:[%s695 + $0x280] sm:$0xff]
        %v802 = vld [vmem:[%s695 + $0x288] sm:$0xff]
        %v803 = vld [vmem:[%s695 + $0x290] sm:$0xff]
        %v804 = vld [vmem:[%s695 + $0x298] sm:$0xff]
        %v805 = vld [vmem:[%s695 + $0x2a0] sm:$0xff]
        %v806 = vld [vmem:[%s695 + $0x2a8] sm:$0xff]
        %v807 = vld [vmem:[%s695 + $0x2b0] sm:$0xff]
        %v808 = vld [vmem:[%s695 + $0x2b8] sm:$0xff]
        %v809 = vld [vmem:[%s695 + $0x2c0] sm:$0xff]
        %v810 = vld [vmem:[%s695 + $0x2c8] sm:$0xff]
        %v811 = vld [vmem:[%s695 + $0x2d0] sm:$0xff]
        %v812 = vld [vmem:[%s695 + $0x2d8] sm:$0xff]
        %v813 = vld [vmem:[%s695 + $0x2e0] sm:$0xff]
        %v814 = vld [vmem:[%s695 + $0x2e8] sm:$0xff]
        %v815 = vld [vmem:[%s695 + $0x2f0] sm:$0xff]
        %v816 = vld [vmem:[%s695 + $0x2f8] sm:$0xff]
        %v817 = vld [vmem:[%s695 + $0x300] sm:$0xff]
        %v818 = vld [vmem:[%s695 + $0x308] sm:$0xff]
        %v819 = vld [vmem:[%s695 + $0x310] sm:$0xff]
        %v820 = vld [vmem:[%s695 + $0x318] sm:$0xff]
        %v821 = vld [vmem:[%s695 + $0x320] sm:$0xff]
        %v822 = vld [vmem:[%s695 + $0x328] sm:$0xff]
        %v823 = vld [vmem:[%s695 + $0x330] sm:$0xff]
        %v824 = vld [vmem:[%s695 + $0x338] sm:$0xff]
        %v825 = vld [vmem:[%s695 + $0x340] sm:$0xff]
        %v826 = vld [vmem:[%s695 + $0x348] sm:$0xff]
        %v827 = vld [vmem:[%s695 + $0x350] sm:$0xff]
        %v828 = vld [vmem:[%s695 + $0x358] sm:$0xff]
        %v829 = vld [vmem:[%s695 + $0x360] sm:$0xff]
        %v830 = vld [vmem:[%s695 + $0x368] sm:$0xff]
        %v831 = vld [vmem:[%s695 + $0x370] sm:$0xff]
        %v832 = vld [vmem:[%s695 + $0x378] sm:$0xff]
        %v833 = vld [vmem:[%s695 + $0x380] sm:$0xff]
        %v834 = vld [vmem:[%s695 + $0x388] sm:$0xff]
        %v835 = vld [vmem:[%s695 + $0x390] sm:$0xff]
        %v836 = vld [vmem:[%s695 + $0x398] sm:$0xff]
        %v837 = vld [vmem:[%s695 + $0x3a0] sm:$0xff]
        %v838 = vld [vmem:[%s695 + $0x3a8] sm:$0xff]
        %v839 = vld [vmem:[%s695 + $0x3b0] sm:$0xff]
        %v840 = vld [vmem:[%s695 + $0x3b8] sm:$0xff]
        %v841 = vld [vmem:[%s695 + $0x3c0] sm:$0xff]
        %v842 = vld [vmem:[%s695 + $0x3c8] sm:$0xff]
        %v843 = vld [vmem:[%s695 + $0x3d0] sm:$0xff]
        %v844 = vld [vmem:[%s695 + $0x3d8] sm:$0xff]
        %v845 = vld [vmem:[%s695 + $0x3e0] sm:$0xff]
        %v846 = vld [vmem:[%s695 + $0x3e8] sm:$0xff]
        %v847 = vld [vmem:[%s695 + $0x3f0] sm:$0xff]
        %v848 = vld [vmem:[%s695 + $0x3f8] sm:$0xff]
        %v849 = vld [vmem:[%s695 + $0x400] sm:$0xff]
        %v850 = vld [vmem:[%s695 + $0x408] sm:$0xff]
        %v851 = vld [vmem:[%s695 + $0x410] sm:$0xff]
        %v852 = vld [vmem:[%s695 + $0x418] sm:$0xff]
        %v853 = vld [vmem:[%s695 + $0x420] sm:$0xff]
        %v854 = vld [vmem:[%s695 + $0x428] sm:$0xff]
        %v855 = vld [vmem:[%s695 + $0x430] sm:$0xff]
        %v856 = vld [vmem:[%s695 + $0x438] sm:$0xff]
        %v857 = vld [vmem:[%s695 + $0x440] sm:$0xff]
        %v858 = vld [vmem:[%s695 + $0x448] sm:$0xff]
        %v859 = vld [vmem:[%s695 + $0x450] sm:$0xff]
        %v860 = vld [vmem:[%s695 + $0x458] sm:$0xff]
        %v861 = vld [vmem:[%s695 + $0x460] sm:$0xff]
        %v862 = vld [vmem:[%s695 + $0x468] sm:$0xff]
        %v863 = vld [vmem:[%s695 + $0x470] sm:$0xff]
        %v864 = vld [vmem:[%s695 + $0x478] sm:$0xff]
        %v865 = vld [vmem:[%s695 + $0x480] sm:$0xff]
        %v866 = vld [vmem:[%s695 + $0x488] sm:$0xff]
        %v867 = vld [vmem:[%s695 + $0x490] sm:$0xff]
        %v868 = vld [vmem:[%s695 + $0x498] sm:$0xff]
        %v869 = vld [vmem:[%s695 + $0x4a0] sm:$0xff]
        %v870 = vld [vmem:[%s695 + $0x4a8] sm:$0xff]
        %v871 = vld [vmem:[%s695 + $0x4b0] sm:$0xff]
        %v872 = vld [vmem:[%s695 + $0x4b8] sm:$0xff]
        %v873 = vld [vmem:[%s695 + $0x4c0] sm:$0xff]
        %v874 = vld [vmem:[%s695 + $0x4c8] sm:$0xff]
        %v875 = vld [vmem:[%s695 + $0x4d0] sm:$0xff]
        %v876 = vld [vmem:[%s695 + $0x4d8] sm:$0xff]
        %v877 = vld [vmem:[%s695 + $0x4e0] sm:$0xff]
        %v878 = vld [vmem:[%s695 + $0x4e8] sm:$0xff]
        %v879 = vld [vmem:[%s695 + $0x4f0] sm:$0xff]
        %v880 = vld [vmem:[%s695 + $0x4f8] sm:$0xff]
        %v881 = vld [vmem:[%s695 + $0x500] sm:$0xff]
        %v882 = vld [vmem:[%s695 + $0x508] sm:$0xff]
        %v883 = vld [vmem:[%s695 + $0x510] sm:$0xff]
        %v884 = vld [vmem:[%s695 + $0x518] sm:$0xff]
        %v885 = vld [vmem:[%s695 + $0x520] sm:$0xff]
        %v886 = vld [vmem:[%s695 + $0x528] sm:$0xff]
        %v887 = vld [vmem:[%s695 + $0x530] sm:$0xff]
        %v888 = vld [vmem:[%s695 + $0x538] sm:$0xff]
        %v889 = vld [vmem:[%s695 + $0x540] sm:$0xff]
        %v890 = vld [vmem:[%s695 + $0x548] sm:$0xff]
        %v891 = vld [vmem:[%s695 + $0x550] sm:$0xff]
        %v892 = vld [vmem:[%s695 + $0x558] sm:$0xff]
        %v893 = vld [vmem:[%s695 + $0x560] sm:$0xff]
        %v894 = vld [vmem:[%s695 + $0x568] sm:$0xff]
        %v895 = vld [vmem:[%s695 + $0x570] sm:$0xff]
        %v896 = vld [vmem:[%s695 + $0x578] sm:$0xff]
        %v897 = vld [vmem:[%s695 + $0x580] sm:$0xff]
        %v898 = vld [vmem:[%s695 + $0x588] sm:$0xff]
        %v899 = vld [vmem:[%s695 + $0x590] sm:$0xff]
        %v900 = vld [vmem:[%s695 + $0x598] sm:$0xff]
        %v901 = vld [vmem:[%s695 + $0x5a0] sm:$0xff]
        %v902 = vld [vmem:[%s695 + $0x5a8] sm:$0xff]
        %v903 = vld [vmem:[%s695 + $0x5b0] sm:$0xff]
        %v904 = vld [vmem:[%s695 + $0x5b8] sm:$0xff]
        %v905 = vld [vmem:[%s695 + $0x5c0] sm:$0xff]
        %v906 = vld [vmem:[%s695 + $0x5c8] sm:$0xff]
        %v907 = vld [vmem:[%s695 + $0x5d0] sm:$0xff]
        %v908 = vld [vmem:[%s695 + $0x5d8] sm:$0xff]
        %v909 = vld [vmem:[%s695 + $0x5e0] sm:$0xff]
        %v910 = vld [vmem:[%s695 + $0x5e8] sm:$0xff]
        %v911 = vld [vmem:[%s695 + $0x5f0] sm:$0xff]
        %v912 = vld [vmem:[%s695 + $0x5f8] sm:$0xff]
        %v913 = vld [vmem:[%s695 + $0x600] sm:$0xff]
        %v914 = vld [vmem:[%s695 + $0x608] sm:$0xff]
        %v915 = vld [vmem:[%s695 + $0x610] sm:$0xff]
        %v916 = vld [vmem:[%s695 + $0x618] sm:$0xff]
        %v917 = vld [vmem:[%s695 + $0x620] sm:$0xff]
        %v918 = vld [vmem:[%s695 + $0x628] sm:$0xff]
        %v919 = vld [vmem:[%s695 + $0x630] sm:$0xff]
        %v920 = vld [vmem:[%s695 + $0x638] sm:$0xff]
        %v921 = vld [vmem:[%s695 + $0x640] sm:$0xff]
        %v922 = vld [vmem:[%s695 + $0x648] sm:$0xff]
        %v923 = vld [vmem:[%s695 + $0x650] sm:$0xff]
        %v924 = vld [vmem:[%s695 + $0x658] sm:$0xff]
        %v925 = vld [vmem:[%s695 + $0x660] sm:$0xff]
        %v926 = vld [vmem:[%s695 + $0x668] sm:$0xff]
        %v927 = vld [vmem:[%s695 + $0x670] sm:$0xff]
        %v928 = vld [vmem:[%s695 + $0x678] sm:$0xff]
        %v929 = vld [vmem:[%s695 + $0x680] sm:$0xff]
        %v930 = vld [vmem:[%s695 + $0x688] sm:$0xff]
        %v931 = vld [vmem:[%s695 + $0x690] sm:$0xff]
        %v932 = vld [vmem:[%s695 + $0x698] sm:$0xff]
        %v933 = vld [vmem:[%s695 + $0x6a0] sm:$0xff]
        %v934 = vld [vmem:[%s695 + $0x6a8] sm:$0xff]
        %v935 = vld [vmem:[%s695 + $0x6b0] sm:$0xff]
        %v936 = vld [vmem:[%s695 + $0x6b8] sm:$0xff]
        %v937 = vld [vmem:[%s695 + $0x6c0] sm:$0xff]
        %v938 = vld [vmem:[%s695 + $0x6c8] sm:$0xff]
        %v939 = vld [vmem:[%s695 + $0x6d0] sm:$0xff]
        %v940 = vld [vmem:[%s695 + $0x6d8] sm:$0xff]
        %v941 = vld [vmem:[%s695 + $0x6e0] sm:$0xff]
        %v942 = vld [vmem:[%s695 + $0x6e8] sm:$0xff]
        %v943 = vld [vmem:[%s695 + $0x6f0] sm:$0xff]
        %v944 = vld [vmem:[%s695 + $0x6f8] sm:$0xff]
        %v945 = vld [vmem:[%s695 + $0x700] sm:$0xff]
        %v946 = vld [vmem:[%s695 + $0x708] sm:$0xff]
        %v947 = vld [vmem:[%s695 + $0x710] sm:$0xff]
        %v948 = vld [vmem:[%s695 + $0x718] sm:$0xff]
        %v949 = vld [vmem:[%s695 + $0x720] sm:$0xff]
        %v950 = vld [vmem:[%s695 + $0x728] sm:$0xff]
        %v951 = vld [vmem:[%s695 + $0x730] sm:$0xff]
        %v952 = vld [vmem:[%s695 + $0x738] sm:$0xff]
        %v953 = vld [vmem:[%s695 + $0x740] sm:$0xff]
        %v954 = vld [vmem:[%s695 + $0x748] sm:$0xff]
        %v955 = vld [vmem:[%s695 + $0x750] sm:$0xff]
        %v956 = vld [vmem:[%s695 + $0x758] sm:$0xff]
        %v957 = vld [vmem:[%s695 + $0x760] sm:$0xff]
        %v958 = vld [vmem:[%s695 + $0x768] sm:$0xff]
        %v959 = vld [vmem:[%s695 + $0x770] sm:$0xff]
        %v960 = vld [vmem:[%s695 + $0x778] sm:$0xff]
        %v961 = vld [vmem:[%s695 + $0x780] sm:$0xff]
        %v962 = vld [vmem:[%s695 + $0x788] sm:$0xff]
        %v963 = vld [vmem:[%s695 + $0x790] sm:$0xff]
        %v964 = vld [vmem:[%s695 + $0x798] sm:$0xff]
        %v965 = vld [vmem:[%s695 + $0x7a0] sm:$0xff]
        %v966 = vld [vmem:[%s695 + $0x7a8] sm:$0xff]
        %v967 = vld [vmem:[%s695 + $0x7b0] sm:$0xff]
        %v968 = vld [vmem:[%s695 + $0x7b8] sm:$0xff]
        %v969 = vld [vmem:[%s695 + $0x7c0] sm:$0xff]
        %v970 = vld [vmem:[%s695 + $0x7c8] sm:$0xff]
        %v971 = vld [vmem:[%s695 + $0x7d0] sm:$0xff]
        %v972 = vld [vmem:[%s695 + $0x7d8] sm:$0xff]
        %v973 = vld [vmem:[%s695 + $0x7e0] sm:$0xff]
        %v974 = vld [vmem:[%s695 + $0x7e8] sm:$0xff]
        %v975 = vld [vmem:[%s695 + $0x7f0] sm:$0xff]
        %v976 = vld [vmem:[%s695 + $0x7f8] sm:$0xff]
        %v979 = vunpack.c.l.b16 %v719
        %v980 = vunpack.c.h.b16 %v719
        %v981 = vunpack.c.l.b16 %v720
        %v982 = vunpack.c.h.b16 %v720
        %v983 = vpack.c.b16 %v981, %v979
        %v984 = vpack.c.b16 %v982, %v980
        %v1243 = vunpack.c.l.b16 %v721
        %v1244 = vunpack.c.h.b16 %v721
        %v1245 = vunpack.c.l.b16 %v722
        %v1246 = vunpack.c.h.b16 %v722
        %v1247 = vunpack.c.l.b16 %v723
        %v1248 = vunpack.c.h.b16 %v723
        %v1249 = vunpack.c.l.b16 %v724
        %v1250 = vunpack.c.h.b16 %v724
        %v1251 = vunpack.c.l.b16 %v725
        %v1252 = vunpack.c.h.b16 %v725
        %v1253 = vunpack.c.l.b16 %v726
        %v1254 = vunpack.c.h.b16 %v726
        %v1255 = vunpack.c.l.b16 %v727
        %v1256 = vunpack.c.h.b16 %v727
        %v1257 = vunpack.c.l.b16 %v728
        %v1258 = vunpack.c.h.b16 %v728
        %v1259 = vunpack.c.l.b16 %v729
        %v1260 = vunpack.c.h.b16 %v729
        %v1261 = vunpack.c.l.b16 %v730
        %v1262 = vunpack.c.h.b16 %v730
        %v1263 = vunpack.c.l.b16 %v731
        %v1264 = vunpack.c.h.b16 %v731
        %v1265 = vunpack.c.l.b16 %v732
        %v1266 = vunpack.c.h.b16 %v732
        %v1267 = vunpack.c.l.b16 %v733
        %v1268 = vunpack.c.h.b16 %v733
        %v1269 = vunpack.c.l.b16 %v734
        %v1270 = vunpack.c.h.b16 %v734
        %v1271 = vunpack.c.l.b16 %v735
        %v1272 = vunpack.c.h.b16 %v735
        %v1273 = vunpack.c.l.b16 %v736
        %v1274 = vunpack.c.h.b16 %v736
        %v1275 = vunpack.c.l.b16 %v737
        %v1276 = vunpack.c.h.b16 %v737
        %v1277 = vunpack.c.l.b16 %v738
        %v1278 = vunpack.c.h.b16 %v738
        %v1279 = vunpack.c.l.b16 %v739
        %v1280 = vunpack.c.h.b16 %v739
        %v1281 = vunpack.c.l.b16 %v740
        %v1282 = vunpack.c.h.b16 %v740
        %v1283 = vunpack.c.l.b16 %v741
        %v1284 = vunpack.c.h.b16 %v741
        %v1285 = vunpack.c.l.b16 %v742
        %v1286 = vunpack.c.h.b16 %v742
        %v1287 = vunpack.c.l.b16 %v743
        %v1288 = vunpack.c.h.b16 %v743
        %v1289 = vunpack.c.l.b16 %v744
        %v1290 = vunpack.c.h.b16 %v744
        %v1291 = vunpack.c.l.b16 %v745
        %v1292 = vunpack.c.h.b16 %v745
        %v1293 = vunpack.c.l.b16 %v746
        %v1294 = vunpack.c.h.b16 %v746
        %v1295 = vunpack.c.l.b16 %v747
        %v1296 = vunpack.c.h.b16 %v747
        %v1297 = vunpack.c.l.b16 %v748
        %v1298 = vunpack.c.h.b16 %v748
        %v1299 = vunpack.c.l.b16 %v749
        %v1300 = vunpack.c.h.b16 %v749
        %v1301 = vunpack.c.l.b16 %v750
        %v1302 = vunpack.c.h.b16 %v750
        %v1303 = vunpack.c.l.b16 %v751
        %v1304 = vunpack.c.h.b16 %v751
        %v1305 = vunpack.c.l.b16 %v752
        %v1306 = vunpack.c.h.b16 %v752
        %v1307 = vunpack.c.l.b16 %v753
        %v1308 = vunpack.c.h.b16 %v753
        %v1309 = vunpack.c.l.b16 %v754
        %v1310 = vunpack.c.h.b16 %v754
        %v1311 = vunpack.c.l.b16 %v755
        %v1312 = vunpack.c.h.b16 %v755
        %v1313 = vunpack.c.l.b16 %v756
        %v1314 = vunpack.c.h.b16 %v756
        %v1315 = vunpack.c.l.b16 %v757
        %v1316 = vunpack.c.h.b16 %v757
        %v1317 = vunpack.c.l.b16 %v758
        %v1318 = vunpack.c.h.b16 %v758
        %v1319 = vunpack.c.l.b16 %v759
        %v1320 = vunpack.c.h.b16 %v759
        %v1321 = vunpack.c.l.b16 %v760
        %v1322 = vunpack.c.h.b16 %v760
        %v1323 = vunpack.c.l.b16 %v761
        %v1324 = vunpack.c.h.b16 %v761
        %v1325 = vunpack.c.l.b16 %v762
        %v1326 = vunpack.c.h.b16 %v762
        %v1327 = vunpack.c.l.b16 %v763
        %v1328 = vunpack.c.h.b16 %v763
        %v1329 = vunpack.c.l.b16 %v764
        %v1330 = vunpack.c.h.b16 %v764
        %v1331 = vunpack.c.l.b16 %v765
        %v1332 = vunpack.c.h.b16 %v765
        %v1333 = vunpack.c.l.b16 %v766
        %v1334 = vunpack.c.h.b16 %v766
        %v1335 = vunpack.c.l.b16 %v767
        %v1336 = vunpack.c.h.b16 %v767
        %v1337 = vunpack.c.l.b16 %v768
        %v1338 = vunpack.c.h.b16 %v768
        %v1339 = vunpack.c.l.b16 %v769
        %v1340 = vunpack.c.h.b16 %v769
        %v1341 = vunpack.c.l.b16 %v770
        %v1342 = vunpack.c.h.b16 %v770
        %v1343 = vunpack.c.l.b16 %v771
        %v1344 = vunpack.c.h.b16 %v771
        %v1345 = vunpack.c.l.b16 %v772
        %v1346 = vunpack.c.h.b16 %v772
        %v1347 = vunpack.c.l.b16 %v773
        %v1348 = vunpack.c.h.b16 %v773
        %v1349 = vunpack.c.l.b16 %v774
        %v1350 = vunpack.c.h.b16 %v774
        %v1351 = vunpack.c.l.b16 %v775
        %v1352 = vunpack.c.h.b16 %v775
        %v1353 = vunpack.c.l.b16 %v776
        %v1354 = vunpack.c.h.b16 %v776
        %v1355 = vunpack.c.l.b16 %v777
        %v1356 = vunpack.c.h.b16 %v777
        %v1357 = vunpack.c.l.b16 %v778
        %v1358 = vunpack.c.h.b16 %v778
        %v1359 = vunpack.c.l.b16 %v779
        %v1360 = vunpack.c.h.b16 %v779
        %v1361 = vunpack.c.l.b16 %v780
        %v1362 = vunpack.c.h.b16 %v780
        %v1363 = vunpack.c.l.b16 %v781
        %v1364 = vunpack.c.h.b16 %v781
        %v1365 = vunpack.c.l.b16 %v782
        %v1366 = vunpack.c.h.b16 %v782
        %v1367 = vunpack.c.l.b16 %v783
        %v1368 = vunpack.c.h.b16 %v783
        %v1369 = vunpack.c.l.b16 %v784
        %v1370 = vunpack.c.h.b16 %v784
        %v1371 = vunpack.c.l.b16 %v785
        %v1372 = vunpack.c.h.b16 %v785
        %v1373 = vunpack.c.l.b16 %v786
        %v1374 = vunpack.c.h.b16 %v786
        %v1375 = vunpack.c.l.b16 %v787
        %v1376 = vunpack.c.h.b16 %v787
        %v1377 = vunpack.c.l.b16 %v788
        %v1378 = vunpack.c.h.b16 %v788
        %v1379 = vunpack.c.l.b16 %v789
        %v1380 = vunpack.c.h.b16 %v789
        %v1381 = vunpack.c.l.b16 %v790
        %v1382 = vunpack.c.h.b16 %v790
        %v1383 = vunpack.c.l.b16 %v791
        %v1384 = vunpack.c.h.b16 %v791
        %v1385 = vunpack.c.l.b16 %v792
        %v1386 = vunpack.c.h.b16 %v792
        %v1387 = vunpack.c.l.b16 %v793
        %v1388 = vunpack.c.h.b16 %v793
        %v1389 = vunpack.c.l.b16 %v794
        %v1390 = vunpack.c.h.b16 %v794
        %v1391 = vunpack.c.l.b16 %v795
        %v1392 = vunpack.c.h.b16 %v795
        %v1393 = vunpack.c.l.b16 %v796
        %v1394 = vunpack.c.h.b16 %v796
        %v1395 = vunpack.c.l.b16 %v797
        %v1396 = vunpack.c.h.b16 %v797
        %v1397 = vunpack.c.l.b16 %v798
        %v1398 = vunpack.c.h.b16 %v798
        %v1399 = vunpack.c.l.b16 %v799
        %v1400 = vunpack.c.h.b16 %v799
        %v1401 = vunpack.c.l.b16 %v800
        %v1402 = vunpack.c.h.b16 %v800
        %v1403 = vunpack.c.l.b16 %v801
        %v1404 = vunpack.c.h.b16 %v801
        %v1405 = vunpack.c.l.b16 %v802
        %v1406 = vunpack.c.h.b16 %v802
        %v1407 = vunpack.c.l.b16 %v803
        %v1408 = vunpack.c.h.b16 %v803
        %v1409 = vunpack.c.l.b16 %v804
        %v1410 = vunpack.c.h.b16 %v804
        %v1411 = vunpack.c.l.b16 %v805
        %v1412 = vunpack.c.h.b16 %v805
        %v1413 = vunpack.c.l.b16 %v806
        %v1414 = vunpack.c.h.b16 %v806
        %v1415 = vunpack.c.l.b16 %v807
        %v1416 = vunpack.c.h.b16 %v807
        %v1417 = vunpack.c.l.b16 %v808
        %v1418 = vunpack.c.h.b16 %v808
        %v1419 = vunpack.c.l.b16 %v809
        %v1420 = vunpack.c.h.b16 %v809
        %v1421 = vunpack.c.l.b16 %v810
        %v1422 = vunpack.c.h.b16 %v810
        %v1423 = vunpack.c.l.b16 %v811
        %v1424 = vunpack.c.h.b16 %v811
        %v1425 = vunpack.c.l.b16 %v812
        %v1426 = vunpack.c.h.b16 %v812
        %v1427 = vunpack.c.l.b16 %v813
        %v1428 = vunpack.c.h.b16 %v813
        %v1429 = vunpack.c.l.b16 %v814
        %v1430 = vunpack.c.h.b16 %v814
        %v1431 = vunpack.c.l.b16 %v815
        %v1432 = vunpack.c.h.b16 %v815
        %v1433 = vunpack.c.l.b16 %v816
        %v1434 = vunpack.c.h.b16 %v816
        %v1435 = vunpack.c.l.b16 %v817
        %v1436 = vunpack.c.h.b16 %v817
        %v1437 = vunpack.c.l.b16 %v818
        %v1438 = vunpack.c.h.b16 %v818
        %v1439 = vunpack.c.l.b16 %v819
        %v1440 = vunpack.c.h.b16 %v819
        %v1441 = vunpack.c.l.b16 %v820
        %v1442 = vunpack.c.h.b16 %v820
        %v1443 = vunpack.c.l.b16 %v821
        %v1444 = vunpack.c.h.b16 %v821
        %v1445 = vunpack.c.l.b16 %v822
        %v1446 = vunpack.c.h.b16 %v822
        %v1447 = vunpack.c.l.b16 %v823
        %v1448 = vunpack.c.h.b16 %v823
        %v1449 = vunpack.c.l.b16 %v824
        %v1450 = vunpack.c.h.b16 %v824
        %v1451 = vunpack.c.l.b16 %v825
        %v1452 = vunpack.c.h.b16 %v825
        %v1453 = vunpack.c.l.b16 %v826
        %v1454 = vunpack.c.h.b16 %v826
        %v1455 = vunpack.c.l.b16 %v827
        %v1456 = vunpack.c.h.b16 %v827
        %v1457 = vunpack.c.l.b16 %v828
        %v1458 = vunpack.c.h.b16 %v828
        %v1459 = vunpack.c.l.b16 %v829
        %v1460 = vunpack.c.h.b16 %v829
        %v1461 = vunpack.c.l.b16 %v830
        %v1462 = vunpack.c.h.b16 %v830
        %v1463 = vunpack.c.l.b16 %v831
        %v1464 = vunpack.c.h.b16 %v831
        %v1465 = vunpack.c.l.b16 %v832
        %v1466 = vunpack.c.h.b16 %v832
        %v1467 = vunpack.c.l.b16 %v833
        %v1468 = vunpack.c.h.b16 %v833
        %v1469 = vunpack.c.l.b16 %v834
        %v1470 = vunpack.c.h.b16 %v834
        %v1471 = vunpack.c.l.b16 %v835
        %v1472 = vunpack.c.h.b16 %v835
        %v1473 = vunpack.c.l.b16 %v836
        %v1474 = vunpack.c.h.b16 %v836
        %v1475 = vunpack.c.l.b16 %v837
        %v1476 = vunpack.c.h.b16 %v837
        %v1477 = vunpack.c.l.b16 %v838
        %v1478 = vunpack.c.h.b16 %v838
        %v1479 = vunpack.c.l.b16 %v839
        %v1480 = vunpack.c.h.b16 %v839
        %v1481 = vunpack.c.l.b16 %v840
        %v1482 = vunpack.c.h.b16 %v840
        %v1483 = vunpack.c.l.b16 %v841
        %v1484 = vunpack.c.h.b16 %v841
        %v1485 = vunpack.c.l.b16 %v842
        %v1486 = vunpack.c.h.b16 %v842
        %v1487 = vunpack.c.l.b16 %v843
        %v1488 = vunpack.c.h.b16 %v843
        %v1489 = vunpack.c.l.b16 %v844
        %v1490 = vunpack.c.h.b16 %v844
        %v1491 = vunpack.c.l.b16 %v845
        %v1492 = vunpack.c.h.b16 %v845
        %v1493 = vunpack.c.l.b16 %v846
        %v1494 = vunpack.c.h.b16 %v846
        %v1495 = vunpack.c.l.b16 %v847
        %v1496 = vunpack.c.h.b16 %v847
        %v1497 = vunpack.c.l.b16 %v848
        %v1498 = vunpack.c.h.b16 %v848
        %v1499 = vunpack.c.l.b16 %v849
        %v1500 = vunpack.c.h.b16 %v849
        %v1501 = vunpack.c.l.b16 %v850
        %v1502 = vunpack.c.h.b16 %v850
        %v1503 = vunpack.c.l.b16 %v851
        %v1504 = vunpack.c.h.b16 %v851
        %v1505 = vunpack.c.l.b16 %v852
        %v1506 = vunpack.c.h.b16 %v852
        %v1507 = vunpack.c.l.b16 %v853
        %v1508 = vunpack.c.h.b16 %v853
        %v1509 = vunpack.c.l.b16 %v854
        %v1510 = vunpack.c.h.b16 %v854
        %v1511 = vunpack.c.l.b16 %v855
        %v1512 = vunpack.c.h.b16 %v855
        %v1513 = vunpack.c.l.b16 %v856
        %v1514 = vunpack.c.h.b16 %v856
        %v1515 = vunpack.c.l.b16 %v857
        %v1516 = vunpack.c.h.b16 %v857
        %v1517 = vunpack.c.l.b16 %v858
        %v1518 = vunpack.c.h.b16 %v858
        %v1519 = vunpack.c.l.b16 %v859
        %v1520 = vunpack.c.h.b16 %v859
        %v1521 = vunpack.c.l.b16 %v860
        %v1522 = vunpack.c.h.b16 %v860
        %v1523 = vunpack.c.l.b16 %v861
        %v1524 = vunpack.c.h.b16 %v861
        %v1525 = vunpack.c.l.b16 %v862
        %v1526 = vunpack.c.h.b16 %v862
        %v1527 = vunpack.c.l.b16 %v863
        %v1528 = vunpack.c.h.b16 %v863
        %v1529 = vunpack.c.l.b16 %v864
        %v1530 = vunpack.c.h.b16 %v864
        %v1531 = vunpack.c.l.b16 %v865
        %v1532 = vunpack.c.h.b16 %v865
        %v1533 = vunpack.c.l.b16 %v866
        %v1534 = vunpack.c.h.b16 %v866
        %v1535 = vunpack.c.l.b16 %v867
        %v1536 = vunpack.c.h.b16 %v867
        %v1537 = vunpack.c.l.b16 %v868
        %v1538 = vunpack.c.h.b16 %v868
        %v1539 = vunpack.c.l.b16 %v869
        %v1540 = vunpack.c.h.b16 %v869
        %v1541 = vunpack.c.l.b16 %v870
        %v1542 = vunpack.c.h.b16 %v870
        %v1543 = vunpack.c.l.b16 %v871
        %v1544 = vunpack.c.h.b16 %v871
        %v1545 = vunpack.c.l.b16 %v872
        %v1546 = vunpack.c.h.b16 %v872
        %v1547 = vunpack.c.l.b16 %v873
        %v1548 = vunpack.c.h.b16 %v873
        %v1549 = vunpack.c.l.b16 %v874
        %v1550 = vunpack.c.h.b16 %v874
        %v1551 = vunpack.c.l.b16 %v875
        %v1552 = vunpack.c.h.b16 %v875
        %v1553 = vunpack.c.l.b16 %v876
        %v1554 = vunpack.c.h.b16 %v876
        %v1555 = vunpack.c.l.b16 %v877
        %v1556 = vunpack.c.h.b16 %v877
        %v1557 = vunpack.c.l.b16 %v878
        %v1558 = vunpack.c.h.b16 %v878
        %v1559 = vunpack.c.l.b16 %v879
        %v1560 = vunpack.c.h.b16 %v879
        %v1561 = vunpack.c.l.b16 %v880
        %v1562 = vunpack.c.h.b16 %v880
        %v1563 = vunpack.c.l.b16 %v881
        %v1564 = vunpack.c.h.b16 %v881
        %v1565 = vunpack.c.l.b16 %v882
        %v1566 = vunpack.c.h.b16 %v882
        %v1567 = vunpack.c.l.b16 %v883
        %v1568 = vunpack.c.h.b16 %v883
        %v1569 = vunpack.c.l.b16 %v884
        %v1570 = vunpack.c.h.b16 %v884
        %v1571 = vunpack.c.l.b16 %v885
        %v1572 = vunpack.c.h.b16 %v885
        %v1573 = vunpack.c.l.b16 %v886
        %v1574 = vunpack.c.h.b16 %v886
        %v1575 = vunpack.c.l.b16 %v887
        %v1576 = vunpack.c.h.b16 %v887
        %v1577 = vunpack.c.l.b16 %v888
        %v1578 = vunpack.c.h.b16 %v888
        %v1579 = vunpack.c.l.b16 %v889
        %v1580 = vunpack.c.h.b16 %v889
        %v1581 = vunpack.c.l.b16 %v890
        %v1582 = vunpack.c.h.b16 %v890
        %v1583 = vunpack.c.l.b16 %v891
        %v1584 = vunpack.c.h.b16 %v891
        %v1585 = vunpack.c.l.b16 %v892
        %v1586 = vunpack.c.h.b16 %v892
        %v1587 = vunpack.c.l.b16 %v893
        %v1588 = vunpack.c.h.b16 %v893
        %v1589 = vunpack.c.l.b16 %v894
        %v1590 = vunpack.c.h.b16 %v894
        %v1591 = vunpack.c.l.b16 %v895
        %v1592 = vunpack.c.h.b16 %v895
        %v1593 = vunpack.c.l.b16 %v896
        %v1594 = vunpack.c.h.b16 %v896
        %v1595 = vunpack.c.l.b16 %v897
        %v1596 = vunpack.c.h.b16 %v897
        %v1597 = vunpack.c.l.b16 %v898
        %v1598 = vunpack.c.h.b16 %v898
        %v1599 = vunpack.c.l.b16 %v899
        %v1600 = vunpack.c.h.b16 %v899
        %v1601 = vunpack.c.l.b16 %v900
        %v1602 = vunpack.c.h.b16 %v900
        %v1603 = vunpack.c.l.b16 %v901
        %v1604 = vunpack.c.h.b16 %v901
        %v1605 = vunpack.c.l.b16 %v902
        %v1606 = vunpack.c.h.b16 %v902
        %v1607 = vunpack.c.l.b16 %v903
        %v1608 = vunpack.c.h.b16 %v903
        %v1609 = vunpack.c.l.b16 %v904
        %v1610 = vunpack.c.h.b16 %v904
        %v1611 = vunpack.c.l.b16 %v905
        %v1612 = vunpack.c.h.b16 %v905
        %v1613 = vunpack.c.l.b16 %v906
        %v1614 = vunpack.c.h.b16 %v906
        %v1615 = vunpack.c.l.b16 %v907
        %v1616 = vunpack.c.h.b16 %v907
        %v1617 = vunpack.c.l.b16 %v908
        %v1618 = vunpack.c.h.b16 %v908
        %v1619 = vunpack.c.l.b16 %v909
        %v1620 = vunpack.c.h.b16 %v909
        %v1621 = vunpack.c.l.b16 %v910
        %v1622 = vunpack.c.h.b16 %v910
        %v1623 = vunpack.c.l.b16 %v911
        %v1624 = vunpack.c.h.b16 %v911
        %v1625 = vunpack.c.l.b16 %v912
        %v1626 = vunpack.c.h.b16 %v912
        %v1627 = vunpack.c.l.b16 %v913
        %v1628 = vunpack.c.h.b16 %v913
        %v1629 = vunpack.c.l.b16 %v914
        %v1630 = vunpack.c.h.b16 %v914
        %v1631 = vunpack.c.l.b16 %v915
        %v1632 = vunpack.c.h.b16 %v915
        %v1633 = vunpack.c.l.b16 %v916
        %v1634 = vunpack.c.h.b16 %v916
        %v1635 = vunpack.c.l.b16 %v917
        %v1636 = vunpack.c.h.b16 %v917
        %v1637 = vunpack.c.l.b16 %v918
        %v1638 = vunpack.c.h.b16 %v918
        %v1639 = vunpack.c.l.b16 %v919
        %v1640 = vunpack.c.h.b16 %v919
        %v1641 = vunpack.c.l.b16 %v920
        %v1642 = vunpack.c.h.b16 %v920
        %v1643 = vunpack.c.l.b16 %v921
        %v1644 = vunpack.c.h.b16 %v921
        %v1645 = vunpack.c.l.b16 %v922
        %v1646 = vunpack.c.h.b16 %v922
        %v1647 = vunpack.c.l.b16 %v923
        %v1648 = vunpack.c.h.b16 %v923
        %v1649 = vunpack.c.l.b16 %v924
        %v1650 = vunpack.c.h.b16 %v924
        %v1651 = vunpack.c.l.b16 %v925
        %v1652 = vunpack.c.h.b16 %v925
        %v1653 = vunpack.c.l.b16 %v926
        %v1654 = vunpack.c.h.b16 %v926
        %v1655 = vunpack.c.l.b16 %v927
        %v1656 = vunpack.c.h.b16 %v927
        %v1657 = vunpack.c.l.b16 %v928
        %v1658 = vunpack.c.h.b16 %v928
        %v1659 = vunpack.c.l.b16 %v929
        %v1660 = vunpack.c.h.b16 %v929
        %v1661 = vunpack.c.l.b16 %v930
        %v1662 = vunpack.c.h.b16 %v930
        %v1663 = vunpack.c.l.b16 %v931
        %v1664 = vunpack.c.h.b16 %v931
        %v1665 = vunpack.c.l.b16 %v932
        %v1666 = vunpack.c.h.b16 %v932
        %v1667 = vunpack.c.l.b16 %v933
        %v1668 = vunpack.c.h.b16 %v933
        %v1669 = vunpack.c.l.b16 %v934
        %v1670 = vunpack.c.h.b16 %v934
        %v1671 = vunpack.c.l.b16 %v935
        %v1672 = vunpack.c.h.b16 %v935
        %v1673 = vunpack.c.l.b16 %v936
        %v1674 = vunpack.c.h.b16 %v936
        %v1675 = vunpack.c.l.b16 %v937
        %v1676 = vunpack.c.h.b16 %v937
        %v1677 = vunpack.c.l.b16 %v938
        %v1678 = vunpack.c.h.b16 %v938
        %v1679 = vunpack.c.l.b16 %v939
        %v1680 = vunpack.c.h.b16 %v939
        %v1681 = vunpack.c.l.b16 %v940
        %v1682 = vunpack.c.h.b16 %v940
        %v1683 = vunpack.c.l.b16 %v941
        %v1684 = vunpack.c.h.b16 %v941
        %v1685 = vunpack.c.l.b16 %v942
        %v1686 = vunpack.c.h.b16 %v942
        %v1687 = vunpack.c.l.b16 %v943
        %v1688 = vunpack.c.h.b16 %v943
        %v1689 = vunpack.c.l.b16 %v944
        %v1690 = vunpack.c.h.b16 %v944
        %v1691 = vunpack.c.l.b16 %v945
        %v1692 = vunpack.c.h.b16 %v945
        %v1693 = vunpack.c.l.b16 %v946
        %v1694 = vunpack.c.h.b16 %v946
        %v1695 = vunpack.c.l.b16 %v947
        %v1696 = vunpack.c.h.b16 %v947
        %v1697 = vunpack.c.l.b16 %v948
        %v1698 = vunpack.c.h.b16 %v948
        %v1699 = vunpack.c.l.b16 %v949
        %v1700 = vunpack.c.h.b16 %v949
        %v1701 = vunpack.c.l.b16 %v950
        %v1702 = vunpack.c.h.b16 %v950
        %v1703 = vunpack.c.l.b16 %v951
        %v1704 = vunpack.c.h.b16 %v951
        %v1705 = vunpack.c.l.b16 %v952
        %v1706 = vunpack.c.h.b16 %v952
        %v1707 = vunpack.c.l.b16 %v953
        %v1708 = vunpack.c.h.b16 %v953
        %v1709 = vunpack.c.l.b16 %v954
        %v1710 = vunpack.c.h.b16 %v954
        %v1711 = vunpack.c.l.b16 %v955
        %v1712 = vunpack.c.h.b16 %v955
        %v1713 = vunpack.c.l.b16 %v956
        %v1714 = vunpack.c.h.b16 %v956
        %v1715 = vunpack.c.l.b16 %v957
        %v1716 = vunpack.c.h.b16 %v957
        %v1717 = vunpack.c.l.b16 %v958
        %v1718 = vunpack.c.h.b16 %v958
        %v1719 = vunpack.c.l.b16 %v959
        %v1720 = vunpack.c.h.b16 %v959
        %v1721 = vunpack.c.l.b16 %v960
        %v1722 = vunpack.c.h.b16 %v960
        %v1723 = vunpack.c.l.b16 %v961
        %v1724 = vunpack.c.h.b16 %v961
        %v1725 = vunpack.c.l.b16 %v962
        %v1726 = vunpack.c.h.b16 %v962
        %v1727 = vunpack.c.l.b16 %v963
        %v1728 = vunpack.c.h.b16 %v963
        %v1729 = vunpack.c.l.b16 %v964
        %v1730 = vunpack.c.h.b16 %v964
        %v1731 = vunpack.c.l.b16 %v965
        %v1732 = vunpack.c.h.b16 %v965
        %v1733 = vunpack.c.l.b16 %v966
        %v1734 = vunpack.c.h.b16 %v966
        %v1735 = vunpack.c.l.b16 %v967
        %v1736 = vunpack.c.h.b16 %v967
        %v1737 = vunpack.c.l.b16 %v968
        %v1738 = vunpack.c.h.b16 %v968
        %v1739 = vunpack.c.l.b16 %v969
        %v1740 = vunpack.c.h.b16 %v969
        %v1741 = vunpack.c.l.b16 %v970
        %v1742 = vunpack.c.h.b16 %v970
        %v1743 = vunpack.c.l.b16 %v971
        %v1744 = vunpack.c.h.b16 %v971
        %v1745 = vunpack.c.l.b16 %v972
        %v1746 = vunpack.c.h.b16 %v972
        %v1747 = vunpack.c.l.b16 %v973
        %v1748 = vunpack.c.h.b16 %v973
        %v1749 = vunpack.c.l.b16 %v974
        %v1750 = vunpack.c.h.b16 %v974
        %v1751 = vunpack.c.l.b16 %v975
        %v1752 = vunpack.c.h.b16 %v975
        %v1753 = vunpack.c.l.b16 %v976
        %v1754 = vunpack.c.h.b16 %v976
        %v1755 = vpack.c.b16 %v1259, %v1243
        %v1756 = vpack.c.b16 %v1260, %v1244
        %v1757 = vpack.c.b16 %v1261, %v1245
        %v1758 = vpack.c.b16 %v1262, %v1246
        %v1759 = vpack.c.b16 %v1263, %v1247
        %v1760 = vpack.c.b16 %v1264, %v1248
        %v1761 = vpack.c.b16 %v1265, %v1249
        %v1762 = vpack.c.b16 %v1266, %v1250
        %v1763 = vpack.c.b16 %v1267, %v1251
        %v1764 = vpack.c.b16 %v1268, %v1252
        %v1765 = vpack.c.b16 %v1269, %v1253
        %v1766 = vpack.c.b16 %v1270, %v1254
        %v1767 = vpack.c.b16 %v1271, %v1255
        %v1768 = vpack.c.b16 %v1272, %v1256
        %v1769 = vpack.c.b16 %v1273, %v1257
        %v1770 = vpack.c.b16 %v1274, %v1258
        %v1771 = vpack.c.b16 %v1291, %v1275
        %v1772 = vpack.c.b16 %v1292, %v1276
        %v1773 = vpack.c.b16 %v1293, %v1277
        %v1774 = vpack.c.b16 %v1294, %v1278
        %v1775 = vpack.c.b16 %v1295, %v1279
        %v1776 = vpack.c.b16 %v1296, %v1280
        %v1777 = vpack.c.b16 %v1297, %v1281
        %v1778 = vpack.c.b16 %v1298, %v1282
        %v1779 = vpack.c.b16 %v1299, %v1283
        %v1780 = vpack.c.b16 %v1300, %v1284
        %v1781 = vpack.c.b16 %v1301, %v1285
        %v1782 = vpack.c.b16 %v1302, %v1286
        %v1783 = vpack.c.b16 %v1303, %v1287
        %v1784 = vpack.c.b16 %v1304, %v1288
        %v1785 = vpack.c.b16 %v1305, %v1289
        %v1786 = vpack.c.b16 %v1306, %v1290
        %v1787 = vpack.c.b16 %v1323, %v1307
        %v1788 = vpack.c.b16 %v1324, %v1308
        %v1789 = vpack.c.b16 %v1325, %v1309
        %v1790 = vpack.c.b16 %v1326, %v1310
        %v1791 = vpack.c.b16 %v1327, %v1311
        %v1792 = vpack.c.b16 %v1328, %v1312
        %v1793 = vpack.c.b16 %v1329, %v1313
        %v1794 = vpack.c.b16 %v1330, %v1314
        %v1795 = vpack.c.b16 %v1331, %v1315
        %v1796 = vpack.c.b16 %v1332, %v1316
        %v1797 = vpack.c.b16 %v1333, %v1317
        %v1798 = vpack.c.b16 %v1334, %v1318
        %v1799 = vpack.c.b16 %v1335, %v1319
        %v1800 = vpack.c.b16 %v1336, %v1320
        %v1801 = vpack.c.b16 %v1337, %v1321
        %v1802 = vpack.c.b16 %v1338, %v1322
        %v1803 = vpack.c.b16 %v1355, %v1339
        %v1804 = vpack.c.b16 %v1356, %v1340
        %v1805 = vpack.c.b16 %v1357, %v1341
        %v1806 = vpack.c.b16 %v1358, %v1342
        %v1807 = vpack.c.b16 %v1359, %v1343
        %v1808 = vpack.c.b16 %v1360, %v1344
        %v1809 = vpack.c.b16 %v1361, %v1345
        %v1810 = vpack.c.b16 %v1362, %v1346
        %v1811 = vpack.c.b16 %v1363, %v1347
        %v1812 = vpack.c.b16 %v1364, %v1348
        %v1813 = vpack.c.b16 %v1365, %v1349
        %v1814 = vpack.c.b16 %v1366, %v1350
        %v1815 = vpack.c.b16 %v1367, %v1351
        %v1816 = vpack.c.b16 %v1368, %v1352
        %v1817 = vpack.c.b16 %v1369, %v1353
        %v1818 = vpack.c.b16 %v1370, %v1354
        %v1819 = vpack.c.b16 %v1387, %v1371
        %v1820 = vpack.c.b16 %v1388, %v1372
        %v1821 = vpack.c.b16 %v1389, %v1373
        %v1822 = vpack.c.b16 %v1390, %v1374
        %v1823 = vpack.c.b16 %v1391, %v1375
        %v1824 = vpack.c.b16 %v1392, %v1376
        %v1825 = vpack.c.b16 %v1393, %v1377
        %v1826 = vpack.c.b16 %v1394, %v1378
        %v1827 = vpack.c.b16 %v1395, %v1379
        %v1828 = vpack.c.b16 %v1396, %v1380
        %v1829 = vpack.c.b16 %v1397, %v1381
        %v1830 = vpack.c.b16 %v1398, %v1382
        %v1831 = vpack.c.b16 %v1399, %v1383
        %v1832 = vpack.c.b16 %v1400, %v1384
        %v1833 = vpack.c.b16 %v1401, %v1385
        %v1834 = vpack.c.b16 %v1402, %v1386
        %v1835 = vpack.c.b16 %v1419, %v1403
        %v1836 = vpack.c.b16 %v1420, %v1404
        %v1837 = vpack.c.b16 %v1421, %v1405
        %v1838 = vpack.c.b16 %v1422, %v1406
        %v1839 = vpack.c.b16 %v1423, %v1407
        %v1840 = vpack.c.b16 %v1424, %v1408
        %v1841 = vpack.c.b16 %v1425, %v1409
        %v1842 = vpack.c.b16 %v1426, %v1410
        %v1843 = vpack.c.b16 %v1427, %v1411
        %v1844 = vpack.c.b16 %v1428, %v1412
        %v1845 = vpack.c.b16 %v1429, %v1413
        %v1846 = vpack.c.b16 %v1430, %v1414
        %v1847 = vpack.c.b16 %v1431, %v1415
        %v1848 = vpack.c.b16 %v1432, %v1416
        %v1849 = vpack.c.b16 %v1433, %v1417
        %v1850 = vpack.c.b16 %v1434, %v1418
        %v1851 = vpack.c.b16 %v1451, %v1435
        %v1852 = vpack.c.b16 %v1452, %v1436
        %v1853 = vpack.c.b16 %v1453, %v1437
        %v1854 = vpack.c.b16 %v1454, %v1438
        %v1855 = vpack.c.b16 %v1455, %v1439
        %v1856 = vpack.c.b16 %v1456, %v1440
        %v1857 = vpack.c.b16 %v1457, %v1441
        %v1858 = vpack.c.b16 %v1458, %v1442
        %v1859 = vpack.c.b16 %v1459, %v1443
        %v1860 = vpack.c.b16 %v1460, %v1444
        %v1861 = vpack.c.b16 %v1461, %v1445
        %v1862 = vpack.c.b16 %v1462, %v1446
        %v1863 = vpack.c.b16 %v1463, %v1447
        %v1864 = vpack.c.b16 %v1464, %v1448
        %v1865 = vpack.c.b16 %v1465, %v1449
        %v1866 = vpack.c.b16 %v1466, %v1450
        %v1867 = vpack.c.b16 %v1483, %v1467
        %v1868 = vpack.c.b16 %v1484, %v1468
        %v1869 = vpack.c.b16 %v1485, %v1469
        %v1870 = vpack.c.b16 %v1486, %v1470
        %v1871 = vpack.c.b16 %v1487, %v1471
        %v1872 = vpack.c.b16 %v1488, %v1472
        %v1873 = vpack.c.b16 %v1489, %v1473
        %v1874 = vpack.c.b16 %v1490, %v1474
        %v1875 = vpack.c.b16 %v1491, %v1475
        %v1876 = vpack.c.b16 %v1492, %v1476
        %v1877 = vpack.c.b16 %v1493, %v1477
        %v1878 = vpack.c.b16 %v1494, %v1478
        %v1879 = vpack.c.b16 %v1495, %v1479
        %v1880 = vpack.c.b16 %v1496, %v1480
        %v1881 = vpack.c.b16 %v1497, %v1481
        %v1882 = vpack.c.b16 %v1498, %v1482
        %v1883 = vpack.c.b16 %v1515, %v1499
        %v1884 = vpack.c.b16 %v1516, %v1500
        %v1885 = vpack.c.b16 %v1517, %v1501
        %v1886 = vpack.c.b16 %v1518, %v1502
        %v1887 = vpack.c.b16 %v1519, %v1503
        %v1888 = vpack.c.b16 %v1520, %v1504
        %v1889 = vpack.c.b16 %v1521, %v1505
        %v1890 = vpack.c.b16 %v1522, %v1506
        %v1891 = vpack.c.b16 %v1523, %v1507
        %v1892 = vpack.c.b16 %v1524, %v1508
        %v1893 = vpack.c.b16 %v1525, %v1509
        %v1894 = vpack.c.b16 %v1526, %v1510
        %v1895 = vpack.c.b16 %v1527, %v1511
        %v1896 = vpack.c.b16 %v1528, %v1512
        %v1897 = vpack.c.b16 %v1529, %v1513
        %v1898 = vpack.c.b16 %v1530, %v1514
        %v1899 = vpack.c.b16 %v1547, %v1531
        %v1900 = vpack.c.b16 %v1548, %v1532
        %v1901 = vpack.c.b16 %v1549, %v1533
        %v1902 = vpack.c.b16 %v1550, %v1534
        %v1903 = vpack.c.b16 %v1551, %v1535
        %v1904 = vpack.c.b16 %v1552, %v1536
        %v1905 = vpack.c.b16 %v1553, %v1537
        %v1906 = vpack.c.b16 %v1554, %v1538
        %v1907 = vpack.c.b16 %v1555, %v1539
        %v1908 = vpack.c.b16 %v1556, %v1540
        %v1909 = vpack.c.b16 %v1557, %v1541
        %v1910 = vpack.c.b16 %v1558, %v1542
        %v1911 = vpack.c.b16 %v1559, %v1543
        %v1912 = vpack.c.b16 %v1560, %v1544
        %v1913 = vpack.c.b16 %v1561, %v1545
        %v1914 = vpack.c.b16 %v1562, %v1546
        %v1915 = vpack.c.b16 %v1579, %v1563
        %v1916 = vpack.c.b16 %v1580, %v1564
        %v1917 = vpack.c.b16 %v1581, %v1565
        %v1918 = vpack.c.b16 %v1582, %v1566
        %v1919 = vpack.c.b16 %v1583, %v1567
        %v1920 = vpack.c.b16 %v1584, %v1568
        %v1921 = vpack.c.b16 %v1585, %v1569
        %v1922 = vpack.c.b16 %v1586, %v1570
        %v1923 = vpack.c.b16 %v1587, %v1571
        %v1924 = vpack.c.b16 %v1588, %v1572
        %v1925 = vpack.c.b16 %v1589, %v1573
        %v1926 = vpack.c.b16 %v1590, %v1574
        %v1927 = vpack.c.b16 %v1591, %v1575
        %v1928 = vpack.c.b16 %v1592, %v1576
        %v1929 = vpack.c.b16 %v1593, %v1577
        %v1930 = vpack.c.b16 %v1594, %v1578
        %v1931 = vpack.c.b16 %v1611, %v1595
        %v1932 = vpack.c.b16 %v1612, %v1596
        %v1933 = vpack.c.b16 %v1613, %v1597
        %v1934 = vpack.c.b16 %v1614, %v1598
        %v1935 = vpack.c.b16 %v1615, %v1599
        %v1936 = vpack.c.b16 %v1616, %v1600
        %v1937 = vpack.c.b16 %v1617, %v1601
        %v1938 = vpack.c.b16 %v1618, %v1602
        %v1939 = vpack.c.b16 %v1619, %v1603
        %v1940 = vpack.c.b16 %v1620, %v1604
        %v1941 = vpack.c.b16 %v1621, %v1605
        %v1942 = vpack.c.b16 %v1622, %v1606
        %v1943 = vpack.c.b16 %v1623, %v1607
        %v1944 = vpack.c.b16 %v1624, %v1608
        %v1945 = vpack.c.b16 %v1625, %v1609
        %v1946 = vpack.c.b16 %v1626, %v1610
        %v1947 = vpack.c.b16 %v1643, %v1627
        %v1948 = vpack.c.b16 %v1644, %v1628
        %v1949 = vpack.c.b16 %v1645, %v1629
        %v1950 = vpack.c.b16 %v1646, %v1630
        %v1951 = vpack.c.b16 %v1647, %v1631
        %v1952 = vpack.c.b16 %v1648, %v1632
        %v1953 = vpack.c.b16 %v1649, %v1633
        %v1954 = vpack.c.b16 %v1650, %v1634
        %v1955 = vpack.c.b16 %v1651, %v1635
        %v1956 = vpack.c.b16 %v1652, %v1636
        %v1957 = vpack.c.b16 %v1653, %v1637
        %v1958 = vpack.c.b16 %v1654, %v1638
        %v1959 = vpack.c.b16 %v1655, %v1639
        %v1960 = vpack.c.b16 %v1656, %v1640
        %v1961 = vpack.c.b16 %v1657, %v1641
        %v1962 = vpack.c.b16 %v1658, %v1642
        %v1963 = vpack.c.b16 %v1675, %v1659
        %v1964 = vpack.c.b16 %v1676, %v1660
        %v1965 = vpack.c.b16 %v1677, %v1661
        %v1966 = vpack.c.b16 %v1678, %v1662
        %v1967 = vpack.c.b16 %v1679, %v1663
        %v1968 = vpack.c.b16 %v1680, %v1664
        %v1969 = vpack.c.b16 %v1681, %v1665
        %v1970 = vpack.c.b16 %v1682, %v1666
        %v1971 = vpack.c.b16 %v1683, %v1667
        %v1972 = vpack.c.b16 %v1684, %v1668
        %v1973 = vpack.c.b16 %v1685, %v1669
        %v1974 = vpack.c.b16 %v1686, %v1670
        %v1975 = vpack.c.b16 %v1687, %v1671
        %v1976 = vpack.c.b16 %v1688, %v1672
        %v1977 = vpack.c.b16 %v1689, %v1673
        %v1978 = vpack.c.b16 %v1690, %v1674
        %v1979 = vpack.c.b16 %v1707, %v1691
        %v1980 = vpack.c.b16 %v1708, %v1692
        %v1981 = vpack.c.b16 %v1709, %v1693
        %v1982 = vpack.c.b16 %v1710, %v1694
        %v1983 = vpack.c.b16 %v1711, %v1695
        %v1984 = vpack.c.b16 %v1712, %v1696
        %v1985 = vpack.c.b16 %v1713, %v1697
        %v1986 = vpack.c.b16 %v1714, %v1698
        %v1987 = vpack.c.b16 %v1715, %v1699
        %v1988 = vpack.c.b16 %v1716, %v1700
        %v1989 = vpack.c.b16 %v1717, %v1701
        %v1990 = vpack.c.b16 %v1718, %v1702
        %v1991 = vpack.c.b16 %v1719, %v1703
        %v1992 = vpack.c.b16 %v1720, %v1704
        %v1993 = vpack.c.b16 %v1721, %v1705
        %v1994 = vpack.c.b16 %v1722, %v1706
        %v1995 = vpack.c.b16 %v1739, %v1723
        %v1996 = vpack.c.b16 %v1740, %v1724
        %v1997 = vpack.c.b16 %v1741, %v1725
        %v1998 = vpack.c.b16 %v1742, %v1726
        %v1999 = vpack.c.b16 %v1743, %v1727
        %v2000 = vpack.c.b16 %v1744, %v1728
        %v2001 = vpack.c.b16 %v1745, %v1729
        %v2002 = vpack.c.b16 %v1746, %v1730
        %v2003 = vpack.c.b16 %v1747, %v1731
        %v2004 = vpack.c.b16 %v1748, %v1732
        %v2005 = vpack.c.b16 %v1749, %v1733
        %v2006 = vpack.c.b16 %v1750, %v1734
        %v2007 = vpack.c.b16 %v1751, %v1735
        %v2008 = vpack.c.b16 %v1752, %v1736
        %v2009 = vpack.c.b16 %v1753, %v1737
        %v2010 = vpack.c.b16 %v1754, %v1738
        %2267 = vmatpush.bf16.msra.mxu0 %v1867
        %2268 = vmatpush.bf16.msra.mxu0 %v1851
        %2269 = vmatpush.bf16.msra.mxu0 %v1835
        %2270 = vmatpush.bf16.msra.mxu0 %v1819
        %2271 = vmatpush.bf16.msra.mxu0 %v1803
        %2272 = vmatpush.bf16.msra.mxu0 %v1787
        %2273 = vmatpush.bf16.msra.mxu0 %v1771
        %2274 = vmatpush.bf16.msra.mxu0 %v1755
        %2275 = vmatmul.bf16.gmra.mxu0 %v983
        %v2276 = vpop.f32.mrf.mxu0
        %v2277 = vadd.f32 0.0, %v2276
        %v2278 = vpop.f32.mrf.mxu0
        %v2279 = vadd.f32 0.0, %v2278
        %2280 = vdwg.mxu0
        %2281 = vmatpush.bf16.msra.mxu0 %v1995
        %2282 = vmatpush.bf16.msra.mxu0 %v1979
        %2283 = vmatpush.bf16.msra.mxu0 %v1963
        %2284 = vmatpush.bf16.msra.mxu0 %v1947
        %2285 = vmatpush.bf16.msra.mxu0 %v1931
        %2286 = vmatpush.bf16.msra.mxu0 %v1915
        %2287 = vmatpush.bf16.msra.mxu0 %v1899
        %2288 = vmatpush.bf16.msra.mxu0 %v1883
        %2289 = vmatmul.bf16.gmra.mxu0 %v984
        %v2290 = vpop.f32.mrf.mxu0
        %v2291 = vadd.f32 %v2277, %v2290
        %v2292 = vpop.f32.mrf.mxu0
        %v2293 = vadd.f32 %v2279, %v2292
        %2294 = vdwg.mxu0
        %2295 = vmatpush.bf16.msra.mxu0 %v1868
        %2296 = vmatpush.bf16.msra.mxu0 %v1852
        %2297 = vmatpush.bf16.msra.mxu0 %v1836
        %2298 = vmatpush.bf16.msra.mxu0 %v1820
        %2299 = vmatpush.bf16.msra.mxu0 %v1804
        %2300 = vmatpush.bf16.msra.mxu0 %v1788
        %2301 = vmatpush.bf16.msra.mxu0 %v1772
        %2302 = vmatpush.bf16.msra.mxu0 %v1756
        %2303 = vmatmul.bf16.gmra.mxu0 %v983
        %v2304 = vpop.f32.mrf.mxu0
        %v2305 = vadd.f32 0.0, %v2304
        %v2306 = vpop.f32.mrf.mxu0
        %v2307 = vadd.f32 0.0, %v2306
        %2308 = vdwg.mxu0
        %2309 = vmatpush.bf16.msra.mxu0 %v1996
        %2310 = vmatpush.bf16.msra.mxu0 %v1980
        %2311 = vmatpush.bf16.msra.mxu0 %v1964
        %2312 = vmatpush.bf16.msra.mxu0 %v1948
        %2313 = vmatpush.bf16.msra.mxu0 %v1932
        %2314 = vmatpush.bf16.msra.mxu0 %v1916
        %2315 = vmatpush.bf16.msra.mxu0 %v1900
        %2316 = vmatpush.bf16.msra.mxu0 %v1884
        %2317 = vmatmul.bf16.gmra.mxu0 %v984
        %v2318 = vpop.f32.mrf.mxu0
        %v2319 = vadd.f32 %v2305, %v2318
        %v2320 = vpop.f32.mrf.mxu0
        %v2321 = vadd.f32 %v2307, %v2320
        %2322 = vdwg.mxu0
        %2323 = vmatpush.bf16.msra.mxu0 %v1869
        %2324 = vmatpush.bf16.msra.mxu0 %v1853
        %2325 = vmatpush.bf16.msra.mxu0 %v1837
        %2326 = vmatpush.bf16.msra.mxu0 %v1821
        %2327 = vmatpush.bf16.msra.mxu0 %v1805
        %2328 = vmatpush.bf16.msra.mxu0 %v1789
        %2329 = vmatpush.bf16.msra.mxu0 %v1773
        %2330 = vmatpush.bf16.msra.mxu0 %v1757
        %2331 = vmatmul.bf16.gmra.mxu0 %v983
        %v2332 = vpop.f32.mrf.mxu0
        %v2333 = vadd.f32 0.0, %v2332
        %v2334 = vpop.f32.mrf.mxu0
        %v2335 = vadd.f32 0.0, %v2334
        %2336 = vdwg.mxu0
        %2337 = vmatpush.bf16.msra.mxu0 %v1997
        %2338 = vmatpush.bf16.msra.mxu0 %v1981
        %2339 = vmatpush.bf16.msra.mxu0 %v1965
        %2340 = vmatpush.bf16.msra.mxu0 %v1949
        %2341 = vmatpush.bf16.msra.mxu0 %v1933
        %2342 = vmatpush.bf16.msra.mxu0 %v1917
        %2343 = vmatpush.bf16.msra.mxu0 %v1901
        %2344 = vmatpush.bf16.msra.mxu0 %v1885
        %2345 = vmatmul.bf16.gmra.mxu0 %v984
        %v2346 = vpop.f32.mrf.mxu0
        %v2347 = vadd.f32 %v2333, %v2346
        %v2348 = vpop.f32.mrf.mxu0
        %v2349 = vadd.f32 %v2335, %v2348
        %2350 = vdwg.mxu0
        %2351 = vmatpush.bf16.msra.mxu0 %v1870
        %2352 = vmatpush.bf16.msra.mxu0 %v1854
        %2353 = vmatpush.bf16.msra.mxu0 %v1838
        %2354 = vmatpush.bf16.msra.mxu0 %v1822
        %2355 = vmatpush.bf16.msra.mxu0 %v1806
        %2356 = vmatpush.bf16.msra.mxu0 %v1790
        %2357 = vmatpush.bf16.msra.mxu0 %v1774
        %2358 = vmatpush.bf16.msra.mxu0 %v1758
        %2359 = vmatmul.bf16.gmra.mxu0 %v983
        %v2360 = vpop.f32.mrf.mxu0
        %v2361 = vadd.f32 0.0, %v2360
        %v2362 = vpop.f32.mrf.mxu0
        %v2363 = vadd.f32 0.0, %v2362
        %2364 = vdwg.mxu0
        %2365 = vmatpush.bf16.msra.mxu0 %v1998
        %2366 = vmatpush.bf16.msra.mxu0 %v1982
        %2367 = vmatpush.bf16.msra.mxu0 %v1966
        %2368 = vmatpush.bf16.msra.mxu0 %v1950
        %2369 = vmatpush.bf16.msra.mxu0 %v1934
        %2370 = vmatpush.bf16.msra.mxu0 %v1918
        %2371 = vmatpush.bf16.msra.mxu0 %v1902
        %2372 = vmatpush.bf16.msra.mxu0 %v1886
        %2373 = vmatmul.bf16.gmra.mxu0 %v984
        %v2374 = vpop.f32.mrf.mxu0
        %v2375 = vadd.f32 %v2361, %v2374
        %v2376 = vpop.f32.mrf.mxu0
        %v2377 = vadd.f32 %v2363, %v2376
        %2378 = vdwg.mxu0
        %2379 = vmatpush.bf16.msra.mxu0 %v1871
        %2380 = vmatpush.bf16.msra.mxu0 %v1855
        %2381 = vmatpush.bf16.msra.mxu0 %v1839
        %2382 = vmatpush.bf16.msra.mxu0 %v1823
        %2383 = vmatpush.bf16.msra.mxu0 %v1807
        %2384 = vmatpush.bf16.msra.mxu0 %v1791
        %2385 = vmatpush.bf16.msra.mxu0 %v1775
        %2386 = vmatpush.bf16.msra.mxu0 %v1759
        %2387 = vmatmul.bf16.gmra.mxu0 %v983
        %v2388 = vpop.f32.mrf.mxu0
        %v2389 = vadd.f32 0.0, %v2388
        %v2390 = vpop.f32.mrf.mxu0
        %v2391 = vadd.f32 0.0, %v2390
        %2392 = vdwg.mxu0
        %2393 = vmatpush.bf16.msra.mxu0 %v1999
        %2394 = vmatpush.bf16.msra.mxu0 %v1983
        %2395 = vmatpush.bf16.msra.mxu0 %v1967
        %2396 = vmatpush.bf16.msra.mxu0 %v1951
        %2397 = vmatpush.bf16.msra.mxu0 %v1935
        %2398 = vmatpush.bf16.msra.mxu0 %v1919
        %2399 = vmatpush.bf16.msra.mxu0 %v1903
        %2400 = vmatpush.bf16.msra.mxu0 %v1887
        %2401 = vmatmul.bf16.gmra.mxu0 %v984
        %v2402 = vpop.f32.mrf.mxu0
        %v2403 = vadd.f32 %v2389, %v2402
        %v2404 = vpop.f32.mrf.mxu0
        %v2405 = vadd.f32 %v2391, %v2404
        %2406 = vdwg.mxu0
        %2407 = vmatpush.bf16.msra.mxu0 %v1872
        %2408 = vmatpush.bf16.msra.mxu0 %v1856
        %2409 = vmatpush.bf16.msra.mxu0 %v1840
        %2410 = vmatpush.bf16.msra.mxu0 %v1824
        %2411 = vmatpush.bf16.msra.mxu0 %v1808
        %2412 = vmatpush.bf16.msra.mxu0 %v1792
        %2413 = vmatpush.bf16.msra.mxu0 %v1776
        %2414 = vmatpush.bf16.msra.mxu0 %v1760
        %2415 = vmatmul.bf16.gmra.mxu0 %v983
        %v2416 = vpop.f32.mrf.mxu0
        %v2417 = vadd.f32 0.0, %v2416
        %v2418 = vpop.f32.mrf.mxu0
        %v2419 = vadd.f32 0.0, %v2418
        %2420 = vdwg.mxu0
        %2421 = vmatpush.bf16.msra.mxu0 %v2000
        %2422 = vmatpush.bf16.msra.mxu0 %v1984
        %2423 = vmatpush.bf16.msra.mxu0 %v1968
        %2424 = vmatpush.bf16.msra.mxu0 %v1952
        %2425 = vmatpush.bf16.msra.mxu0 %v1936
        %2426 = vmatpush.bf16.msra.mxu0 %v1920
        %2427 = vmatpush.bf16.msra.mxu0 %v1904
        %2428 = vmatpush.bf16.msra.mxu0 %v1888
        %2429 = vmatmul.bf16.gmra.mxu0 %v984
        %v2430 = vpop.f32.mrf.mxu0
        %v2431 = vadd.f32 %v2417, %v2430
        %v2432 = vpop.f32.mrf.mxu0
        %v2433 = vadd.f32 %v2419, %v2432
        %2434 = vdwg.mxu0
        %2435 = vmatpush.bf16.msra.mxu0 %v1873
        %2436 = vmatpush.bf16.msra.mxu0 %v1857
        %2437 = vmatpush.bf16.msra.mxu0 %v1841
        %2438 = vmatpush.bf16.msra.mxu0 %v1825
        %2439 = vmatpush.bf16.msra.mxu0 %v1809
        %2440 = vmatpush.bf16.msra.mxu0 %v1793
        %2441 = vmatpush.bf16.msra.mxu0 %v1777
        %2442 = vmatpush.bf16.msra.mxu0 %v1761
        %2443 = vmatmul.bf16.gmra.mxu0 %v983
        %v2444 = vpop.f32.mrf.mxu0
        %v2445 = vadd.f32 0.0, %v2444
        %v2446 = vpop.f32.mrf.mxu0
        %v2447 = vadd.f32 0.0, %v2446
        %2448 = vdwg.mxu0
        %2449 = vmatpush.bf16.msra.mxu0 %v2001
        %2450 = vmatpush.bf16.msra.mxu0 %v1985
        %2451 = vmatpush.bf16.msra.mxu0 %v1969
        %2452 = vmatpush.bf16.msra.mxu0 %v1953
        %2453 = vmatpush.bf16.msra.mxu0 %v1937
        %2454 = vmatpush.bf16.msra.mxu0 %v1921
        %2455 = vmatpush.bf16.msra.mxu0 %v1905
        %2456 = vmatpush.bf16.msra.mxu0 %v1889
        %2457 = vmatmul.bf16.gmra.mxu0 %v984
        %v2458 = vpop.f32.mrf.mxu0
        %v2459 = vadd.f32 %v2445, %v2458
        %v2460 = vpop.f32.mrf.mxu0
        %v2461 = vadd.f32 %v2447, %v2460
        %2462 = vdwg.mxu0
        %2463 = vmatpush.bf16.msra.mxu0 %v1874
        %2464 = vmatpush.bf16.msra.mxu0 %v1858
        %2465 = vmatpush.bf16.msra.mxu0 %v1842
        %2466 = vmatpush.bf16.msra.mxu0 %v1826
        %2467 = vmatpush.bf16.msra.mxu0 %v1810
        %2468 = vmatpush.bf16.msra.mxu0 %v1794
        %2469 = vmatpush.bf16.msra.mxu0 %v1778
        %2470 = vmatpush.bf16.msra.mxu0 %v1762
        %2471 = vmatmul.bf16.gmra.mxu0 %v983
        %v2472 = vpop.f32.mrf.mxu0
        %v2473 = vadd.f32 0.0, %v2472
        %v2474 = vpop.f32.mrf.mxu0
        %v2475 = vadd.f32 0.0, %v2474
        %2476 = vdwg.mxu0
        %2477 = vmatpush.bf16.msra.mxu0 %v2002
        %2478 = vmatpush.bf16.msra.mxu0 %v1986
        %2479 = vmatpush.bf16.msra.mxu0 %v1970
        %2480 = vmatpush.bf16.msra.mxu0 %v1954
        %2481 = vmatpush.bf16.msra.mxu0 %v1938
        %2482 = vmatpush.bf16.msra.mxu0 %v1922
        %2483 = vmatpush.bf16.msra.mxu0 %v1906
        %2484 = vmatpush.bf16.msra.mxu0 %v1890
        %2485 = vmatmul.bf16.gmra.mxu0 %v984
        %v2486 = vpop.f32.mrf.mxu0
        %v2487 = vadd.f32 %v2473, %v2486
        %v2488 = vpop.f32.mrf.mxu0
        %v2489 = vadd.f32 %v2475, %v2488
        %2490 = vdwg.mxu0
        %2491 = vmatpush.bf16.msra.mxu0 %v1875
        %2492 = vmatpush.bf16.msra.mxu0 %v1859
        %2493 = vmatpush.bf16.msra.mxu0 %v1843
        %2494 = vmatpush.bf16.msra.mxu0 %v1827
        %2495 = vmatpush.bf16.msra.mxu0 %v1811
        %2496 = vmatpush.bf16.msra.mxu0 %v1795
        %2497 = vmatpush.bf16.msra.mxu0 %v1779
        %2498 = vmatpush.bf16.msra.mxu0 %v1763
        %2499 = vmatmul.bf16.gmra.mxu0 %v983
        %v2500 = vpop.f32.mrf.mxu0
        %v2501 = vadd.f32 0.0, %v2500
        %v2502 = vpop.f32.mrf.mxu0
        %v2503 = vadd.f32 0.0, %v2502
        %2504 = vdwg.mxu0
        %2505 = vmatpush.bf16.msra.mxu0 %v2003
        %2506 = vmatpush.bf16.msra.mxu0 %v1987
        %2507 = vmatpush.bf16.msra.mxu0 %v1971
        %2508 = vmatpush.bf16.msra.mxu0 %v1955
        %2509 = vmatpush.bf16.msra.mxu0 %v1939
        %2510 = vmatpush.bf16.msra.mxu0 %v1923
        %2511 = vmatpush.bf16.msra.mxu0 %v1907
        %2512 = vmatpush.bf16.msra.mxu0 %v1891
        %2513 = vmatmul.bf16.gmra.mxu0 %v984
        %v2514 = vpop.f32.mrf.mxu0
        %v2515 = vadd.f32 %v2501, %v2514
        %v2516 = vpop.f32.mrf.mxu0
        %v2517 = vadd.f32 %v2503, %v2516
        %2518 = vdwg.mxu0
        %2519 = vmatpush.bf16.msra.mxu0 %v1876
        %2520 = vmatpush.bf16.msra.mxu0 %v1860
        %2521 = vmatpush.bf16.msra.mxu0 %v1844
        %2522 = vmatpush.bf16.msra.mxu0 %v1828
        %2523 = vmatpush.bf16.msra.mxu0 %v1812
        %2524 = vmatpush.bf16.msra.mxu0 %v1796
        %2525 = vmatpush.bf16.msra.mxu0 %v1780
        %2526 = vmatpush.bf16.msra.mxu0 %v1764
        %2527 = vmatmul.bf16.gmra.mxu0 %v983
        %v2528 = vpop.f32.mrf.mxu0
        %v2529 = vadd.f32 0.0, %v2528
        %v2530 = vpop.f32.mrf.mxu0
        %v2531 = vadd.f32 0.0, %v2530
        %2532 = vdwg.mxu0
        %2533 = vmatpush.bf16.msra.mxu0 %v2004
        %2534 = vmatpush.bf16.msra.mxu0 %v1988
        %2535 = vmatpush.bf16.msra.mxu0 %v1972
        %2536 = vmatpush.bf16.msra.mxu0 %v1956
        %2537 = vmatpush.bf16.msra.mxu0 %v1940
        %2538 = vmatpush.bf16.msra.mxu0 %v1924
        %2539 = vmatpush.bf16.msra.mxu0 %v1908
        %2540 = vmatpush.bf16.msra.mxu0 %v1892
        %2541 = vmatmul.bf16.gmra.mxu0 %v984
        %v2542 = vpop.f32.mrf.mxu0
        %v2543 = vadd.f32 %v2529, %v2542
        %v2544 = vpop.f32.mrf.mxu0
        %v2545 = vadd.f32 %v2531, %v2544
        %2546 = vdwg.mxu0
        %2547 = vmatpush.bf16.msra.mxu0 %v1877
        %2548 = vmatpush.bf16.msra.mxu0 %v1861
        %2549 = vmatpush.bf16.msra.mxu0 %v1845
        %2550 = vmatpush.bf16.msra.mxu0 %v1829
        %2551 = vmatpush.bf16.msra.mxu0 %v1813
        %2552 = vmatpush.bf16.msra.mxu0 %v1797
        %2553 = vmatpush.bf16.msra.mxu0 %v1781
        %2554 = vmatpush.bf16.msra.mxu0 %v1765
        %2555 = vmatmul.bf16.gmra.mxu0 %v983
        %v2556 = vpop.f32.mrf.mxu0
        %v2557 = vadd.f32 0.0, %v2556
        %v2558 = vpop.f32.mrf.mxu0
        %v2559 = vadd.f32 0.0, %v2558
        %2560 = vdwg.mxu0
        %2561 = vmatpush.bf16.msra.mxu0 %v2005
        %2562 = vmatpush.bf16.msra.mxu0 %v1989
        %2563 = vmatpush.bf16.msra.mxu0 %v1973
        %2564 = vmatpush.bf16.msra.mxu0 %v1957
        %2565 = vmatpush.bf16.msra.mxu0 %v1941
        %2566 = vmatpush.bf16.msra.mxu0 %v1925
        %2567 = vmatpush.bf16.msra.mxu0 %v1909
        %2568 = vmatpush.bf16.msra.mxu0 %v1893
        %2569 = vmatmul.bf16.gmra.mxu0 %v984
        %v2570 = vpop.f32.mrf.mxu0
        %v2571 = vadd.f32 %v2557, %v2570
        %v2572 = vpop.f32.mrf.mxu0
        %v2573 = vadd.f32 %v2559, %v2572
        %2574 = vdwg.mxu0
        %2575 = vmatpush.bf16.msra.mxu0 %v1878
        %2576 = vmatpush.bf16.msra.mxu0 %v1862
        %2577 = vmatpush.bf16.msra.mxu0 %v1846
        %2578 = vmatpush.bf16.msra.mxu0 %v1830
        %2579 = vmatpush.bf16.msra.mxu0 %v1814
        %2580 = vmatpush.bf16.msra.mxu0 %v1798
        %2581 = vmatpush.bf16.msra.mxu0 %v1782
        %2582 = vmatpush.bf16.msra.mxu0 %v1766
        %2583 = vmatmul.bf16.gmra.mxu0 %v983
        %v2584 = vpop.f32.mrf.mxu0
        %v2585 = vadd.f32 0.0, %v2584
        %v2586 = vpop.f32.mrf.mxu0
        %v2587 = vadd.f32 0.0, %v2586
        %2588 = vdwg.mxu0
        %2589 = vmatpush.bf16.msra.mxu0 %v2006
        %2590 = vmatpush.bf16.msra.mxu0 %v1990
        %2591 = vmatpush.bf16.msra.mxu0 %v1974
        %2592 = vmatpush.bf16.msra.mxu0 %v1958
        %2593 = vmatpush.bf16.msra.mxu0 %v1942
        %2594 = vmatpush.bf16.msra.mxu0 %v1926
        %2595 = vmatpush.bf16.msra.mxu0 %v1910
        %2596 = vmatpush.bf16.msra.mxu0 %v1894
        %2597 = vmatmul.bf16.gmra.mxu0 %v984
        %v2598 = vpop.f32.mrf.mxu0
        %v2599 = vadd.f32 %v2585, %v2598
        %v2600 = vpop.f32.mrf.mxu0
        %v2601 = vadd.f32 %v2587, %v2600
        %2602 = vdwg.mxu0
        %2603 = vmatpush.bf16.msra.mxu0 %v1879
        %2604 = vmatpush.bf16.msra.mxu0 %v1863
        %2605 = vmatpush.bf16.msra.mxu0 %v1847
        %2606 = vmatpush.bf16.msra.mxu0 %v1831
        %2607 = vmatpush.bf16.msra.mxu0 %v1815
        %2608 = vmatpush.bf16.msra.mxu0 %v1799
        %2609 = vmatpush.bf16.msra.mxu0 %v1783
        %2610 = vmatpush.bf16.msra.mxu0 %v1767
        %2611 = vmatmul.bf16.gmra.mxu0 %v983
        %v2612 = vpop.f32.mrf.mxu0
        %v2613 = vadd.f32 0.0, %v2612
        %v2614 = vpop.f32.mrf.mxu0
        %v2615 = vadd.f32 0.0, %v2614
        %2616 = vdwg.mxu0
        %2617 = vmatpush.bf16.msra.mxu0 %v2007
        %2618 = vmatpush.bf16.msra.mxu0 %v1991
        %2619 = vmatpush.bf16.msra.mxu0 %v1975
        %2620 = vmatpush.bf16.msra.mxu0 %v1959
        %2621 = vmatpush.bf16.msra.mxu0 %v1943
        %2622 = vmatpush.bf16.msra.mxu0 %v1927
        %2623 = vmatpush.bf16.msra.mxu0 %v1911
        %2624 = vmatpush.bf16.msra.mxu0 %v1895
        %2625 = vmatmul.bf16.gmra.mxu0 %v984
        %v2626 = vpop.f32.mrf.mxu0
        %v2627 = vadd.f32 %v2613, %v2626
        %v2628 = vpop.f32.mrf.mxu0
        %v2629 = vadd.f32 %v2615, %v2628
        %2630 = vdwg.mxu0
        %2631 = vmatpush.bf16.msra.mxu0 %v1880
        %2632 = vmatpush.bf16.msra.mxu0 %v1864
        %2633 = vmatpush.bf16.msra.mxu0 %v1848
        %2634 = vmatpush.bf16.msra.mxu0 %v1832
        %2635 = vmatpush.bf16.msra.mxu0 %v1816
        %2636 = vmatpush.bf16.msra.mxu0 %v1800
        %2637 = vmatpush.bf16.msra.mxu0 %v1784
        %2638 = vmatpush.bf16.msra.mxu0 %v1768
        %2639 = vmatmul.bf16.gmra.mxu0 %v983
        %v2640 = vpop.f32.mrf.mxu0
        %v2641 = vadd.f32 0.0, %v2640
        %v2642 = vpop.f32.mrf.mxu0
        %v2643 = vadd.f32 0.0, %v2642
        %2644 = vdwg.mxu0
        %2645 = vmatpush.bf16.msra.mxu0 %v2008
        %2646 = vmatpush.bf16.msra.mxu0 %v1992
        %2647 = vmatpush.bf16.msra.mxu0 %v1976
        %2648 = vmatpush.bf16.msra.mxu0 %v1960
        %2649 = vmatpush.bf16.msra.mxu0 %v1944
        %2650 = vmatpush.bf16.msra.mxu0 %v1928
        %2651 = vmatpush.bf16.msra.mxu0 %v1912
        %2652 = vmatpush.bf16.msra.mxu0 %v1896
        %2653 = vmatmul.bf16.gmra.mxu0 %v984
        %v2654 = vpop.f32.mrf.mxu0
        %v2655 = vadd.f32 %v2641, %v2654
        %v2656 = vpop.f32.mrf.mxu0
        %v2657 = vadd.f32 %v2643, %v2656
        %2658 = vdwg.mxu0
        %2659 = vmatpush.bf16.msra.mxu0 %v1881
        %2660 = vmatpush.bf16.msra.mxu0 %v1865
        %2661 = vmatpush.bf16.msra.mxu0 %v1849
        %2662 = vmatpush.bf16.msra.mxu0 %v1833
        %2663 = vmatpush.bf16.msra.mxu0 %v1817
        %2664 = vmatpush.bf16.msra.mxu0 %v1801
        %2665 = vmatpush.bf16.msra.mxu0 %v1785
        %2666 = vmatpush.bf16.msra.mxu0 %v1769
        %2667 = vmatmul.bf16.gmra.mxu0 %v983
        %v2668 = vpop.f32.mrf.mxu0
        %v2669 = vadd.f32 0.0, %v2668
        %v2670 = vpop.f32.mrf.mxu0
        %v2671 = vadd.f32 0.0, %v2670
        %2672 = vdwg.mxu0
        %2673 = vmatpush.bf16.msra.mxu0 %v2009
        %2674 = vmatpush.bf16.msra.mxu0 %v1993
        %2675 = vmatpush.bf16.msra.mxu0 %v1977
        %2676 = vmatpush.bf16.msra.mxu0 %v1961
        %2677 = vmatpush.bf16.msra.mxu0 %v1945
        %2678 = vmatpush.bf16.msra.mxu0 %v1929
        %2679 = vmatpush.bf16.msra.mxu0 %v1913
        %2680 = vmatpush.bf16.msra.mxu0 %v1897
        %2681 = vmatmul.bf16.gmra.mxu0 %v984
        %v2682 = vpop.f32.mrf.mxu0
        %v2683 = vadd.f32 %v2669, %v2682
        %v2684 = vpop.f32.mrf.mxu0
        %v2685 = vadd.f32 %v2671, %v2684
        %2686 = vdwg.mxu0
        %2687 = vmatpush.bf16.msra.mxu0 %v1882
        %2688 = vmatpush.bf16.msra.mxu0 %v1866
        %2689 = vmatpush.bf16.msra.mxu0 %v1850
        %2690 = vmatpush.bf16.msra.mxu0 %v1834
        %2691 = vmatpush.bf16.msra.mxu0 %v1818
        %2692 = vmatpush.bf16.msra.mxu0 %v1802
        %2693 = vmatpush.bf16.msra.mxu0 %v1786
        %2694 = vmatpush.bf16.msra.mxu0 %v1770
        %2695 = vmatmul.bf16.gmra.mxu0 %v983
        %v2696 = vpop.f32.mrf.mxu0
        %v2697 = vadd.f32 0.0, %v2696
        %v2698 = vpop.f32.mrf.mxu0
        %v2699 = vadd.f32 0.0, %v2698
        %2700 = vdwg.mxu0
        %2701 = vmatpush.bf16.msra.mxu0 %v2010
        %2702 = vmatpush.bf16.msra.mxu0 %v1994
        %2703 = vmatpush.bf16.msra.mxu0 %v1978
        %2704 = vmatpush.bf16.msra.mxu0 %v1962
        %2705 = vmatpush.bf16.msra.mxu0 %v1946
        %2706 = vmatpush.bf16.msra.mxu0 %v1930
        %2707 = vmatpush.bf16.msra.mxu0 %v1914
        %2708 = vmatpush.bf16.msra.mxu0 %v1898
        %2709 = vmatmul.bf16.gmra.mxu0 %v984
        %v2710 = vpop.f32.mrf.mxu0
        %v2711 = vadd.f32 %v2697, %v2710
        %v2712 = vpop.f32.mrf.mxu0
        %v2713 = vadd.f32 %v2699, %v2712
        %2714 = vdwg.mxu0
        %2715 = vst [vmem:[%s712] sm:$0xff] %v2291
        %2716 = vst [vmem:[%s712 + $0x8] sm:$0xff] %v2319
        %2717 = vst [vmem:[%s712 + $0x10] sm:$0xff] %v2347
        %2718 = vst [vmem:[%s712 + $0x18] sm:$0xff] %v2375
        %2719 = vst [vmem:[%s712 + $0x20] sm:$0xff] %v2403
        %2720 = vst [vmem:[%s712 + $0x28] sm:$0xff] %v2431
        %2721 = vst [vmem:[%s712 + $0x30] sm:$0xff] %v2459
        %2722 = vst [vmem:[%s712 + $0x38] sm:$0xff] %v2487
        %2723 = vst [vmem:[%s712 + $0x40] sm:$0xff] %v2515
        %2724 = vst [vmem:[%s712 + $0x48] sm:$0xff] %v2543
        %2725 = vst [vmem:[%s712 + $0x50] sm:$0xff] %v2571
        %2726 = vst [vmem:[%s712 + $0x58] sm:$0xff] %v2599
        %2727 = vst [vmem:[%s712 + $0x60] sm:$0xff] %v2627
        %2728 = vst [vmem:[%s712 + $0x68] sm:$0xff] %v2655
        %2729 = vst [vmem:[%s712 + $0x70] sm:$0xff] %v2683
        %2730 = vst [vmem:[%s712 + $0x78] sm:$0xff] %v2711
        %2731 = vst [vmem:[%s712 + $0x80] sm:$0xff] %v2293
        %2732 = vst [vmem:[%s712 + $0x88] sm:$0xff] %v2321
        %2733 = vst [vmem:[%s712 + $0x90] sm:$0xff] %v2349
        %2734 = vst [vmem:[%s712 + $0x98] sm:$0xff] %v2377
        %2735 = vst [vmem:[%s712 + $0xa0] sm:$0xff] %v2405
        %2736 = vst [vmem:[%s712 + $0xa8] sm:$0xff] %v2433
        %2737 = vst [vmem:[%s712 + $0xb0] sm:$0xff] %v2461
        %2738 = vst [vmem:[%s712 + $0xb8] sm:$0xff] %v2489
        %2739 = vst [vmem:[%s712 + $0xc0] sm:$0xff] %v2517
        %2740 = vst [vmem:[%s712 + $0xc8] sm:$0xff] %v2545
        %2741 = vst [vmem:[%s712 + $0xd0] sm:$0xff] %v2573
        %2742 = vst [vmem:[%s712 + $0xd8] sm:$0xff] %v2601
        %2743 = vst [vmem:[%s712 + $0xe0] sm:$0xff] %v2629
        %2744 = vst [vmem:[%s712 + $0xe8] sm:$0xff] %v2657
        %2745 = vst [vmem:[%s712 + $0xf0] sm:$0xff] %v2685
        %2746 = vst [vmem:[%s712 + $0xf8] sm:$0xff] %v2713
        %p2747 = scmp.eq.s32.totalorder %s16, 0
        // Predicated region
        $region52: #{input_transition_forward.2} parent=46 // pred_check
          %p2748 = pneg %p2747
        $region53: #{input_transition_forward.2} parent=46 // pred_check_branch
          %2750 = sbr.rel (%p2748) target = $region55
        $region54: #{input_transition_forward.2} parent=46 // pred_region
          %vm2751 = vcmask 7168
          %2752 = vst.msk [vmem:[%s3] sm:$0xff] %vm2751, 0.0
          %2753 = vst.msk [vmem:[%s3 + $0x8] sm:$0xff] %vm2751, 0.0
          %2754 = vst.msk [vmem:[%s4] sm:$0xff] %vm2751, 0.0
          %2755 = vst.msk [vmem:[%s4 + $0x8] sm:$0xff] %vm2751, 0.0
        $region55: #{input_transition_forward.2} parent=46 // pred_fallthru
          _
        %v2756 = vld [vmem:[%s3] sm:$0xff]
        %v2757 = vld [vmem:[%s3 + $0x8] sm:$0xff]
        %v2758 = vadd.f32 %v2291, %v2319
        %v2759 = vadd.f32 %v2758, %v2347
        %v2760 = vadd.f32 %v2759, %v2375
        %v2761 = vadd.f32 %v2760, %v2403
        %v2762 = vadd.f32 %v2761, %v2431
        %v2763 = vadd.f32 %v2762, %v2459
        %v2764 = vadd.f32 %v2763, %v2487
        %v2765 = vadd.f32 %v2764, %v2515
        %v2766 = vadd.f32 %v2765, %v2543
        %v2767 = vadd.f32 %v2766, %v2571
        %v2768 = vadd.f32 %v2767, %v2599
        %v2769 = vadd.f32 %v2768, %v2627
        %v2770 = vadd.f32 %v2769, %v2655
        %v2771 = vadd.f32 %v2770, %v2683
        %v2772 = vadd.f32 %v2771, %v2711
        %2773 = vadd.xlane.f32.xlu0 %v2772
        %v2774 = vpop.xlane.xlu0 %2773
        %v2775 = vadd.f32 %v2293, %v2321
        %v2776 = vadd.f32 %v2775, %v2349
        %v2777 = vadd.f32 %v2776, %v2377
        %v2778 = vadd.f32 %v2777, %v2405
        %v2779 = vadd.f32 %v2778, %v2433
        %v2780 = vadd.f32 %v2779, %v2461
        %v2781 = vadd.f32 %v2780, %v2489
        %v2782 = vadd.f32 %v2781, %v2517
        %v2783 = vadd.f32 %v2782, %v2545
        %v2784 = vadd.f32 %v2783, %v2573
        %v2785 = vadd.f32 %v2784, %v2601
        %v2786 = vadd.f32 %v2785, %v2629
        %v2787 = vadd.f32 %v2786, %v2657
        %v2788 = vadd.f32 %v2787, %v2685
        %v2789 = vadd.f32 %v2788, %v2713
        %2790 = vadd.xlane.f32.xlu0 %v2789
        %v2791 = vpop.xlane.xlu0 %2790
        %v2792 = vadd.f32 %v2756, %v2774
        %v2793 = vadd.f32 %v2757, %v2791
        %vm2794 = vcmask 7168
        %2795 = vst.msk [vmem:[%s3] sm:$0xff] %vm2794, %v2792
        %2796 = vst.msk [vmem:[%s3 + $0x8] sm:$0xff] %vm2794, %v2793
        %v2797 = vld [vmem:[%s4] sm:$0xff]
        %v2798 = vld [vmem:[%s4 + $0x8] sm:$0xff]
        %v2799 = vmul.f32 %v2291, %v2291
        %v2800 = vmul.f32 %v2319, %v2319
        %v2801 = vmul.f32 %v2347, %v2347
        %v2802 = vmul.f32 %v2375, %v2375
        %v2803 = vmul.f32 %v2403, %v2403
        %v2804 = vmul.f32 %v2431, %v2431
        %v2805 = vmul.f32 %v2459, %v2459
        %v2806 = vmul.f32 %v2487, %v2487
        %v2807 = vmul.f32 %v2515, %v2515
        %v2808 = vmul.f32 %v2543, %v2543
        %v2809 = vmul.f32 %v2571, %v2571
        %v2810 = vmul.f32 %v2599, %v2599
        %v2811 = vmul.f32 %v2627, %v2627
        %v2812 = vmul.f32 %v2655, %v2655
        %v2813 = vmul.f32 %v2683, %v2683
        %v2814 = vmul.f32 %v2711, %v2711
        %v2815 = vmul.f32 %v2293, %v2293
        %v2816 = vmul.f32 %v2321, %v2321
        %v2817 = vmul.f32 %v2349, %v2349
        %v2818 = vmul.f32 %v2377, %v2377
        %v2819 = vmul.f32 %v2405, %v2405
        %v2820 = vmul.f32 %v2433, %v2433
        %v2821 = vmul.f32 %v2461, %v2461
        %v2822 = vmul.f32 %v2489, %v2489
        %v2823 = vmul.f32 %v2517, %v2517
        %v2824 = vmul.f32 %v2545, %v2545
        %v2825 = vmul.f32 %v2573, %v2573
        %v2826 = vmul.f32 %v2601, %v2601
        %v2827 = vmul.f32 %v2629, %v2629
        %v2828 = vmul.f32 %v2657, %v2657
        %v2829 = vmul.f32 %v2685, %v2685
        %v2830 = vmul.f32 %v2713, %v2713
        %v2831 = vadd.f32 %v2799, %v2800
        %v2832 = vadd.f32 %v2831, %v2801
        %v2833 = vadd.f32 %v2832, %v2802
        %v2834 = vadd.f32 %v2833, %v2803
        %v2835 = vadd.f32 %v2834, %v2804
        %v2836 = vadd.f32 %v2835, %v2805
        %v2837 = vadd.f32 %v2836, %v2806
        %v2838 = vadd.f32 %v2837, %v2807
        %v2839 = vadd.f32 %v2838, %v2808
        %v2840 = vadd.f32 %v2839, %v2809
        %v2841 = vadd.f32 %v2840, %v2810
        %v2842 = vadd.f32 %v2841, %v2811
        %v2843 = vadd.f32 %v2842, %v2812
        %v2844 = vadd.f32 %v2843, %v2813
        %v2845 = vadd.f32 %v2844, %v2814
        %2846 = vadd.xlane.f32.xlu0 %v2845
        %v2847 = vpop.xlane.xlu0 %2846
        %v2848 = vadd.f32 %v2815, %v2816
        %v2849 = vadd.f32 %v2848, %v2817
        %v2850 = vadd.f32 %v2849, %v2818
        %v2851 = vadd.f32 %v2850, %v2819
        %v2852 = vadd.f32 %v2851, %v2820
        %v2853 = vadd.f32 %v2852, %v2821
        %v2854 = vadd.f32 %v2853, %v2822
        %v2855 = vadd.f32 %v2854, %v2823
        %v2856 = vadd.f32 %v2855, %v2824
        %v2857 = vadd.f32 %v2856, %v2825
        %v2858 = vadd.f32 %v2857, %v2826
        %v2859 = vadd.f32 %v2858, %v2827
        %v2860 = vadd.f32 %v2859, %v2828
        %v2861 = vadd.f32 %v2860, %v2829
        %v2862 = vadd.f32 %v2861, %v2830
        %2863 = vadd.xlane.f32.xlu0 %v2862
        %v2864 = vpop.xlane.xlu0 %2863
        %v2865 = vadd.f32 %v2797, %v2847
        %v2866 = vadd.f32 %v2798, %v2864
        %2867 = vst.msk [vmem:[%s4] sm:$0xff] %vm2794, %v2865
        %2868 = vst.msk [vmem:[%s4 + $0x8] sm:$0xff] %vm2794, %v2866
        %s2869 = sand.u32 %s71, 1
        %s2870 = sand.u32 %s71, 1
        %s2871 = smul.addr %s2870, 256
        %s2872 = scalar_lea.vmem [#allocation3], %s2871
        // Predicated region
        $region56: #{input_transition_forward.2} parent=46 // pred_check
          %p2873 = pneg %p81
        $region57: #{input_transition_forward.2} parent=46 // pred_check_branch
          %2875 = sbr.rel (%p2873) target = $region59
        $region58: #{input_transition_forward.2} parent=46 // pred_region
          %s2876 = smul.u32 16, %s16
          %s2877 = smul.addr %s2876, 8
          %s2878 = scalar_lea.vmem %s2, %s2877
          // Predicated region
          $region60: #{input_transition_forward.2} parent=58 // pred_check
            _
          $region61: #{input_transition_forward.2} parent=58 // pred_check_branch
            %2880 = sbr.rel (0) target = $region63
          $region62: #{input_transition_forward.2} parent=58 // pred_region
            // Predicated region
            $region64: #{input_transition_forward.2} parent=62 // pred_check
              _
            $region65: #{input_transition_forward.2} parent=62 // pred_check_branch
              %2882 = sbr.rel (0) target = $region67
            $region66: #{input_transition_forward.2} parent=62 // pred_region
              loop: start=0, step=1, limit=1
              $region68: #{input_transition_forward.2} parent=66 // loop_pre_header
                _
              $region69: #{input_transition_forward.2} parent=66 // loop_header
                %s2884 = sphi 0, %s2888
                %p2885 = scmp.ge.s32.totalorder %s2884, 1
                %s2889 = sphi %s2872, %s2872
                %s2890 = sphi %s2878, %s2878
              $region70: #{input_transition_forward.2} parent=66 // loop_header_branch
                %2887 = sbr.rel (%p2885) target = $region74
              $region71: #{input_transition_forward.2} parent=66 // loop_body
                %v2891 = vld [vmem:[%s2889] sm:$0xff]
                %2892 = vst [vmem:[%s2890] sm:$0xff] %v2891
                %v2893 = vld [vmem:[%s2889 + $0x8] sm:$0xff]
                %2894 = vst [vmem:[%s2890 + $0x8] sm:$0xff] %v2893
                %v2895 = vld [vmem:[%s2889 + $0x10] sm:$0xff]
                %2896 = vst [vmem:[%s2890 + $0x10] sm:$0xff] %v2895
                %v2897 = vld [vmem:[%s2889 + $0x18] sm:$0xff]
                %2898 = vst [vmem:[%s2890 + $0x18] sm:$0xff] %v2897
                %v2899 = vld [vmem:[%s2889 + $0x20] sm:$0xff]
                %2900 = vst [vmem:[%s2890 + $0x20] sm:$0xff] %v2899
                %v2901 = vld [vmem:[%s2889 + $0x28] sm:$0xff]
                %2902 = vst [vmem:[%s2890 + $0x28] sm:$0xff] %v2901
                %v2903 = vld [vmem:[%s2889 + $0x30] sm:$0xff]
                %2904 = vst [vmem:[%s2890 + $0x30] sm:$0xff] %v2903
                %v2905 = vld [vmem:[%s2889 + $0x38] sm:$0xff]
                %2906 = vst [vmem:[%s2890 + $0x38] sm:$0xff] %v2905
                %v2907 = vld [vmem:[%s2889 + $0x40] sm:$0xff]
                %2908 = vst [vmem:[%s2890 + $0x40] sm:$0xff] %v2907
                %v2909 = vld [vmem:[%s2889 + $0x48] sm:$0xff]
                %2910 = vst [vmem:[%s2890 + $0x48] sm:$0xff] %v2909
                %v2911 = vld [vmem:[%s2889 + $0x50] sm:$0xff]
                %2912 = vst [vmem:[%s2890 + $0x50] sm:$0xff] %v2911
                %v2913 = vld [vmem:[%s2889 + $0x58] sm:$0xff]
                %2914 = vst [vmem:[%s2890 + $0x58] sm:$0xff] %v2913
                %v2915 = vld [vmem:[%s2889 + $0x60] sm:$0xff]
                %2916 = vst [vmem:[%s2890 + $0x60] sm:$0xff] %v2915
                %v2917 = vld [vmem:[%s2889 + $0x68] sm:$0xff]
                %2918 = vst [vmem:[%s2890 + $0x68] sm:$0xff] %v2917
                %v2919 = vld [vmem:[%s2889 + $0x70] sm:$0xff]
                %2920 = vst [vmem:[%s2890 + $0x70] sm:$0xff] %v2919
                %v2921 = vld [vmem:[%s2889 + $0x78] sm:$0xff]
                %2922 = vst [vmem:[%s2890 + $0x78] sm:$0xff] %v2921
                %v2923 = vld [vmem:[%s2889 + $0x80] sm:$0xff]
                %2924 = vst [vmem:[%s2890 + $0x200] sm:$0xff] %v2923
                %v2925 = vld [vmem:[%s2889 + $0x88] sm:$0xff]
                %2926 = vst [vmem:[%s2890 + $0x208] sm:$0xff] %v2925
                %v2927 = vld [vmem:[%s2889 + $0x90] sm:$0xff]
                %2928 = vst [vmem:[%s2890 + $0x210] sm:$0xff] %v2927
                %v2929 = vld [vmem:[%s2889 + $0x98] sm:$0xff]
                %2930 = vst [vmem:[%s2890 + $0x218] sm:$0xff] %v2929
                %v2931 = vld [vmem:[%s2889 + $0xa0] sm:$0xff]
                %2932 = vst [vmem:[%s2890 + $0x220] sm:$0xff] %v2931
                %v2933 = vld [vmem:[%s2889 + $0xa8] sm:$0xff]
                %2934 = vst [vmem:[%s2890 + $0x228] sm:$0xff] %v2933
                %v2935 = vld [vmem:[%s2889 + $0xb0] sm:$0xff]
                %2936 = vst [vmem:[%s2890 + $0x230] sm:$0xff] %v2935
                %v2937 = vld [vmem:[%s2889 + $0xb8] sm:$0xff]
                %2938 = vst [vmem:[%s2890 + $0x238] sm:$0xff] %v2937
                %v2939 = vld [vmem:[%s2889 + $0xc0] sm:$0xff]
                %2940 = vst [vmem:[%s2890 + $0x240] sm:$0xff] %v2939
                %v2941 = vld [vmem:[%s2889 + $0xc8] sm:$0xff]
                %2942 = vst [vmem:[%s2890 + $0x248] sm:$0xff] %v2941
                %v2943 = vld [vmem:[%s2889 + $0xd0] sm:$0xff]
                %2944 = vst [vmem:[%s2890 + $0x250] sm:$0xff] %v2943
                %v2945 = vld [vmem:[%s2889 + $0xd8] sm:$0xff]
                %2946 = vst [vmem:[%s2890 + $0x258] sm:$0xff] %v2945
                %v2947 = vld [vmem:[%s2889 + $0xe0] sm:$0xff]
                %2948 = vst [vmem:[%s2890 + $0x260] sm:$0xff] %v2947
                %v2949 = vld [vmem:[%s2889 + $0xe8] sm:$0xff]
                %2950 = vst [vmem:[%s2890 + $0x268] sm:$0xff] %v2949
                %v2951 = vld [vmem:[%s2889 + $0xf0] sm:$0xff]
                %2952 = vst [vmem:[%s2890 + $0x270] sm:$0xff] %v2951
                %v2953 = vld [vmem:[%s2889 + $0xf8] sm:$0xff]
                %2954 = vst [vmem:[%s2890 + $0x278] sm:$0xff] %v2953
              $region72: #{input_transition_forward.2} parent=66 // loop_footer
                %s2888 = sadd.s32 1, %s2884
              $region73: #{input_transition_forward.2} parent=66 // loop_footer_branch
                %2883 = sbr.rel target = $region69
              $region74: #{input_transition_forward.2} parent=66 // loop_exit
                _
            $region67: #{input_transition_forward.2} parent=62 // pred_fallthru
              _
            // Predicated region
            $region75: #{input_transition_forward.2} parent=62 // pred_check
              _
            $region76: #{input_transition_forward.2} parent=62 // pred_check_branch
              %2956 = sbr.rel target = $region78
            $region77: #{input_transition_forward.2} parent=62 // pred_region
              _
            $region78: #{input_transition_forward.2} parent=62 // pred_fallthru
              _
          $region63: #{input_transition_forward.2} parent=58 // pred_fallthru
            _
          %2957 = vnop
        $region59: #{input_transition_forward.2} parent=46 // pred_fallthru
          _
        // Predicated region
        $region79: #{input_transition_forward.2} parent=46 // pred_check
          %p2958 = pneg %p102
        $region80: #{input_transition_forward.2} parent=46 // pred_check_branch
          %2960 = sbr.rel (%p2958) target = $region82
        $region81: #{input_transition_forward.2} parent=46 // pred_region
          _
        $region82: #{input_transition_forward.2} parent=46 // pred_fallthru
          _
        // Predicated region
        $region83: #{input_transition_forward.2} parent=46 // pred_check
          %p2961 = pneg %p123
        $region84: #{input_transition_forward.2} parent=46 // pred_check_branch
          %2963 = sbr.rel (%p2961) target = $region86
        $region85: #{input_transition_forward.2} parent=46 // pred_region
          _
        $region86: #{input_transition_forward.2} parent=46 // pred_fallthru
          _
        // Predicated region
        $region87: #{input_transition_forward.2} parent=46 // pred_check
          %p2964 = pneg %p102
        $region88: #{input_transition_forward.2} parent=46 // pred_check_branch
          %2966 = sbr.rel (%p2964) target = $region90
        $region89: #{input_transition_forward.2} parent=46 // pred_region
          _
        $region90: #{input_transition_forward.2} parent=46 // pred_fallthru
          _
        // Predicated region
        $region91: #{input_transition_forward.2} parent=46 // pred_check
          %p2967 = pneg %p123
        $region92: #{input_transition_forward.2} parent=46 // pred_check_branch
          %2969 = sbr.rel (%p2967) target = $region94
        $region93: #{input_transition_forward.2} parent=46 // pred_region
          _
        $region94: #{input_transition_forward.2} parent=46 // pred_fallthru
          _
      $region47: #{input_transition_forward.2} parent=5 // pred_fallthru
        _
      %p2970 = scmp.le.s32.totalorder 2, %s11
      // Predicated region
      $region95: #{input_transition_forward.2} parent=5 // pred_check
        %p2971 = pneg %p2970
      $region96: #{input_transition_forward.2} parent=5 // pred_check_branch
        %2973 = sbr.rel (%p2971) target = $region98
      $region97: #{input_transition_forward.2} parent=5 // pred_region
        %s2974 = ssub.s32 %s11, 2
        // Predicated region
        $region99: #{input_transition_forward.2} parent=97 // pred_check
          %p2975 = pneg %p87
        $region100: #{input_transition_forward.2} parent=97 // pred_check_branch
          %2977 = sbr.rel (%p2975) target = $region102
        $region101: #{input_transition_forward.2} parent=97 // pred_region
          %s2978 = sand.u32 %s72, 1
          %s2979 = sand.u32 %s72, 1
          %s2980 = smul.addr %s2979, 256
          %s2981 = scalar_lea.vmem [#allocation3], %s2980
        $region102: #{input_transition_forward.2} parent=97 // pred_fallthru
          _
      $region98: #{input_transition_forward.2} parent=5 // pred_fallthru
        _
    $region6: #{input_transition_forward.2} parent=1 // loop_footer
      %s15 = sadd.s32 1, %s11
    $region7: #{input_transition_forward.2} parent=1 // loop_footer_branch
      %10 = sbr.rel target = $region3
    $region8: #{input_transition_forward.2} parent=1 // loop_exit
      _

</llo_original>
